<compile_context>
chip_gen: v7x
topology: tpu7x:2x2x1
jax: 0.10.0
libtpu: 0.0.40
codegen_flags: <defaults>
</compile_context>

<pallas_src>
import functools

import jax
import jax.numpy as jnp
from jax.experimental import pallas as pl
from jax.experimental.pallas import tpu as pltpu


# ------------------------------ shared attention core ------------------------------
def _mha_core(xq2d, xkv2d, wq, wk, wv, wp, bp, tb, nq, nk, num_heads, scale, cdt):
    """Multi-head attention on flattened (tb*n, C) activations, all in VMEM.

    Matmul inputs are cast to `cdt` (f32 or bf16); accumulation is always f32.
    concat_h(o_h) @ Wp == sum_h o_h @ Wp[h*hd:(h+1)*hd, :]  (avoids lane concat).
    """
    C = wq.shape[1]
    hd = C // num_heads
    xq_c = xq2d.astype(cdt)
    xkv_c = xkv2d.astype(cdt)
    # Fold the softmax scale into q once (cheaper than scaling every score tile).
    q = jnp.dot(xq_c, wq.astype(cdt), preferred_element_type=jnp.float32) * scale  # (tb*nq, C)
    k = jnp.dot(xkv_c, wk.astype(cdt), preferred_element_type=jnp.float32)         # (tb*nk, C)
    v = jnp.dot(xkv_c, wv.astype(cdt), preferred_element_type=jnp.float32)         # (tb*nk, C)
    wp_c = wp.astype(cdt)

    y = jnp.zeros((tb * nq, C), jnp.float32)
    for h in range(num_heads):                      # static unroll; num_heads is small
        lo, hi = h * hd, (h + 1) * hd
        qh = q[:, lo:hi].reshape(tb, nq, hd).astype(cdt)
        kh = k[:, lo:hi].reshape(tb, nk, hd).astype(cdt)
        vh = v[:, lo:hi].reshape(tb, nk, hd).astype(cdt)
        s = jnp.einsum("bqd,bkd->bqk", qh, kh,
                       preferred_element_type=jnp.float32)                   # (tb,nq,nk)
        s = s - jnp.max(s, axis=-1, keepdims=True)                           # stable softmax
        p = jnp.exp(s)
        p = p / jnp.sum(p, axis=-1, keepdims=True)
        # TODO(synk): attn_drop (train-mode) not applied here.
        oh = jnp.einsum("bqk,bkd->bqd", p.astype(cdt), vh,
                        preferred_element_type=jnp.float32)                  # (tb,nq,hd)
        y = y + jnp.dot(oh.reshape(tb * nq, hd).astype(cdt), wp_c[lo:hi, :],
                        preferred_element_type=jnp.float32)
    return y + bp                                                            # (tb*nq, C)


# ------------------------------ kernels ------------------------------
def _attn_self_kernel(x_ref, wq_ref, wk_ref, wv_ref, wp_ref, bp_ref, o_ref,
                      *, num_heads, scale, compute_dtype):
    # x_ref: (tb, N, C) -- tb samples per grid step; kv source == x (sr_ratio == 1).
    tb, nq, C = x_ref.shape
    x2d = x_ref[...].reshape(tb * nq, C)
    y = _mha_core(x2d, x2d, wq_ref[...], wk_ref[...], wv_ref[...], wp_ref[...],
                  bp_ref[...], tb, nq, nq, num_heads, scale, compute_dtype)
    o_ref[...] = y.reshape(tb, nq, C).astype(o_ref.dtype)


def _attn_sr_kernel(x_ref, pat_ref, wsr_ref, vecs_ref,
                    wq_ref, wk_ref, wv_ref, wp_ref, o_ref,
                    *, num_heads, scale, compute_dtype, ln_eps):
    # x_ref: (tb, N, C) queries; pat_ref: (tb, Nk, sr*sr*C) non-overlapping patches.
    # vecs_ref rows: [sr-conv bias, LN gamma, LN beta, proj bias]  -- packed (4, C).
    tb, nq, C = x_ref.shape
    _, nk, P = pat_ref.shape
    cdt = compute_dtype
    x2d = x_ref[...].reshape(tb * nq, C)
    pat2d = pat_ref[...].reshape(tb * nk, P)
    # Spatial-reduction conv (kernel=stride=sr) as a patch matmul + bias.
    xkv = jnp.dot(pat2d.astype(cdt), wsr_ref[...].astype(cdt),
                  preferred_element_type=jnp.float32) + vecs_ref[0:1, :]
    # LayerNorm over channels (f32).
    mu = jnp.mean(xkv, axis=-1, keepdims=True)
    xc = xkv - mu
    var = jnp.mean(xc * xc, axis=-1, keepdims=True)
    xkv = xc * jax.lax.rsqrt(var + ln_eps) * vecs_ref[1:2, :] + vecs_ref[2:3, :]
    y = _mha_core(x2d, xkv, wq_ref[...], wk_ref[...], wv_ref[...], wp_ref[...],
                  vecs_ref[3:4, :], tb, nq, nk, num_heads, scale, cdt)
    o_ref[...] = y.reshape(tb, nq, C).astype(o_ref.dtype)


# ------------------------------ wrapper ------------------------------
def _pick_tb(B, N, C, itemsize=4, budget_bytes=2 * 1024 * 1024):
    """Largest divisor of B whose (tb, N, C) activation block stays <= budget.

    Keeps double-buffered blocks well inside v7x's smaller VMEM while still
    amortizing the ~600-cycle per-grid-step overhead over many samples."""
    tb = 1
    for t in range(1, B + 1):
        if B % t == 0 and t * N * C * itemsize <= budget_bytes:
            tb = t
    return tb


def _extract_patches(x, H, W, sr):
    """(B, H*W, C) -> (B, (H/sr)*(W/sr), sr*sr*C), patch order (kh, kw, c)."""
    B, N, C = x.shape
    xs = x.reshape(B, H // sr, sr, W // sr, sr, C)
    xs = jnp.transpose(xs, (0, 1, 3, 2, 4, 5))
    return xs.reshape(B, (H // sr) * (W // sr), sr * sr * C)


def attention_forward(x, H, W, params, *, num_heads, sr_ratio=1,
                      compute_dtype=jnp.float32, tb=None):
    B, N, C = x.shape
    assert N == H * W and C % num_heads == 0
    scale = float(C // num_heads) ** -0.5
    if tb is None:
        tb = _pick_tb(B, N, C)
    grid = (B // tb,)
    cparams = pltpu.CompilerParams(dimension_semantics=("parallel",))
    full2d = lambda b: (0, 0)

    if sr_ratio == 1:
        kernel = functools.partial(_attn_self_kernel, num_heads=num_heads,
                                   scale=scale, compute_dtype=compute_dtype)
        return pl.pallas_call(
            kernel,
            out_shape=jax.ShapeDtypeStruct((B, N, C), x.dtype),
            grid=grid,
            in_specs=[
                pl.BlockSpec((tb, N, C), lambda b: (b, 0, 0)),   # x (tb samples/step)
                pl.BlockSpec((C, C), full2d),                    # Wq
                pl.BlockSpec((C, C), full2d),                    # Wk
                pl.BlockSpec((C, C), full2d),                    # Wv
                pl.BlockSpec((C, C), full2d),                    # Wproj
                pl.BlockSpec((1, C), full2d),                    # proj bias
            ],
            out_specs=pl.BlockSpec((tb, N, C), lambda b: (b, 0, 0)),
            compiler_params=cparams,
        )(x, params["wq"], params["wk"], params["wv"], params["wp"], params["bp"])

    sr = sr_ratio
    patches = _extract_patches(x, H, W, sr)                      # (B, Nk, sr*sr*C)
    Nk, P = patches.shape[1], patches.shape[2]
    vecs = jnp.concatenate([params["b_sr"], params["ln_gamma"],
                            params["ln_beta"], params["bp"]], axis=0)        # (4, C)
    kernel = functools.partial(_attn_sr_kernel, num_heads=num_heads, scale=scale,
                               compute_dtype=compute_dtype, ln_eps=1e-5)
    return pl.pallas_call(
        kernel,
        out_shape=jax.ShapeDtypeStruct((B, N, C), x.dtype),
        grid=grid,
        in_specs=[
            pl.BlockSpec((tb, N, C), lambda b: (b, 0, 0)),       # x (queries)
            pl.BlockSpec((tb, Nk, P), lambda b: (b, 0, 0)),      # patches (kv source)
            pl.BlockSpec((P, C), full2d),                        # sr conv weight
            pl.BlockSpec((4, C), full2d),                        # packed per-channel vecs
            pl.BlockSpec((C, C), full2d),                        # Wq
            pl.BlockSpec((C, C), full2d),                        # Wk
            pl.BlockSpec((C, C), full2d),                        # Wv
            pl.BlockSpec((C, C), full2d),                        # Wproj
        ],
        out_specs=pl.BlockSpec((tb, N, C), lambda b: (b, 0, 0)),
        compiler_params=cparams,
    )(x, patches, params["w_sr"], vecs,
      params["wq"], params["wk"], params["wv"], params["wp"])


# ------------------------------ parameters ------------------------------
def init_params(key, C, num_heads, sr_ratio, std=0.1):
    ks = jax.random.split(key, 8)
    wq_t = std * jax.random.normal(ks[0], (C, C), jnp.float32)       # torch (out, in)
    wkv_t = std * jax.random.normal(ks[1], (2 * C, C), jnp.float32)  # torch kv weight
    wp_t = std * jax.random.normal(ks[2], (C, C), jnp.float32)
    bp = std * jax.random.normal(ks[3], (C,), jnp.float32)
    p = {
        "wq": wq_t.T,                      # (in, out) for x @ W
        "wk": wkv_t[:C].T,                 # split kv -> Wk, Wv (no in-kernel slicing)
        "wv": wkv_t[C:].T,
        "wp": wp_t.T,
        "bp": bp.reshape(1, C),
    }
    if sr_ratio > 1:
        sr = sr_ratio
        w_sr_t = std * jax.random.normal(ks[4], (C, C, sr, sr), jnp.float32)  # (O,I,kh,kw)
        b_sr = std * jax.random.normal(ks[5], (C,), jnp.float32)
        gamma = 1.0 + 0.1 * jax.random.normal(ks[6], (C,), jnp.float32)
        beta = 0.1 * jax.random.normal(ks[7], (C,), jnp.float32)
        p.update({
            "w_sr_t": w_sr_t,                                                 # for reference conv
            "w_sr": jnp.transpose(w_sr_t, (2, 3, 1, 0)).reshape(sr * sr * C, C),
            "b_sr": b_sr.reshape(1, C),
            "ln_gamma": gamma.reshape(1, C),
            "ln_beta": beta.reshape(1, C),
        })
    return p


# ------------------------------ pure-JAX reference ------------------------------
def reference_attention(x, H, W, p, num_heads, sr_ratio):
    B, N, C = x.shape
    hd = C // num_heads
    scale = hd ** -0.5
    q = (x @ p["wq"]).reshape(B, N, num_heads, hd).transpose(0, 2, 1, 3)
    if sr_ratio > 1:
        sr = sr_ratio
        x_ = jnp.transpose(x, (0, 2, 1)).reshape(B, C, H, W)
        x_ = jax.lax.conv_general_dilated(
            x_, p["w_sr_t"], window_strides=(sr, sr), padding="VALID",
            dimension_numbers=("NCHW", "OIHW", "NCHW"))
        x_ = x_ + p["b_sr"][0][None, :, None, None]
        x_ = x_.reshape(B, C, -1).transpose(0, 2, 1)
        mu = x_.mean(-1, keepdims=True)
        var = ((x_ - mu) ** 2).mean(-1, keepdims=True)
        src = (x_ - mu) / jnp.sqrt(var + 1e-5) * p["ln_gamma"][0] + p["ln_beta"][0]
    else:
        src = x
    Nk = src.shape[1]
    k = (src @ p["wk"]).reshape(B, Nk, num_heads, hd).transpose(0, 2, 1, 3)
    v = (src @ p["wv"]).reshape(B, Nk, num_heads, hd).transpose(0, 2, 1, 3)
    attn = jnp.einsum("bhqd,bhkd->bhqk", q, k) * scale
    attn = jax.nn.softmax(attn, axis=-1)
    o = jnp.einsum("bhqk,bhkd->bhqd", attn, v)
    o = o.transpose(0, 2, 1, 3).reshape(B, N, C)
    return o @ p["wp"] + p["bp"][0]


if __name__ == "__main__":
    key = jax.random.PRNGKey(0)
    # C=128 keeps the output last dim a full lane width (unmasked vst).
    B, H, W, C, num_heads = 2, 8, 8, 128, 4
    N = H * W
    kx, kp1, kp2 = jax.random.split(key, 3)
    x = jax.random.normal(kx, (B, N, C), jnp.float32)

    # sr_ratio = 1, f32
    p1 = init_params(kp1, C, num_heads, sr_ratio=1)
    out1 = jax.block_until_ready(
        attention_forward(x, H, W, p1, num_heads=num_heads, sr_ratio=1))
    ref1 = reference_attention(x, H, W, p1, num_heads, 1)
    assert out1.shape == (B, N, C)
    assert jnp.allclose(out1, ref1, atol=2e-3, rtol=2e-3), "sr=1 mismatch vs reference"

    # sr_ratio = 2, f32 (SR conv + LayerNorm fused into the same kernel)
    p2 = init_params(kp2, C, num_heads, sr_ratio=2)
    out2 = jax.block_until_ready(
        attention_forward(x, H, W, p2, num_heads=num_heads, sr_ratio=2))
    ref2 = reference_attention(x, H, W, p2, num_heads, 2)
    assert out2.shape == (B, N, C)
    assert jnp.allclose(out2, ref2, atol=2e-3, rtol=2e-3), "sr=2 mismatch vs reference"

    # bf16 matmul inputs (f32 accumulation) -- MXU-friendly on v6e/v7x; loose tolerance.
    out1_bf16 = jax.block_until_ready(
        attention_forward(x, H, W, p1, num_heads=num_heads, sr_ratio=1,
                          compute_dtype=jnp.bfloat16))
    assert jnp.allclose(out1_bf16, ref1, atol=5e-2, rtol=5e-2), "bf16 mismatch vs reference"

    print("KERNEL_OK")
</pallas_src>

<mosaic_0001>
module attributes {stable_mosaic.version = 11 : i64} {
  func.func @_attn_self_kernel(%arg0: i32, %arg1: memref<2x64x128xf32, #tpu.memory_space<vmem>>, %arg2: memref<128x128xf32, #tpu.memory_space<vmem>>, %arg3: memref<128x128xf32, #tpu.memory_space<vmem>>, %arg4: memref<128x128xf32, #tpu.memory_space<vmem>>, %arg5: memref<128x128xf32, #tpu.memory_space<vmem>>, %arg6: memref<1x128xf32, #tpu.memory_space<vmem>>, %arg7: memref<2x64x128xf32, #tpu.memory_space<vmem>>) attributes {dimension_semantics = [#tpu.dimension_semantics<parallel>], iteration_bounds = array<i64: 1>, scalar_prefetch = 0 : i64, scratch_operands = 0 : i64, tpu.core_type = #tpu.core_type<tc>, window_params = [{transform_indices = @transform_0, window_bounds = array<i64: 2, 64, 128>}, {pipeline_mode = #tpu.pipeline_mode<synchronous>, transform_indices = @transform_1, window_bounds = array<i64: 128, 128>}, {pipeline_mode = #tpu.pipeline_mode<synchronous>, transform_indices = @transform_2, window_bounds = array<i64: 128, 128>}, {pipeline_mode = #tpu.pipeline_mode<synchronous>, transform_indices = @transform_3, window_bounds = array<i64: 128, 128>}, {pipeline_mode = #tpu.pipeline_mode<synchronous>, transform_indices = @transform_4, window_bounds = array<i64: 128, 128>}, {pipeline_mode = #tpu.pipeline_mode<synchronous>, transform_indices = @transform_5, window_bounds = array<i64: 1, 128>}, {transform_indices = @transform_6, window_bounds = array<i64: 2, 64, 128>}]} {
    %c0 = arith.constant 0 : index
    %c0_0 = arith.constant 0 : index
    %c0_1 = arith.constant 0 : index
    %0 = vector.load %arg1[%c0, %c0_0, %c0_1] : memref<2x64x128xf32, #tpu.memory_space<vmem>>, vector<2x64x128xf32>
    %1 = vector.shape_cast %0 : vector<2x64x128xf32> to vector<128x128xf32>
    %c0_2 = arith.constant 0 : index
    %c0_3 = arith.constant 0 : index
    %2 = vector.load %arg2[%c0_2, %c0_3] : memref<128x128xf32, #tpu.memory_space<vmem>>, vector<128x128xf32>
    %c0_4 = arith.constant 0 : index
    %c0_5 = arith.constant 0 : index
    %3 = vector.load %arg3[%c0_4, %c0_5] : memref<128x128xf32, #tpu.memory_space<vmem>>, vector<128x128xf32>
    %c0_6 = arith.constant 0 : index
    %c0_7 = arith.constant 0 : index
    %4 = vector.load %arg4[%c0_6, %c0_7] : memref<128x128xf32, #tpu.memory_space<vmem>>, vector<128x128xf32>
    %c0_8 = arith.constant 0 : index
    %c0_9 = arith.constant 0 : index
    %5 = vector.load %arg5[%c0_8, %c0_9] : memref<128x128xf32, #tpu.memory_space<vmem>>, vector<128x128xf32>
    %c0_10 = arith.constant 0 : index
    %c0_11 = arith.constant 0 : index
    %6 = vector.load %arg6[%c0_10, %c0_11] : memref<1x128xf32, #tpu.memory_space<vmem>>, vector<1x128xf32>
    %cst = arith.constant dense<0.000000e+00> : vector<128x128xf32>
    %7 = tpu.matmul %1, %2, %cst {dimension_numbers = #tpu.dot_dimension_numbers<[1], [0], [0], [1], [0, 0, 1, 1], [], []>} : vector<128x128xf32>, vector<128x128xf32>, vector<128x128xf32> -> vector<128x128xf32>
    %cst_12 = arith.constant 0.176776692 : f32
    %8 = vector.broadcast %cst_12 : f32 to vector<128x128xf32>
    %9 = arith.mulf %7, %8 : vector<128x128xf32>
    %cst_13 = arith.constant dense<0.000000e+00> : vector<128x128xf32>
    %10 = tpu.matmul %1, %3, %cst_13 {dimension_numbers = #tpu.dot_dimension_numbers<[1], [0], [0], [1], [0, 0, 1, 1], [], []>} : vector<128x128xf32>, vector<128x128xf32>, vector<128x128xf32> -> vector<128x128xf32>
    %cst_14 = arith.constant dense<0.000000e+00> : vector<128x128xf32>
    %11 = tpu.matmul %1, %4, %cst_14 {dimension_numbers = #tpu.dot_dimension_numbers<[1], [0], [0], [1], [0, 0, 1, 1], [], []>} : vector<128x128xf32>, vector<128x128xf32>, vector<128x128xf32> -> vector<128x128xf32>
    %cst_15 = arith.constant 0.000000e+00 : f32
    %12 = vector.broadcast %cst_15 : f32 to vector<128x128xf32>
    %13 = vector.extract_strided_slice %9 {offsets = [0, 0], sizes = [128, 32], strides = [1, 1]} : vector<128x128xf32> to vector<128x32xf32>
    %14 = vector.shape_cast %13 : vector<128x32xf32> to vector<2x64x32xf32>
    %15 = vector.extract_strided_slice %10 {offsets = [0, 0], sizes = [128, 32], strides = [1, 1]} : vector<128x128xf32> to vector<128x32xf32>
    %16 = vector.shape_cast %15 : vector<128x32xf32> to vector<2x64x32xf32>
    %17 = vector.extract_strided_slice %11 {offsets = [0, 0], sizes = [128, 32], strides = [1, 1]} : vector<128x128xf32> to vector<128x32xf32>
    %18 = vector.shape_cast %17 : vector<128x32xf32> to vector<2x64x32xf32>
    "tpu.trace_start"() <{level = 10 : i32, message = "bqd,bkd->bqk"}> : () -> ()
    %cst_16 = arith.constant dense<0.000000e+00> : vector<2x64x64xf32>
    %19 = tpu.matmul %14, %16, %cst_16 {dimension_numbers = #tpu.dot_dimension_numbers<[2], [2], [1], [1], [0, 0, 0, 1, 1, 1], [0], [0]>} : vector<2x64x32xf32>, vector<2x64x32xf32>, vector<2x64x64xf32> -> vector<2x64x64xf32>
    "tpu.trace_stop"() : () -> ()
    %cst_17 = arith.constant dense<0xFF800000> : vector<2x64xf32>
    %20 = vector.multi_reduction <maximumf>, %19, %cst_17 [2] : vector<2x64x64xf32> to vector<2x64xf32>
    %21 = vector.shape_cast %20 : vector<2x64xf32> to vector<2x64x1xf32>
    %22 = vector.broadcast %21 : vector<2x64x1xf32> to vector<2x64x64xf32>
    %23 = arith.subf %19, %22 : vector<2x64x64xf32>
    %24 = math.exp %23 : vector<2x64x64xf32>
    %cst_18 = arith.constant dense<0.000000e+00> : vector<2x64xf32>
    %25 = vector.multi_reduction <add>, %24, %cst_18 [2] : vector<2x64x64xf32> to vector<2x64xf32>
    %26 = vector.shape_cast %25 : vector<2x64xf32> to vector<2x64x1xf32>
    %27 = vector.broadcast %26 : vector<2x64x1xf32> to vector<2x64x64xf32>
    %28 = arith.divf %24, %27 : vector<2x64x64xf32>
    "tpu.trace_start"() <{level = 10 : i32, message = "bqk,bkd->bqd"}> : () -> ()
    %cst_19 = arith.constant dense<0.000000e+00> : vector<2x64x32xf32>
    %29 = tpu.matmul %28, %18, %cst_19 {dimension_numbers = #tpu.dot_dimension_numbers<[2], [1], [1], [2], [0, 0, 0, 1, 1, 2], [0], [0]>} : vector<2x64x64xf32>, vector<2x64x32xf32>, vector<2x64x32xf32> -> vector<2x64x32xf32>
    "tpu.trace_stop"() : () -> ()
    %30 = vector.shape_cast %29 : vector<2x64x32xf32> to vector<128x32xf32>
    %31 = vector.extract_strided_slice %5 {offsets = [0, 0], sizes = [32, 128], strides = [1, 1]} : vector<128x128xf32> to vector<32x128xf32>
    %cst_20 = arith.constant dense<0.000000e+00> : vector<128x128xf32>
    %32 = tpu.matmul %30, %31, %cst_20 {dimension_numbers = #tpu.dot_dimension_numbers<[1], [0], [0], [1], [0, 0, 1, 1], [], []>} : vector<128x32xf32>, vector<32x128xf32>, vector<128x128xf32> -> vector<128x128xf32>
    %33 = arith.addf %12, %32 : vector<128x128xf32>
    %34 = vector.extract_strided_slice %9 {offsets = [0, 32], sizes = [128, 32], strides = [1, 1]} : vector<128x128xf32> to vector<128x32xf32>
    %35 = vector.shape_cast %34 : vector<128x32xf32> to vector<2x64x32xf32>
    %36 = vector.extract_strided_slice %10 {offsets = [0, 32], sizes = [128, 32], strides = [1, 1]} : vector<128x128xf32> to vector<128x32xf32>
    %37 = vector.shape_cast %36 : vector<128x32xf32> to vector<2x64x32xf32>
    %38 = vector.extract_strided_slice %11 {offsets = [0, 32], sizes = [128, 32], strides = [1, 1]} : vector<128x128xf32> to vector<128x32xf32>
    %39 = vector.shape_cast %38 : vector<128x32xf32> to vector<2x64x32xf32>
    "tpu.trace_start"() <{level = 10 : i32, message = "bqd,bkd->bqk"}> : () -> ()
    %cst_21 = arith.constant dense<0.000000e+00> : vector<2x64x64xf32>
    %40 = tpu.matmul %35, %37, %cst_21 {dimension_numbers = #tpu.dot_dimension_numbers<[2], [2], [1], [1], [0, 0, 0, 1, 1, 1], [0], [0]>} : vector<2x64x32xf32>, vector<2x64x32xf32>, vector<2x64x64xf32> -> vector<2x64x64xf32>
    "tpu.trace_stop"() : () -> ()
    %cst_22 = arith.constant dense<0xFF800000> : vector<2x64xf32>
    %41 = vector.multi_reduction <maximumf>, %40, %cst_22 [2] : vector<2x64x64xf32> to vector<2x64xf32>
    %42 = vector.shape_cast %41 : vector<2x64xf32> to vector<2x64x1xf32>
    %43 = vector.broadcast %42 : vector<2x64x1xf32> to vector<2x64x64xf32>
    %44 = arith.subf %40, %43 : vector<2x64x64xf32>
    %45 = math.exp %44 : vector<2x64x64xf32>
    %cst_23 = arith.constant dense<0.000000e+00> : vector<2x64xf32>
    %46 = vector.multi_reduction <add>, %45, %cst_23 [2] : vector<2x64x64xf32> to vector<2x64xf32>
    %47 = vector.shape_cast %46 : vector<2x64xf32> to vector<2x64x1xf32>
    %48 = vector.broadcast %47 : vector<2x64x1xf32> to vector<2x64x64xf32>
    %49 = arith.divf %45, %48 : vector<2x64x64xf32>
    "tpu.trace_start"() <{level = 10 : i32, message = "bqk,bkd->bqd"}> : () -> ()
    %cst_24 = arith.constant dense<0.000000e+00> : vector<2x64x32xf32>
    %50 = tpu.matmul %49, %39, %cst_24 {dimension_numbers = #tpu.dot_dimension_numbers<[2], [1], [1], [2], [0, 0, 0, 1, 1, 2], [0], [0]>} : vector<2x64x64xf32>, vector<2x64x32xf32>, vector<2x64x32xf32> -> vector<2x64x32xf32>
    "tpu.trace_stop"() : () -> ()
    %51 = vector.shape_cast %50 : vector<2x64x32xf32> to vector<128x32xf32>
    %52 = vector.extract_strided_slice %5 {offsets = [32, 0], sizes = [32, 128], strides = [1, 1]} : vector<128x128xf32> to vector<32x128xf32>
    %cst_25 = arith.constant dense<0.000000e+00> : vector<128x128xf32>
    %53 = tpu.matmul %51, %52, %cst_25 {dimension_numbers = #tpu.dot_dimension_numbers<[1], [0], [0], [1], [0, 0, 1, 1], [], []>} : vector<128x32xf32>, vector<32x128xf32>, vector<128x128xf32> -> vector<128x128xf32>
    %54 = arith.addf %33, %53 : vector<128x128xf32>
    %55 = vector.extract_strided_slice %9 {offsets = [0, 64], sizes = [128, 32], strides = [1, 1]} : vector<128x128xf32> to vector<128x32xf32>
    %56 = vector.shape_cast %55 : vector<128x32xf32> to vector<2x64x32xf32>
    %57 = vector.extract_strided_slice %10 {offsets = [0, 64], sizes = [128, 32], strides = [1, 1]} : vector<128x128xf32> to vector<128x32xf32>
    %58 = vector.shape_cast %57 : vector<128x32xf32> to vector<2x64x32xf32>
    %59 = vector.extract_strided_slice %11 {offsets = [0, 64], sizes = [128, 32], strides = [1, 1]} : vector<128x128xf32> to vector<128x32xf32>
    %60 = vector.shape_cast %59 : vector<128x32xf32> to vector<2x64x32xf32>
    "tpu.trace_start"() <{level = 10 : i32, message = "bqd,bkd->bqk"}> : () -> ()
    %cst_26 = arith.constant dense<0.000000e+00> : vector<2x64x64xf32>
    %61 = tpu.matmul %56, %58, %cst_26 {dimension_numbers = #tpu.dot_dimension_numbers<[2], [2], [1], [1], [0, 0, 0, 1, 1, 1], [0], [0]>} : vector<2x64x32xf32>, vector<2x64x32xf32>, vector<2x64x64xf32> -> vector<2x64x64xf32>
    "tpu.trace_stop"() : () -> ()
    %cst_27 = arith.constant dense<0xFF800000> : vector<2x64xf32>
    %62 = vector.multi_reduction <maximumf>, %61, %cst_27 [2] : vector<2x64x64xf32> to vector<2x64xf32>
    %63 = vector.shape_cast %62 : vector<2x64xf32> to vector<2x64x1xf32>
    %64 = vector.broadcast %63 : vector<2x64x1xf32> to vector<2x64x64xf32>
    %65 = arith.subf %61, %64 : vector<2x64x64xf32>
    %66 = math.exp %65 : vector<2x64x64xf32>
    %cst_28 = arith.constant dense<0.000000e+00> : vector<2x64xf32>
    %67 = vector.multi_reduction <add>, %66, %cst_28 [2] : vector<2x64x64xf32> to vector<2x64xf32>
    %68 = vector.shape_cast %67 : vector<2x64xf32> to vector<2x64x1xf32>
    %69 = vector.broadcast %68 : vector<2x64x1xf32> to vector<2x64x64xf32>
    %70 = arith.divf %66, %69 : vector<2x64x64xf32>
    "tpu.trace_start"() <{level = 10 : i32, message = "bqk,bkd->bqd"}> : () -> ()
    %cst_29 = arith.constant dense<0.000000e+00> : vector<2x64x32xf32>
    %71 = tpu.matmul %70, %60, %cst_29 {dimension_numbers = #tpu.dot_dimension_numbers<[2], [1], [1], [2], [0, 0, 0, 1, 1, 2], [0], [0]>} : vector<2x64x64xf32>, vector<2x64x32xf32>, vector<2x64x32xf32> -> vector<2x64x32xf32>
    "tpu.trace_stop"() : () -> ()
    %72 = vector.shape_cast %71 : vector<2x64x32xf32> to vector<128x32xf32>
    %73 = vector.extract_strided_slice %5 {offsets = [64, 0], sizes = [32, 128], strides = [1, 1]} : vector<128x128xf32> to vector<32x128xf32>
    %cst_30 = arith.constant dense<0.000000e+00> : vector<128x128xf32>
    %74 = tpu.matmul %72, %73, %cst_30 {dimension_numbers = #tpu.dot_dimension_numbers<[1], [0], [0], [1], [0, 0, 1, 1], [], []>} : vector<128x32xf32>, vector<32x128xf32>, vector<128x128xf32> -> vector<128x128xf32>
    %75 = arith.addf %54, %74 : vector<128x128xf32>
    %76 = vector.extract_strided_slice %9 {offsets = [0, 96], sizes = [128, 32], strides = [1, 1]} : vector<128x128xf32> to vector<128x32xf32>
    %77 = vector.shape_cast %76 : vector<128x32xf32> to vector<2x64x32xf32>
    %78 = vector.extract_strided_slice %10 {offsets = [0, 96], sizes = [128, 32], strides = [1, 1]} : vector<128x128xf32> to vector<128x32xf32>
    %79 = vector.shape_cast %78 : vector<128x32xf32> to vector<2x64x32xf32>
    %80 = vector.extract_strided_slice %11 {offsets = [0, 96], sizes = [128, 32], strides = [1, 1]} : vector<128x128xf32> to vector<128x32xf32>
    %81 = vector.shape_cast %80 : vector<128x32xf32> to vector<2x64x32xf32>
    "tpu.trace_start"() <{level = 10 : i32, message = "bqd,bkd->bqk"}> : () -> ()
    %cst_31 = arith.constant dense<0.000000e+00> : vector<2x64x64xf32>
    %82 = tpu.matmul %77, %79, %cst_31 {dimension_numbers = #tpu.dot_dimension_numbers<[2], [2], [1], [1], [0, 0, 0, 1, 1, 1], [0], [0]>} : vector<2x64x32xf32>, vector<2x64x32xf32>, vector<2x64x64xf32> -> vector<2x64x64xf32>
    "tpu.trace_stop"() : () -> ()
    %cst_32 = arith.constant dense<0xFF800000> : vector<2x64xf32>
    %83 = vector.multi_reduction <maximumf>, %82, %cst_32 [2] : vector<2x64x64xf32> to vector<2x64xf32>
    %84 = vector.shape_cast %83 : vector<2x64xf32> to vector<2x64x1xf32>
    %85 = vector.broadcast %84 : vector<2x64x1xf32> to vector<2x64x64xf32>
    %86 = arith.subf %82, %85 : vector<2x64x64xf32>
    %87 = math.exp %86 : vector<2x64x64xf32>
    %cst_33 = arith.constant dense<0.000000e+00> : vector<2x64xf32>
    %88 = vector.multi_reduction <add>, %87, %cst_33 [2] : vector<2x64x64xf32> to vector<2x64xf32>
    %89 = vector.shape_cast %88 : vector<2x64xf32> to vector<2x64x1xf32>
    %90 = vector.broadcast %89 : vector<2x64x1xf32> to vector<2x64x64xf32>
    %91 = arith.divf %87, %90 : vector<2x64x64xf32>
    "tpu.trace_start"() <{level = 10 : i32, message = "bqk,bkd->bqd"}> : () -> ()
    %cst_34 = arith.constant dense<0.000000e+00> : vector<2x64x32xf32>
    %92 = tpu.matmul %91, %81, %cst_34 {dimension_numbers = #tpu.dot_dimension_numbers<[2], [1], [1], [2], [0, 0, 0, 1, 1, 2], [0], [0]>} : vector<2x64x64xf32>, vector<2x64x32xf32>, vector<2x64x32xf32> -> vector<2x64x32xf32>
    "tpu.trace_stop"() : () -> ()
    %93 = vector.shape_cast %92 : vector<2x64x32xf32> to vector<128x32xf32>
    %94 = vector.extract_strided_slice %5 {offsets = [96, 0], sizes = [32, 128], strides = [1, 1]} : vector<128x128xf32> to vector<32x128xf32>
    %cst_35 = arith.constant dense<0.000000e+00> : vector<128x128xf32>
    %95 = tpu.matmul %93, %94, %cst_35 {dimension_numbers = #tpu.dot_dimension_numbers<[1], [0], [0], [1], [0, 0, 1, 1], [], []>} : vector<128x32xf32>, vector<32x128xf32>, vector<128x128xf32> -> vector<128x128xf32>
    %96 = arith.addf %75, %95 : vector<128x128xf32>
    %97 = vector.broadcast %6 : vector<1x128xf32> to vector<128x128xf32>
    %98 = arith.addf %96, %97 : vector<128x128xf32>
    %99 = vector.shape_cast %98 : vector<128x128xf32> to vector<2x64x128xf32>
    %c0_36 = arith.constant 0 : index
    %c0_37 = arith.constant 0 : index
    %c0_38 = arith.constant 0 : index
    %100 = vector.load %arg7[%c0_36, %c0_37, %c0_38] : memref<2x64x128xf32, #tpu.memory_space<vmem>>, vector<2x64x128xf32>
    tpu.vector_store %arg7[%c0_36, %c0_37, %c0_38], %99 {strides = array<i32>} : memref<2x64x128xf32, #tpu.memory_space<vmem>>, vector<2x64x128xf32>,
    return
  }
  func.func @transform_0(%arg0: i32) -> (i32, i32, i32) {
    %c0_i32 = arith.constant 0 : i32
    %c0_i32_0 = arith.constant 0 : i32
    %c0_i32_1 = arith.constant 0 : i32
    return %arg0, %c0_i32, %c0_i32_0 : i32, i32, i32
  }
  func.func @transform_1(%arg0: i32) -> (i32, i32) {
    %c0_i32 = arith.constant 0 : i32
    %c0_i32_0 = arith.constant 0 : i32
    %c0_i32_1 = arith.constant 0 : i32
    return %c0_i32, %c0_i32_0 : i32, i32
  }
  func.func @transform_2(%arg0: i32) -> (i32, i32) {
    %c0_i32 = arith.constant 0 : i32
    %c0_i32_0 = arith.constant 0 : i32
    %c0_i32_1 = arith.constant 0 : i32
    return %c0_i32, %c0_i32_0 : i32, i32
  }
  func.func @transform_3(%arg0: i32) -> (i32, i32) {
    %c0_i32 = arith.constant 0 : i32
    %c0_i32_0 = arith.constant 0 : i32
    %c0_i32_1 = arith.constant 0 : i32
    return %c0_i32, %c0_i32_0 : i32, i32
  }
  func.func @transform_4(%arg0: i32) -> (i32, i32) {
    %c0_i32 = arith.constant 0 : i32
    %c0_i32_0 = arith.constant 0 : i32
    %c0_i32_1 = arith.constant 0 : i32
    return %c0_i32, %c0_i32_0 : i32, i32
  }
  func.func @transform_5(%arg0: i32) -> (i32, i32) {
    %c0_i32 = arith.constant 0 : i32
    %c0_i32_0 = arith.constant 0 : i32
    %c0_i32_1 = arith.constant 0 : i32
    return %c0_i32, %c0_i32_0 : i32, i32
  }
  func.func @transform_6(%arg0: i32) -> (i32, i32, i32) {
    %c0_i32 = arith.constant 0 : i32
    %c0_i32_0 = arith.constant 0 : i32
    %c0_i32_1 = arith.constant 0 : i32
    return %arg0, %c0_i32, %c0_i32_0 : i32, i32, i32
  }
}

</mosaic_0001>

<llo_original>
// kernel: tpu_custom_call.1
$region0: #{tpu_custom_call.1}
  #allocation0 [shape = 'u32[]', space=smem, size = 0x4, offset = 0x4, fixed_abs, tag = 'smem constant byte address 0x4 - core index']
  #allocation1 [shape = 'u32[144,128]{1,0:T(1,128)}', space=vmem, size = 0x12000, scoped, tag = 'internal scratch']
  %s0 = inlined_call_operand.hbm [shape: f32[2,64,128], index: 0, kind: input, shape index: {}]
  %s1 = inlined_call_operand.hbm [shape: f32[128,128], index: 1, kind: input, shape index: {}]
  %s2 = inlined_call_operand.hbm [shape: f32[128,128], index: 2, kind: input, shape index: {}]
  %s3 = inlined_call_operand.hbm [shape: f32[128,128], index: 3, kind: input, shape index: {}]
  %s4 = inlined_call_operand.hbm [shape: f32[128,128], index: 4, kind: input, shape index: {}]
  %s5 = inlined_call_operand.vmem [shape: f32[1,128], index: 5, kind: input, shape index: {}]
  %s6 = inlined_call_operand.hbm [shape: f32[2,64,128], index: 6, kind: output, shape index: {}]
  %s7 = sld [smem:[#allocation0]]
  $region54: #{tpu_custom_call.1} parent=0
    _
  %s9 = ssub.s32 1, %s7
  %s10 = scalar_select 0, %s9, %s7
  $region1: #{tpu_custom_call.1} parent=0
    #allocation2 [shape = 'u8[65536]{0}', space=vmem, size = 0x10000, scoped, tag = 'input window, operand 0, single buffered']
    #allocation3 [shape = 's32[1]{0}', space=sflag, size = 0x4, scoped, tag = 'scoped memory for tpu_custom_call.1']
    #allocation4 [shape = 's32[1]{0}', space=sflag, size = 0x4, scoped, tag = 'scoped memory for tpu_custom_call.1']
    #allocation5 [shape = 'u8[65536]{0}', space=vmem, size = 0x10000, scoped, tag = 'input window, operand 1, single buffered']
    #allocation6 [shape = 's32[1]{0}', space=sflag, size = 0x4, scoped, tag = 'scoped memory for tpu_custom_call.1']
    #allocation7 [shape = 'u8[65536]{0}', space=vmem, size = 0x10000, scoped, tag = 'input window, operand 2, single buffered']
    #allocation8 [shape = 'u8[65536]{0}', space=vmem, size = 0x10000, scoped, tag = 'input window, operand 3, single buffered']
    #allocation9 [shape = 's32[1]{0}', space=sflag, size = 0x4, scoped, tag = 'scoped memory for tpu_custom_call.1']
    #allocation10 [shape = 'u8[65536]{0}', space=vmem, size = 0x10000, scoped, tag = 'input window, operand 4, single buffered']
    #allocation11 [shape = 'u8[65536]{0}', space=vmem, size = 0x10000, scoped, tag = 'output window, operand 0, single buffered']
    %11 = vsyncpa [#allocation3], 0
    %12 = vsyncpa [#allocation6], 0
    %13 = vsyncpa [#allocation9], 0
    %14 = vsyncpa [#allocation4], 0
    // Predicated region
    $region2: #{tpu_custom_call.1} parent=1 // pred_check
      _
    $region3: #{tpu_custom_call.1} parent=1 // pred_check_branch
      %16 = sbr.rel (0) target = $region5
    $region4: #{tpu_custom_call.1} parent=1 // pred_region
      %s18 = ssub.s32 2048, 2048
      %19 = vsyncadd [#allocation3], %s18
      %s20 = sshll.u32 [#allocation2], 4
      %s21 = int_to_ptr.vmem [resolvable:$true] %s20
      %26 = dma.hbm_to_vmem [thread:$0]  %s0, 2048, %s21, [#allocation3], 128, 128, 8
    $region5: #{tpu_custom_call.1} parent=1 // pred_fallthru
      _
    // Predicated region
    $region6: #{tpu_custom_call.1} parent=1 // pred_check
      _
    $region7: #{tpu_custom_call.1} parent=1 // pred_check_branch
      %28 = sbr.rel (0) target = $region9
    $region8: #{tpu_custom_call.1} parent=1 // pred_region
      %s30 = ssub.s32 2048, 2048
      %31 = vsyncadd [#allocation6], %s30
      %s32 = sshll.u32 [#allocation5], 4
      %s33 = int_to_ptr.vmem [resolvable:$true] %s32
      %38 = dma.hbm_to_vmem [thread:$0]  %s1, 2048, %s33, [#allocation6], 128, 128, 8
    $region9: #{tpu_custom_call.1} parent=1 // pred_fallthru
      _
    // Predicated region
    $region10: #{tpu_custom_call.1} parent=1 // pred_check
      _
    $region11: #{tpu_custom_call.1} parent=1 // pred_check_branch
      %40 = sbr.rel (0) target = $region13
    $region12: #{tpu_custom_call.1} parent=1 // pred_region
      %s42 = ssub.s32 2048, 2048
      %43 = vsyncadd [#allocation6], %s42
      %s44 = sshll.u32 [#allocation7], 4
      %s45 = int_to_ptr.vmem [resolvable:$true] %s44
      %50 = dma.hbm_to_vmem [thread:$0]  %s2, 2048, %s45, [#allocation6], 128, 128, 8
    $region13: #{tpu_custom_call.1} parent=1 // pred_fallthru
      _
    // Predicated region
    $region14: #{tpu_custom_call.1} parent=1 // pred_check
      _
    $region15: #{tpu_custom_call.1} parent=1 // pred_check_branch
      %52 = sbr.rel (0) target = $region17
    $region16: #{tpu_custom_call.1} parent=1 // pred_region
      %s54 = ssub.s32 2048, 2048
      %55 = vsyncadd [#allocation9], %s54
      %s56 = sshll.u32 [#allocation8], 4
      %s57 = int_to_ptr.vmem [resolvable:$true] %s56
      %62 = dma.hbm_to_vmem [thread:$0]  %s3, 2048, %s57, [#allocation9], 128, 128, 8
    $region17: #{tpu_custom_call.1} parent=1 // pred_fallthru
      _
    // Predicated region
    $region18: #{tpu_custom_call.1} parent=1 // pred_check
      _
    $region19: #{tpu_custom_call.1} parent=1 // pred_check_branch
      %64 = sbr.rel (0) target = $region21
    $region20: #{tpu_custom_call.1} parent=1 // pred_region
      %s66 = ssub.s32 2048, 2048
      %67 = vsyncadd [#allocation9], %s66
      %s68 = sshll.u32 [#allocation10], 4
      %s69 = int_to_ptr.vmem [resolvable:$true] %s68
      %74 = dma.hbm_to_vmem [thread:$0]  %s4, 2048, %s69, [#allocation9], 128, 128, 8
    $region21: #{tpu_custom_call.1} parent=1 // pred_fallthru
      _
    // Predicated region
    $region22: #{tpu_custom_call.1} parent=1 // pred_check
      _
    $region23: #{tpu_custom_call.1} parent=1 // pred_check_branch
      %76 = sbr.rel (0) target = $region25
    $region24: #{tpu_custom_call.1} parent=1 // pred_region
      _
    $region25: #{tpu_custom_call.1} parent=1 // pred_fallthru
      _
    // Predicated region
    $region26: #{tpu_custom_call.1} parent=1 // pred_check
      _
    $region27: #{tpu_custom_call.1} parent=1 // pred_check_branch
      %78 = sbr.rel (0) target = $region29
    $region28: #{tpu_custom_call.1} parent=1 // pred_region
      %79 = dma.done [#allocation3], 2048
    $region29: #{tpu_custom_call.1} parent=1 // pred_fallthru
      _
    // Predicated region
    $region30: #{tpu_custom_call.1} parent=1 // pred_check
      _
    $region31: #{tpu_custom_call.1} parent=1 // pred_check_branch
      %81 = sbr.rel (0) target = $region33
    $region32: #{tpu_custom_call.1} parent=1 // pred_region
      %82 = dma.done [#allocation6], 2048
    $region33: #{tpu_custom_call.1} parent=1 // pred_fallthru
      _
    // Predicated region
    $region34: #{tpu_custom_call.1} parent=1 // pred_check
      _
    $region35: #{tpu_custom_call.1} parent=1 // pred_check_branch
      %84 = sbr.rel (0) target = $region37
    $region36: #{tpu_custom_call.1} parent=1 // pred_region
      %85 = dma.done [#allocation6], 2048
    $region37: #{tpu_custom_call.1} parent=1 // pred_fallthru
      _
    // Predicated region
    $region38: #{tpu_custom_call.1} parent=1 // pred_check
      _
    $region39: #{tpu_custom_call.1} parent=1 // pred_check_branch
      %87 = sbr.rel (0) target = $region41
    $region40: #{tpu_custom_call.1} parent=1 // pred_region
      %88 = dma.done [#allocation9], 2048
    $region41: #{tpu_custom_call.1} parent=1 // pred_fallthru
      _
    // Predicated region
    $region42: #{tpu_custom_call.1} parent=1 // pred_check
      _
    $region43: #{tpu_custom_call.1} parent=1 // pred_check_branch
      %90 = sbr.rel (0) target = $region45
    $region44: #{tpu_custom_call.1} parent=1 // pred_region
      %91 = dma.done [#allocation9], 2048
    $region45: #{tpu_custom_call.1} parent=1 // pred_fallthru
      _
    %v92 = vld [vmem:[#allocation2] sm:$0xff]
    %v93 = vld [vmem:[#allocation2 + $0x8] sm:$0xff]
    %v94 = vld [vmem:[#allocation2 + $0x10] sm:$0xff]
    %v95 = vld [vmem:[#allocation2 + $0x18] sm:$0xff]
    %v96 = vld [vmem:[#allocation2 + $0x20] sm:$0xff]
    %v97 = vld [vmem:[#allocation2 + $0x28] sm:$0xff]
    %v98 = vld [vmem:[#allocation2 + $0x30] sm:$0xff]
    %v99 = vld [vmem:[#allocation2 + $0x38] sm:$0xff]
    %v100 = vld [vmem:[#allocation2 + $0x40] sm:$0xff]
    %v101 = vld [vmem:[#allocation2 + $0x48] sm:$0xff]
    %v102 = vld [vmem:[#allocation2 + $0x50] sm:$0xff]
    %v103 = vld [vmem:[#allocation2 + $0x58] sm:$0xff]
    %v104 = vld [vmem:[#allocation2 + $0x60] sm:$0xff]
    %v105 = vld [vmem:[#allocation2 + $0x68] sm:$0xff]
    %v106 = vld [vmem:[#allocation2 + $0x70] sm:$0xff]
    %v107 = vld [vmem:[#allocation2 + $0x78] sm:$0xff]
    %v108 = vld [vmem:[#allocation5] sm:$0xff]
    %v109 = vld [vmem:[#allocation5 + $0x8] sm:$0xff]
    %v110 = vld [vmem:[#allocation5 + $0x10] sm:$0xff]
    %v111 = vld [vmem:[#allocation5 + $0x18] sm:$0xff]
    %v112 = vld [vmem:[#allocation5 + $0x20] sm:$0xff]
    %v113 = vld [vmem:[#allocation5 + $0x28] sm:$0xff]
    %v114 = vld [vmem:[#allocation5 + $0x30] sm:$0xff]
    %v115 = vld [vmem:[#allocation5 + $0x38] sm:$0xff]
    %v116 = vld [vmem:[#allocation5 + $0x40] sm:$0xff]
    %v117 = vld [vmem:[#allocation5 + $0x48] sm:$0xff]
    %v118 = vld [vmem:[#allocation5 + $0x50] sm:$0xff]
    %v119 = vld [vmem:[#allocation5 + $0x58] sm:$0xff]
    %v120 = vld [vmem:[#allocation5 + $0x60] sm:$0xff]
    %v121 = vld [vmem:[#allocation5 + $0x68] sm:$0xff]
    %v122 = vld [vmem:[#allocation5 + $0x70] sm:$0xff]
    %v123 = vld [vmem:[#allocation5 + $0x78] sm:$0xff]
    %v124 = vld [vmem:[#allocation7] sm:$0xff]
    %v125 = vld [vmem:[#allocation7 + $0x8] sm:$0xff]
    %v126 = vld [vmem:[#allocation7 + $0x10] sm:$0xff]
    %v127 = vld [vmem:[#allocation7 + $0x18] sm:$0xff]
    %v128 = vld [vmem:[#allocation7 + $0x20] sm:$0xff]
    %v129 = vld [vmem:[#allocation7 + $0x28] sm:$0xff]
    %v130 = vld [vmem:[#allocation7 + $0x30] sm:$0xff]
    %v131 = vld [vmem:[#allocation7 + $0x38] sm:$0xff]
    %v132 = vld [vmem:[#allocation7 + $0x40] sm:$0xff]
    %v133 = vld [vmem:[#allocation7 + $0x48] sm:$0xff]
    %v134 = vld [vmem:[#allocation7 + $0x50] sm:$0xff]
    %v135 = vld [vmem:[#allocation7 + $0x58] sm:$0xff]
    %v136 = vld [vmem:[#allocation7 + $0x60] sm:$0xff]
    %v137 = vld [vmem:[#allocation7 + $0x68] sm:$0xff]
    %v138 = vld [vmem:[#allocation7 + $0x70] sm:$0xff]
    %v139 = vld [vmem:[#allocation7 + $0x78] sm:$0xff]
    %v140 = vld [vmem:[#allocation8] sm:$0xff]
    %v141 = vld [vmem:[#allocation8 + $0x8] sm:$0xff]
    %v142 = vld [vmem:[#allocation8 + $0x10] sm:$0xff]
    %v143 = vld [vmem:[#allocation8 + $0x18] sm:$0xff]
    %v144 = vld [vmem:[#allocation8 + $0x20] sm:$0xff]
    %v145 = vld [vmem:[#allocation8 + $0x28] sm:$0xff]
    %v146 = vld [vmem:[#allocation8 + $0x30] sm:$0xff]
    %v147 = vld [vmem:[#allocation8 + $0x38] sm:$0xff]
    %v148 = vld [vmem:[#allocation8 + $0x40] sm:$0xff]
    %v149 = vld [vmem:[#allocation8 + $0x48] sm:$0xff]
    %v150 = vld [vmem:[#allocation8 + $0x50] sm:$0xff]
    %v151 = vld [vmem:[#allocation8 + $0x58] sm:$0xff]
    %v152 = vld [vmem:[#allocation8 + $0x60] sm:$0xff]
    %v153 = vld [vmem:[#allocation8 + $0x68] sm:$0xff]
    %v154 = vld [vmem:[#allocation8 + $0x70] sm:$0xff]
    %v155 = vld [vmem:[#allocation8 + $0x78] sm:$0xff]
    %v156 = vld [vmem:[#allocation10] sm:$0xff]
    %v157 = vld [vmem:[#allocation10 + $0x8] sm:$0xff]
    %v158 = vld [vmem:[#allocation10 + $0x10] sm:$0xff]
    %v159 = vld [vmem:[#allocation10 + $0x18] sm:$0xff]
    %v160 = vld [vmem:[#allocation10 + $0x20] sm:$0xff]
    %v161 = vld [vmem:[#allocation10 + $0x28] sm:$0xff]
    %v162 = vld [vmem:[#allocation10 + $0x30] sm:$0xff]
    %v163 = vld [vmem:[#allocation10 + $0x38] sm:$0xff]
    %v164 = vld [vmem:[#allocation10 + $0x40] sm:$0xff]
    %v165 = vld [vmem:[#allocation10 + $0x48] sm:$0xff]
    %v166 = vld [vmem:[#allocation10 + $0x50] sm:$0xff]
    %v167 = vld [vmem:[#allocation10 + $0x58] sm:$0xff]
    %v168 = vld [vmem:[#allocation10 + $0x60] sm:$0xff]
    %v169 = vld [vmem:[#allocation10 + $0x68] sm:$0xff]
    %v170 = vld [vmem:[#allocation10 + $0x70] sm:$0xff]
    %v171 = vld [vmem:[#allocation10 + $0x78] sm:$0xff]
    %v172 = vld [vmem:[%s5] sm:$0x1]
    %173 = vmatprep.subr.mxu0 0.0
    %174 = vmatpush1.msra.mxu0 %v108
    %175 = vmatprep.subr.mxu0 0.0
    %176 = vmatpush1.msra.mxu0 %v109
    %177 = vmatprep.subr.mxu0 0.0
    %178 = vmatpush1.msra.mxu0 %v110
    %179 = vmatprep.subr.mxu0 0.0
    %180 = vmatpush1.msra.mxu0 %v111
    %181 = vmatprep.subr.mxu0 0.0
    %182 = vmatpush1.msra.mxu0 %v112
    %183 = vmatprep.subr.mxu0 0.0
    %184 = vmatpush1.msra.mxu0 %v113
    %185 = vmatprep.subr.mxu0 0.0
    %186 = vmatpush1.msra.mxu0 %v114
    %187 = vmatprep.subr.mxu0 0.0
    %188 = vmatpush1.msra.mxu0 %v115
    %189 = vmatprep.subr.mxu0 0.0
    %190 = vmatpush1.msra.mxu0 %v116
    %191 = vmatprep.subr.mxu0 0.0
    %192 = vmatpush1.msra.mxu0 %v117
    %193 = vmatprep.subr.mxu0 0.0
    %194 = vmatpush1.msra.mxu0 %v118
    %195 = vmatprep.subr.mxu0 0.0
    %196 = vmatpush1.msra.mxu0 %v119
    %197 = vmatprep.subr.mxu0 0.0
    %198 = vmatpush1.msra.mxu0 %v120
    %199 = vmatprep.subr.mxu0 0.0
    %200 = vmatpush1.msra.mxu0 %v121
    %201 = vmatprep.subr.mxu0 0.0
    %202 = vmatpush1.msra.mxu0 %v122
    %203 = vmatprep.subr.mxu0 0.0
    %204 = vmatpush1.msra.mxu0 %v123
    %205 = vmatprep.subr.mxu0 0.0
    %206 = vmatpush1.msra.mxu0 0.0
    %207 = vmatprep.subr.mxu0 0.0
    %208 = vmatpush1.msra.mxu0 0.0
    %209 = vmatprep.subr.mxu0 0.0
    %210 = vmatpush1.msra.mxu0 0.0
    %211 = vmatprep.subr.mxu0 0.0
    %212 = vmatpush1.msra.mxu0 0.0
    %213 = vmatprep.subr.mxu0 0.0
    %214 = vmatpush1.msra.mxu0 0.0
    %215 = vmatprep.subr.mxu0 0.0
    %216 = vmatpush1.msra.mxu0 0.0
    %217 = vmatprep.subr.mxu0 0.0
    %218 = vmatpush1.msra.mxu0 0.0
    %219 = vmatprep.subr.mxu0 0.0
    %220 = vmatpush1.msra.mxu0 0.0
    %221 = vmatprep.subr.mxu0 0.0
    %222 = vmatpush1.msra.mxu0 0.0
    %223 = vmatprep.subr.mxu0 0.0
    %224 = vmatpush1.msra.mxu0 0.0
    %225 = vmatprep.subr.mxu0 0.0
    %226 = vmatpush1.msra.mxu0 0.0
    %227 = vmatprep.subr.mxu0 0.0
    %228 = vmatpush1.msra.mxu0 0.0
    %229 = vmatprep.subr.mxu0 0.0
    %230 = vmatpush1.msra.mxu0 0.0
    %231 = vmatprep.subr.mxu0 0.0
    %232 = vmatpush1.msra.mxu0 0.0
    %233 = vmatprep.subr.mxu0 0.0
    %234 = vmatpush1.msra.mxu0 0.0
    %235 = vmatprep.subr.mxu0 0.0
    %236 = vmatpush1.msra.mxu0 0.0
    %237 = vmatprep.mubr.f32.mxu0 0.0
    %238 = vmatmul.mubr.f32.gmra.mrb[0].mxu0 %v92
    %v239 = vpop.f32.mrb[0].mxu0
    %v240 = vadd.f32 0.0, %v239
    %v241 = vpop.f32.mrb[0].mxu0
    %242 = vmatprep.mubr.f32.mxu0 0.0
    %243 = vmatmul.mubr.f32.gmra.mrb[0].mxu0 %v93
    %v244 = vpop.f32.mrb[0].mxu0
    %v245 = vadd.f32 0.0, %v244
    %v246 = vpop.f32.mrb[0].mxu0
    %247 = vmatprep.mubr.f32.mxu0 0.0
    %248 = vmatmul.mubr.f32.gmra.mrb[0].mxu0 %v94
    %v249 = vpop.f32.mrb[0].mxu0
    %v250 = vadd.f32 0.0, %v249
    %v251 = vpop.f32.mrb[0].mxu0
    %252 = vmatprep.mubr.f32.mxu0 0.0
    %253 = vmatmul.mubr.f32.gmra.mrb[0].mxu0 %v95
    %v254 = vpop.f32.mrb[0].mxu0
    %v255 = vadd.f32 0.0, %v254
    %v256 = vpop.f32.mrb[0].mxu0
    %257 = vmatprep.mubr.f32.mxu0 0.0
    %258 = vmatmul.mubr.f32.gmra.mrb[0].mxu0 %v96
    %v259 = vpop.f32.mrb[0].mxu0
    %v260 = vadd.f32 0.0, %v259
    %v261 = vpop.f32.mrb[0].mxu0
    %262 = vmatprep.mubr.f32.mxu0 0.0
    %263 = vmatmul.mubr.f32.gmra.mrb[0].mxu0 %v97
    %v264 = vpop.f32.mrb[0].mxu0
    %v265 = vadd.f32 0.0, %v264
    %v266 = vpop.f32.mrb[0].mxu0
    %267 = vmatprep.mubr.f32.mxu0 0.0
    %268 = vmatmul.mubr.f32.gmra.mrb[0].mxu0 %v98
    %v269 = vpop.f32.mrb[0].mxu0
    %v270 = vadd.f32 0.0, %v269
    %v271 = vpop.f32.mrb[0].mxu0
    %272 = vmatprep.mubr.f32.mxu0 0.0
    %273 = vmatmul.mubr.f32.gmra.mrb[0].mxu0 %v99
    %v274 = vpop.f32.mrb[0].mxu0
    %v275 = vadd.f32 0.0, %v274
    %v276 = vpop.f32.mrb[0].mxu0
    %277 = vmatprep.mubr.f32.mxu0 0.0
    %278 = vmatmul.mubr.f32.gmra.mrb[0].mxu0 %v100
    %v279 = vpop.f32.mrb[0].mxu0
    %v280 = vadd.f32 0.0, %v279
    %v281 = vpop.f32.mrb[0].mxu0
    %282 = vmatprep.mubr.f32.mxu0 0.0
    %283 = vmatmul.mubr.f32.gmra.mrb[0].mxu0 %v101
    %v284 = vpop.f32.mrb[0].mxu0
    %v285 = vadd.f32 0.0, %v284
    %v286 = vpop.f32.mrb[0].mxu0
    %287 = vmatprep.mubr.f32.mxu0 0.0
    %288 = vmatmul.mubr.f32.gmra.mrb[0].mxu0 %v102
    %v289 = vpop.f32.mrb[0].mxu0
    %v290 = vadd.f32 0.0, %v289
    %v291 = vpop.f32.mrb[0].mxu0
    %292 = vmatprep.mubr.f32.mxu0 0.0
    %293 = vmatmul.mubr.f32.gmra.mrb[0].mxu0 %v103
    %v294 = vpop.f32.mrb[0].mxu0
    %v295 = vadd.f32 0.0, %v294
    %v296 = vpop.f32.mrb[0].mxu0
    %297 = vmatprep.mubr.f32.mxu0 0.0
    %298 = vmatmul.mubr.f32.gmra.mrb[0].mxu0 %v104
    %v299 = vpop.f32.mrb[0].mxu0
    %v300 = vadd.f32 0.0, %v299
    %v301 = vpop.f32.mrb[0].mxu0
    %302 = vmatprep.mubr.f32.mxu0 0.0
    %303 = vmatmul.mubr.f32.gmra.mrb[0].mxu0 %v105
    %v304 = vpop.f32.mrb[0].mxu0
    %v305 = vadd.f32 0.0, %v304
    %v306 = vpop.f32.mrb[0].mxu0
    %307 = vmatprep.mubr.f32.mxu0 0.0
    %308 = vmatmul.mubr.f32.gmra.mrb[0].mxu0 %v106
    %v309 = vpop.f32.mrb[0].mxu0
    %v310 = vadd.f32 0.0, %v309
    %v311 = vpop.f32.mrb[0].mxu0
    %312 = vmatprep.mubr.f32.mxu0 0.0
    %313 = vmatmul.mubr.f32.gmra.mrb[0].mxu0 %v107
    %v314 = vpop.f32.mrb[0].mxu0
    %v315 = vadd.f32 0.0, %v314
    %v316 = vpop.f32.mrb[0].mxu0
    %317 = vdwg.mxu0
    %v318 = vmul.f32 %v240, 0.17677669
    %v319 = vmul.f32 %v245, 0.17677669
    %v320 = vmul.f32 %v250, 0.17677669
    %v321 = vmul.f32 %v255, 0.17677669
    %v322 = vmul.f32 %v260, 0.17677669
    %v323 = vmul.f32 %v265, 0.17677669
    %v324 = vmul.f32 %v270, 0.17677669
    %v325 = vmul.f32 %v275, 0.17677669
    %v326 = vmul.f32 %v280, 0.17677669
    %v327 = vmul.f32 %v285, 0.17677669
    %v328 = vmul.f32 %v290, 0.17677669
    %v329 = vmul.f32 %v295, 0.17677669
    %v330 = vmul.f32 %v300, 0.17677669
    %v331 = vmul.f32 %v305, 0.17677669
    %v332 = vmul.f32 %v310, 0.17677669
    %v333 = vmul.f32 %v315, 0.17677669
    %334 = vmatprep.subr.mxu0 0.0
    %335 = vmatpush1.msra.mxu0 %v124
    %336 = vmatprep.subr.mxu0 0.0
    %337 = vmatpush1.msra.mxu0 %v125
    %338 = vmatprep.subr.mxu0 0.0
    %339 = vmatpush1.msra.mxu0 %v126
    %340 = vmatprep.subr.mxu0 0.0
    %341 = vmatpush1.msra.mxu0 %v127
    %342 = vmatprep.subr.mxu0 0.0
    %343 = vmatpush1.msra.mxu0 %v128
    %344 = vmatprep.subr.mxu0 0.0
    %345 = vmatpush1.msra.mxu0 %v129
    %346 = vmatprep.subr.mxu0 0.0
    %347 = vmatpush1.msra.mxu0 %v130
    %348 = vmatprep.subr.mxu0 0.0
    %349 = vmatpush1.msra.mxu0 %v131
    %350 = vmatprep.subr.mxu0 0.0
    %351 = vmatpush1.msra.mxu0 %v132
    %352 = vmatprep.subr.mxu0 0.0
    %353 = vmatpush1.msra.mxu0 %v133
    %354 = vmatprep.subr.mxu0 0.0
    %355 = vmatpush1.msra.mxu0 %v134
    %356 = vmatprep.subr.mxu0 0.0
    %357 = vmatpush1.msra.mxu0 %v135
    %358 = vmatprep.subr.mxu0 0.0
    %359 = vmatpush1.msra.mxu0 %v136
    %360 = vmatprep.subr.mxu0 0.0
    %361 = vmatpush1.msra.mxu0 %v137
    %362 = vmatprep.subr.mxu0 0.0
    %363 = vmatpush1.msra.mxu0 %v138
    %364 = vmatprep.subr.mxu0 0.0
    %365 = vmatpush1.msra.mxu0 %v139
    %366 = vmatprep.subr.mxu0 0.0
    %367 = vmatpush1.msra.mxu0 0.0
    %368 = vmatprep.subr.mxu0 0.0
    %369 = vmatpush1.msra.mxu0 0.0
    %370 = vmatprep.subr.mxu0 0.0
    %371 = vmatpush1.msra.mxu0 0.0
    %372 = vmatprep.subr.mxu0 0.0
    %373 = vmatpush1.msra.mxu0 0.0
    %374 = vmatprep.subr.mxu0 0.0
    %375 = vmatpush1.msra.mxu0 0.0
    %376 = vmatprep.subr.mxu0 0.0
    %377 = vmatpush1.msra.mxu0 0.0
    %378 = vmatprep.subr.mxu0 0.0
    %379 = vmatpush1.msra.mxu0 0.0
    %380 = vmatprep.subr.mxu0 0.0
    %381 = vmatpush1.msra.mxu0 0.0
    %382 = vmatprep.subr.mxu0 0.0
    %383 = vmatpush1.msra.mxu0 0.0
    %384 = vmatprep.subr.mxu0 0.0
    %385 = vmatpush1.msra.mxu0 0.0
    %386 = vmatprep.subr.mxu0 0.0
    %387 = vmatpush1.msra.mxu0 0.0
    %388 = vmatprep.subr.mxu0 0.0
    %389 = vmatpush1.msra.mxu0 0.0
    %390 = vmatprep.subr.mxu0 0.0
    %391 = vmatpush1.msra.mxu0 0.0
    %392 = vmatprep.subr.mxu0 0.0
    %393 = vmatpush1.msra.mxu0 0.0
    %394 = vmatprep.subr.mxu0 0.0
    %395 = vmatpush1.msra.mxu0 0.0
    %396 = vmatprep.subr.mxu0 0.0
    %397 = vmatpush1.msra.mxu0 0.0
    %398 = vmatprep.mubr.f32.mxu0 0.0
    %399 = vmatmul.mubr.f32.gmra.mrb[0].mxu0 %v92
    %v400 = vpop.f32.mrb[0].mxu0
    %v401 = vadd.f32 0.0, %v400
    %v402 = vpop.f32.mrb[0].mxu0
    %403 = vmatprep.mubr.f32.mxu0 0.0
    %404 = vmatmul.mubr.f32.gmra.mrb[0].mxu0 %v93
    %v405 = vpop.f32.mrb[0].mxu0
    %v406 = vadd.f32 0.0, %v405
    %v407 = vpop.f32.mrb[0].mxu0
    %408 = vmatprep.mubr.f32.mxu0 0.0
    %409 = vmatmul.mubr.f32.gmra.mrb[0].mxu0 %v94
    %v410 = vpop.f32.mrb[0].mxu0
    %v411 = vadd.f32 0.0, %v410
    %v412 = vpop.f32.mrb[0].mxu0
    %413 = vmatprep.mubr.f32.mxu0 0.0
    %414 = vmatmul.mubr.f32.gmra.mrb[0].mxu0 %v95
    %v415 = vpop.f32.mrb[0].mxu0
    %v416 = vadd.f32 0.0, %v415
    %v417 = vpop.f32.mrb[0].mxu0
    %418 = vmatprep.mubr.f32.mxu0 0.0
    %419 = vmatmul.mubr.f32.gmra.mrb[0].mxu0 %v96
    %v420 = vpop.f32.mrb[0].mxu0
    %v421 = vadd.f32 0.0, %v420
    %v422 = vpop.f32.mrb[0].mxu0
    %423 = vmatprep.mubr.f32.mxu0 0.0
    %424 = vmatmul.mubr.f32.gmra.mrb[0].mxu0 %v97
    %v425 = vpop.f32.mrb[0].mxu0
    %v426 = vadd.f32 0.0, %v425
    %v427 = vpop.f32.mrb[0].mxu0
    %428 = vmatprep.mubr.f32.mxu0 0.0
    %429 = vmatmul.mubr.f32.gmra.mrb[0].mxu0 %v98
    %v430 = vpop.f32.mrb[0].mxu0
    %v431 = vadd.f32 0.0, %v430
    %v432 = vpop.f32.mrb[0].mxu0
    %433 = vmatprep.mubr.f32.mxu0 0.0
    %434 = vmatmul.mubr.f32.gmra.mrb[0].mxu0 %v99
    %v435 = vpop.f32.mrb[0].mxu0
    %v436 = vadd.f32 0.0, %v435
    %v437 = vpop.f32.mrb[0].mxu0
    %438 = vmatprep.mubr.f32.mxu0 0.0
    %439 = vmatmul.mubr.f32.gmra.mrb[0].mxu0 %v100
    %v440 = vpop.f32.mrb[0].mxu0
    %v441 = vadd.f32 0.0, %v440
    %v442 = vpop.f32.mrb[0].mxu0
    %443 = vmatprep.mubr.f32.mxu0 0.0
    %444 = vmatmul.mubr.f32.gmra.mrb[0].mxu0 %v101
    %v445 = vpop.f32.mrb[0].mxu0
    %v446 = vadd.f32 0.0, %v445
    %v447 = vpop.f32.mrb[0].mxu0
    %448 = vmatprep.mubr.f32.mxu0 0.0
    %449 = vmatmul.mubr.f32.gmra.mrb[0].mxu0 %v102
    %v450 = vpop.f32.mrb[0].mxu0
    %v451 = vadd.f32 0.0, %v450
    %v452 = vpop.f32.mrb[0].mxu0
    %453 = vmatprep.mubr.f32.mxu0 0.0
    %454 = vmatmul.mubr.f32.gmra.mrb[0].mxu0 %v103
    %v455 = vpop.f32.mrb[0].mxu0
    %v456 = vadd.f32 0.0, %v455
    %v457 = vpop.f32.mrb[0].mxu0
    %458 = vmatprep.mubr.f32.mxu0 0.0
    %459 = vmatmul.mubr.f32.gmra.mrb[0].mxu0 %v104
    %v460 = vpop.f32.mrb[0].mxu0
    %v461 = vadd.f32 0.0, %v460
    %v462 = vpop.f32.mrb[0].mxu0
    %463 = vmatprep.mubr.f32.mxu0 0.0
    %464 = vmatmul.mubr.f32.gmra.mrb[0].mxu0 %v105
    %v465 = vpop.f32.mrb[0].mxu0
    %v466 = vadd.f32 0.0, %v465
    %v467 = vpop.f32.mrb[0].mxu0
    %468 = vmatprep.mubr.f32.mxu0 0.0
    %469 = vmatmul.mubr.f32.gmra.mrb[0].mxu0 %v106
    %v470 = vpop.f32.mrb[0].mxu0
    %v471 = vadd.f32 0.0, %v470
    %v472 = vpop.f32.mrb[0].mxu0
    %473 = vmatprep.mubr.f32.mxu0 0.0
    %474 = vmatmul.mubr.f32.gmra.mrb[0].mxu0 %v107
    %v475 = vpop.f32.mrb[0].mxu0
    %v476 = vadd.f32 0.0, %v475
    %v477 = vpop.f32.mrb[0].mxu0
    %478 = vdwg.mxu0
    %479 = vmatprep.subr.mxu0 0.0
    %480 = vmatpush1.msra.mxu0 %v140
    %481 = vmatprep.subr.mxu0 0.0
    %482 = vmatpush1.msra.mxu0 %v141
    %483 = vmatprep.subr.mxu0 0.0
    %484 = vmatpush1.msra.mxu0 %v142
    %485 = vmatprep.subr.mxu0 0.0
    %486 = vmatpush1.msra.mxu0 %v143
    %487 = vmatprep.subr.mxu0 0.0
    %488 = vmatpush1.msra.mxu0 %v144
    %489 = vmatprep.subr.mxu0 0.0
    %490 = vmatpush1.msra.mxu0 %v145
    %491 = vmatprep.subr.mxu0 0.0
    %492 = vmatpush1.msra.mxu0 %v146
    %493 = vmatprep.subr.mxu0 0.0
    %494 = vmatpush1.msra.mxu0 %v147
    %495 = vmatprep.subr.mxu0 0.0
    %496 = vmatpush1.msra.mxu0 %v148
    %497 = vmatprep.subr.mxu0 0.0
    %498 = vmatpush1.msra.mxu0 %v149
    %499 = vmatprep.subr.mxu0 0.0
    %500 = vmatpush1.msra.mxu0 %v150
    %501 = vmatprep.subr.mxu0 0.0
    %502 = vmatpush1.msra.mxu0 %v151
    %503 = vmatprep.subr.mxu0 0.0
    %504 = vmatpush1.msra.mxu0 %v152
    %505 = vmatprep.subr.mxu0 0.0
    %506 = vmatpush1.msra.mxu0 %v153
    %507 = vmatprep.subr.mxu0 0.0
    %508 = vmatpush1.msra.mxu0 %v154
    %509 = vmatprep.subr.mxu0 0.0
    %510 = vmatpush1.msra.mxu0 %v155
    %511 = vmatprep.subr.mxu0 0.0
    %512 = vmatpush1.msra.mxu0 0.0
    %513 = vmatprep.subr.mxu0 0.0
    %514 = vmatpush1.msra.mxu0 0.0
    %515 = vmatprep.subr.mxu0 0.0
    %516 = vmatpush1.msra.mxu0 0.0
    %517 = vmatprep.subr.mxu0 0.0
    %518 = vmatpush1.msra.mxu0 0.0
    %519 = vmatprep.subr.mxu0 0.0
    %520 = vmatpush1.msra.mxu0 0.0
    %521 = vmatprep.subr.mxu0 0.0
    %522 = vmatpush1.msra.mxu0 0.0
    %523 = vmatprep.subr.mxu0 0.0
    %524 = vmatpush1.msra.mxu0 0.0
    %525 = vmatprep.subr.mxu0 0.0
    %526 = vmatpush1.msra.mxu0 0.0
    %527 = vmatprep.subr.mxu0 0.0
    %528 = vmatpush1.msra.mxu0 0.0
    %529 = vmatprep.subr.mxu0 0.0
    %530 = vmatpush1.msra.mxu0 0.0
    %531 = vmatprep.subr.mxu0 0.0
    %532 = vmatpush1.msra.mxu0 0.0
    %533 = vmatprep.subr.mxu0 0.0
    %534 = vmatpush1.msra.mxu0 0.0
    %535 = vmatprep.subr.mxu0 0.0
    %536 = vmatpush1.msra.mxu0 0.0
    %537 = vmatprep.subr.mxu0 0.0
    %538 = vmatpush1.msra.mxu0 0.0
    %539 = vmatprep.subr.mxu0 0.0
    %540 = vmatpush1.msra.mxu0 0.0
    %541 = vmatprep.subr.mxu0 0.0
    %542 = vmatpush1.msra.mxu0 0.0
    %543 = vmatprep.mubr.f32.mxu0 0.0
    %544 = vmatmul.mubr.f32.gmra.mrb[0].mxu0 %v92
    %v545 = vpop.f32.mrb[0].mxu0
    %v546 = vadd.f32 0.0, %v545
    %v547 = vpop.f32.mrb[0].mxu0
    %548 = vmatprep.mubr.f32.mxu0 0.0
    %549 = vmatmul.mubr.f32.gmra.mrb[0].mxu0 %v93
    %v550 = vpop.f32.mrb[0].mxu0
    %v551 = vadd.f32 0.0, %v550
    %v552 = vpop.f32.mrb[0].mxu0
    %553 = vmatprep.mubr.f32.mxu0 0.0
    %554 = vmatmul.mubr.f32.gmra.mrb[0].mxu0 %v94
    %v555 = vpop.f32.mrb[0].mxu0
    %v556 = vadd.f32 0.0, %v555
    %v557 = vpop.f32.mrb[0].mxu0
    %558 = vmatprep.mubr.f32.mxu0 0.0
    %559 = vmatmul.mubr.f32.gmra.mrb[0].mxu0 %v95
    %v560 = vpop.f32.mrb[0].mxu0
    %v561 = vadd.f32 0.0, %v560
    %v562 = vpop.f32.mrb[0].mxu0
    %563 = vmatprep.mubr.f32.mxu0 0.0
    %564 = vmatmul.mubr.f32.gmra.mrb[0].mxu0 %v96
    %v565 = vpop.f32.mrb[0].mxu0
    %v566 = vadd.f32 0.0, %v565
    %v567 = vpop.f32.mrb[0].mxu0
    %568 = vmatprep.mubr.f32.mxu0 0.0
    %569 = vmatmul.mubr.f32.gmra.mrb[0].mxu0 %v97
    %v570 = vpop.f32.mrb[0].mxu0
    %v571 = vadd.f32 0.0, %v570
    %v572 = vpop.f32.mrb[0].mxu0
    %573 = vmatprep.mubr.f32.mxu0 0.0
    %574 = vmatmul.mubr.f32.gmra.mrb[0].mxu0 %v98
    %v575 = vpop.f32.mrb[0].mxu0
    %v576 = vadd.f32 0.0, %v575
    %v577 = vpop.f32.mrb[0].mxu0
    %578 = vmatprep.mubr.f32.mxu0 0.0
    %579 = vmatmul.mubr.f32.gmra.mrb[0].mxu0 %v99
    %v580 = vpop.f32.mrb[0].mxu0
    %v581 = vadd.f32 0.0, %v580
    %v582 = vpop.f32.mrb[0].mxu0
    %583 = vmatprep.mubr.f32.mxu0 0.0
    %584 = vmatmul.mubr.f32.gmra.mrb[0].mxu0 %v100
    %v585 = vpop.f32.mrb[0].mxu0
    %v586 = vadd.f32 0.0, %v585
    %v587 = vpop.f32.mrb[0].mxu0
    %588 = vmatprep.mubr.f32.mxu0 0.0
    %589 = vmatmul.mubr.f32.gmra.mrb[0].mxu0 %v101
    %v590 = vpop.f32.mrb[0].mxu0
    %v591 = vadd.f32 0.0, %v590
    %v592 = vpop.f32.mrb[0].mxu0
    %593 = vmatprep.mubr.f32.mxu0 0.0
    %594 = vmatmul.mubr.f32.gmra.mrb[0].mxu0 %v102
    %v595 = vpop.f32.mrb[0].mxu0
    %v596 = vadd.f32 0.0, %v595
    %v597 = vpop.f32.mrb[0].mxu0
    %598 = vmatprep.mubr.f32.mxu0 0.0
    %599 = vmatmul.mubr.f32.gmra.mrb[0].mxu0 %v103
    %v600 = vpop.f32.mrb[0].mxu0
    %v601 = vadd.f32 0.0, %v600
    %v602 = vpop.f32.mrb[0].mxu0
    %603 = vmatprep.mubr.f32.mxu0 0.0
    %604 = vmatmul.mubr.f32.gmra.mrb[0].mxu0 %v104
    %v605 = vpop.f32.mrb[0].mxu0
    %v606 = vadd.f32 0.0, %v605
    %v607 = vpop.f32.mrb[0].mxu0
    %608 = vmatprep.mubr.f32.mxu0 0.0
    %609 = vmatmul.mubr.f32.gmra.mrb[0].mxu0 %v105
    %v610 = vpop.f32.mrb[0].mxu0
    %v611 = vadd.f32 0.0, %v610
    %v612 = vpop.f32.mrb[0].mxu0
    %613 = vmatprep.mubr.f32.mxu0 0.0
    %614 = vmatmul.mubr.f32.gmra.mrb[0].mxu0 %v106
    %v615 = vpop.f32.mrb[0].mxu0
    %v616 = vadd.f32 0.0, %v615
    %v617 = vpop.f32.mrb[0].mxu0
    %618 = vmatprep.mubr.f32.mxu0 0.0
    %619 = vmatmul.mubr.f32.gmra.mrb[0].mxu0 %v107
    %v620 = vpop.f32.mrb[0].mxu0
    %v621 = vadd.f32 0.0, %v620
    %v622 = vpop.f32.mrb[0].mxu0
    %623 = vdwg.mxu0
    %vm624 = vcmask 261120
    %v626 = vsel %vm624, %v318, 0
    %v629 = vsel %vm624, %v319, 0
    %v632 = vsel %vm624, %v320, 0
    %v635 = vsel %vm624, %v321, 0
    %v638 = vsel %vm624, %v322, 0
    %v641 = vsel %vm624, %v323, 0
    %v644 = vsel %vm624, %v324, 0
    %v647 = vsel %vm624, %v325, 0
    %v650 = vsel %vm624, %v401, 0
    %v653 = vsel %vm624, %v406, 0
    %v656 = vsel %vm624, %v411, 0
    %v659 = vsel %vm624, %v416, 0
    %v662 = vsel %vm624, %v421, 0
    %v665 = vsel %vm624, %v426, 0
    %v668 = vsel %vm624, %v431, 0
    %v671 = vsel %vm624, %v436, 0
    %673 = vmatprep.subr.mxu0 0.0
    %674 = vmatpush1.xpose.msra.mxu0 %v650
    %675 = vmatprep.subr.mxu0 0.0
    %676 = vmatpush1.xpose.msra.mxu0 %v653
    %677 = vmatprep.subr.mxu0 0.0
    %678 = vmatpush1.xpose.msra.mxu0 %v656
    %679 = vmatprep.subr.mxu0 0.0
    %680 = vmatpush1.xpose.msra.mxu0 %v659
    %681 = vmatprep.subr.mxu0 0.0
    %682 = vmatpush1.xpose.msra.mxu0 %v662
    %683 = vmatprep.subr.mxu0 0.0
    %684 = vmatpush1.xpose.msra.mxu0 %v665
    %685 = vmatprep.subr.mxu0 0.0
    %686 = vmatpush1.xpose.msra.mxu0 %v668
    %687 = vmatprep.subr.mxu0 0.0
    %688 = vmatpush1.xpose.msra.mxu0 %v671
    %689 = vmatprep.subr.mxu0 0.0
    %690 = vmatpush1.xpose.msra.mxu0 0.0
    %691 = vmatprep.subr.mxu0 0.0
    %692 = vmatpush1.xpose.msra.mxu0 0.0
    %693 = vmatprep.subr.mxu0 0.0
    %694 = vmatpush1.xpose.msra.mxu0 0.0
    %695 = vmatprep.subr.mxu0 0.0
    %696 = vmatpush1.xpose.msra.mxu0 0.0
    %697 = vmatprep.subr.mxu0 0.0
    %698 = vmatpush1.xpose.msra.mxu0 0.0
    %699 = vmatprep.subr.mxu0 0.0
    %700 = vmatpush1.xpose.msra.mxu0 0.0
    %701 = vmatprep.subr.mxu0 0.0
    %702 = vmatpush1.xpose.msra.mxu0 0.0
    %703 = vmatprep.subr.mxu0 0.0
    %704 = vmatpush1.xpose.msra.mxu0 0.0
    %705 = vmatprep.subr.mxu0 0.0
    %706 = vmatpush1.xpose.msra.mxu0 0.0
    %707 = vmatprep.subr.mxu0 0.0
    %708 = vmatpush1.xpose.msra.mxu0 0.0
    %709 = vmatprep.subr.mxu0 0.0
    %710 = vmatpush1.xpose.msra.mxu0 0.0
    %711 = vmatprep.subr.mxu0 0.0
    %712 = vmatpush1.xpose.msra.mxu0 0.0
    %713 = vmatprep.subr.mxu0 0.0
    %714 = vmatpush1.xpose.msra.mxu0 0.0
    %715 = vmatprep.subr.mxu0 0.0
    %716 = vmatpush1.xpose.msra.mxu0 0.0
    %717 = vmatprep.subr.mxu0 0.0
    %718 = vmatpush1.xpose.msra.mxu0 0.0
    %719 = vmatprep.subr.mxu0 0.0
    %720 = vmatpush1.xpose.msra.mxu0 0.0
    %721 = vmatprep.subr.mxu0 0.0
    %722 = vmatpush1.xpose.msra.mxu0 0.0
    %723 = vmatprep.subr.mxu0 0.0
    %724 = vmatpush1.xpose.msra.mxu0 0.0
    %725 = vmatprep.subr.mxu0 0.0
    %726 = vmatpush1.xpose.msra.mxu0 0.0
    %727 = vmatprep.subr.mxu0 0.0
    %728 = vmatpush1.xpose.msra.mxu0 0.0
    %729 = vmatprep.subr.mxu0 0.0
    %730 = vmatpush1.xpose.msra.mxu0 0.0
    %731 = vmatprep.subr.mxu0 0.0
    %732 = vmatpush1.xpose.msra.mxu0 0.0
    %733 = vmatprep.subr.mxu0 0.0
    %734 = vmatpush1.xpose.msra.mxu0 0.0
    %735 = vmatprep.subr.mxu0 0.0
    %736 = vmatpush1.xpose.msra.mxu0 0.0
    %737 = vmatprep.mubr.f32.mxu0 0.0
    %738 = vmatmul.mubr.f32.gmra.mrb[0].mxu0 %v626
    %v739 = vpop.f32.mrb[0].mxu0
    %v740 = vadd.f32 0.0, %v739
    %v741 = vpop.f32.mrb[0].mxu0
    %742 = vmatprep.mubr.f32.mxu0 0.0
    %743 = vmatmul.mubr.f32.gmra.mrb[0].mxu0 %v629
    %v744 = vpop.f32.mrb[0].mxu0
    %v745 = vadd.f32 0.0, %v744
    %v746 = vpop.f32.mrb[0].mxu0
    %747 = vmatprep.mubr.f32.mxu0 0.0
    %748 = vmatmul.mubr.f32.gmra.mrb[0].mxu0 %v632
    %v749 = vpop.f32.mrb[0].mxu0
    %v750 = vadd.f32 0.0, %v749
    %v751 = vpop.f32.mrb[0].mxu0
    %752 = vmatprep.mubr.f32.mxu0 0.0
    %753 = vmatmul.mubr.f32.gmra.mrb[0].mxu0 %v635
    %v754 = vpop.f32.mrb[0].mxu0
    %v755 = vadd.f32 0.0, %v754
    %v756 = vpop.f32.mrb[0].mxu0
    %757 = vmatprep.mubr.f32.mxu0 0.0
    %758 = vmatmul.mubr.f32.gmra.mrb[0].mxu0 %v638
    %v759 = vpop.f32.mrb[0].mxu0
    %v760 = vadd.f32 0.0, %v759
    %v761 = vpop.f32.mrb[0].mxu0
    %762 = vmatprep.mubr.f32.mxu0 0.0
    %763 = vmatmul.mubr.f32.gmra.mrb[0].mxu0 %v641
    %v764 = vpop.f32.mrb[0].mxu0
    %v765 = vadd.f32 0.0, %v764
    %v766 = vpop.f32.mrb[0].mxu0
    %767 = vmatprep.mubr.f32.mxu0 0.0
    %768 = vmatmul.mubr.f32.gmra.mrb[0].mxu0 %v644
    %v769 = vpop.f32.mrb[0].mxu0
    %v770 = vadd.f32 0.0, %v769
    %v771 = vpop.f32.mrb[0].mxu0
    %772 = vmatprep.mubr.f32.mxu0 0.0
    %773 = vmatmul.mubr.f32.gmra.mrb[0].mxu0 %v647
    %v774 = vpop.f32.mrb[0].mxu0
    %v775 = vadd.f32 0.0, %v774
    %v776 = vpop.f32.mrb[0].mxu0
    %777 = vdwg.mxu0
    %v779 = vsel %vm624, %v326, 0
    %v782 = vsel %vm624, %v327, 0
    %v785 = vsel %vm624, %v328, 0
    %v788 = vsel %vm624, %v329, 0
    %v791 = vsel %vm624, %v330, 0
    %v794 = vsel %vm624, %v331, 0
    %v797 = vsel %vm624, %v332, 0
    %v800 = vsel %vm624, %v333, 0
    %v803 = vsel %vm624, %v441, 0
    %v806 = vsel %vm624, %v446, 0
    %v809 = vsel %vm624, %v451, 0
    %v812 = vsel %vm624, %v456, 0
    %v815 = vsel %vm624, %v461, 0
    %v818 = vsel %vm624, %v466, 0
    %v821 = vsel %vm624, %v471, 0
    %v824 = vsel %vm624, %v476, 0
    %826 = vmatprep.subr.mxu0 0.0
    %827 = vmatpush1.xpose.msra.mxu0 %v803
    %828 = vmatprep.subr.mxu0 0.0
    %829 = vmatpush1.xpose.msra.mxu0 %v806
    %830 = vmatprep.subr.mxu0 0.0
    %831 = vmatpush1.xpose.msra.mxu0 %v809
    %832 = vmatprep.subr.mxu0 0.0
    %833 = vmatpush1.xpose.msra.mxu0 %v812
    %834 = vmatprep.subr.mxu0 0.0
    %835 = vmatpush1.xpose.msra.mxu0 %v815
    %836 = vmatprep.subr.mxu0 0.0
    %837 = vmatpush1.xpose.msra.mxu0 %v818
    %838 = vmatprep.subr.mxu0 0.0
    %839 = vmatpush1.xpose.msra.mxu0 %v821
    %840 = vmatprep.subr.mxu0 0.0
    %841 = vmatpush1.xpose.msra.mxu0 %v824
    %842 = vmatprep.subr.mxu0 0.0
    %843 = vmatpush1.xpose.msra.mxu0 0.0
    %844 = vmatprep.subr.mxu0 0.0
    %845 = vmatpush1.xpose.msra.mxu0 0.0
    %846 = vmatprep.subr.mxu0 0.0
    %847 = vmatpush1.xpose.msra.mxu0 0.0
    %848 = vmatprep.subr.mxu0 0.0
    %849 = vmatpush1.xpose.msra.mxu0 0.0
    %850 = vmatprep.subr.mxu0 0.0
    %851 = vmatpush1.xpose.msra.mxu0 0.0
    %852 = vmatprep.subr.mxu0 0.0
    %853 = vmatpush1.xpose.msra.mxu0 0.0
    %854 = vmatprep.subr.mxu0 0.0
    %855 = vmatpush1.xpose.msra.mxu0 0.0
    %856 = vmatprep.subr.mxu0 0.0
    %857 = vmatpush1.xpose.msra.mxu0 0.0
    %858 = vmatprep.subr.mxu0 0.0
    %859 = vmatpush1.xpose.msra.mxu0 0.0
    %860 = vmatprep.subr.mxu0 0.0
    %861 = vmatpush1.xpose.msra.mxu0 0.0
    %862 = vmatprep.subr.mxu0 0.0
    %863 = vmatpush1.xpose.msra.mxu0 0.0
    %864 = vmatprep.subr.mxu0 0.0
    %865 = vmatpush1.xpose.msra.mxu0 0.0
    %866 = vmatprep.subr.mxu0 0.0
    %867 = vmatpush1.xpose.msra.mxu0 0.0
    %868 = vmatprep.subr.mxu0 0.0
    %869 = vmatpush1.xpose.msra.mxu0 0.0
    %870 = vmatprep.subr.mxu0 0.0
    %871 = vmatpush1.xpose.msra.mxu0 0.0
    %872 = vmatprep.subr.mxu0 0.0
    %873 = vmatpush1.xpose.msra.mxu0 0.0
    %874 = vmatprep.subr.mxu0 0.0
    %875 = vmatpush1.xpose.msra.mxu0 0.0
    %876 = vmatprep.subr.mxu0 0.0
    %877 = vmatpush1.xpose.msra.mxu0 0.0
    %878 = vmatprep.subr.mxu0 0.0
    %879 = vmatpush1.xpose.msra.mxu0 0.0
    %880 = vmatprep.subr.mxu0 0.0
    %881 = vmatpush1.xpose.msra.mxu0 0.0
    %882 = vmatprep.subr.mxu0 0.0
    %883 = vmatpush1.xpose.msra.mxu0 0.0
    %884 = vmatprep.subr.mxu0 0.0
    %885 = vmatpush1.xpose.msra.mxu0 0.0
    %886 = vmatprep.subr.mxu0 0.0
    %887 = vmatpush1.xpose.msra.mxu0 0.0
    %888 = vmatprep.subr.mxu0 0.0
    %889 = vmatpush1.xpose.msra.mxu0 0.0
    %890 = vmatprep.mubr.f32.mxu0 0.0
    %891 = vmatmul.mubr.f32.gmra.mrb[0].mxu0 %v779
    %v892 = vpop.f32.mrb[0].mxu0
    %v893 = vadd.f32 0.0, %v892
    %v894 = vpop.f32.mrb[0].mxu0
    %895 = vmatprep.mubr.f32.mxu0 0.0
    %896 = vmatmul.mubr.f32.gmra.mrb[0].mxu0 %v782
    %v897 = vpop.f32.mrb[0].mxu0
    %v898 = vadd.f32 0.0, %v897
    %v899 = vpop.f32.mrb[0].mxu0
    %900 = vmatprep.mubr.f32.mxu0 0.0
    %901 = vmatmul.mubr.f32.gmra.mrb[0].mxu0 %v785
    %v902 = vpop.f32.mrb[0].mxu0
    %v903 = vadd.f32 0.0, %v902
    %v904 = vpop.f32.mrb[0].mxu0
    %905 = vmatprep.mubr.f32.mxu0 0.0
    %906 = vmatmul.mubr.f32.gmra.mrb[0].mxu0 %v788
    %v907 = vpop.f32.mrb[0].mxu0
    %v908 = vadd.f32 0.0, %v907
    %v909 = vpop.f32.mrb[0].mxu0
    %910 = vmatprep.mubr.f32.mxu0 0.0
    %911 = vmatmul.mubr.f32.gmra.mrb[0].mxu0 %v791
    %v912 = vpop.f32.mrb[0].mxu0
    %v913 = vadd.f32 0.0, %v912
    %v914 = vpop.f32.mrb[0].mxu0
    %915 = vmatprep.mubr.f32.mxu0 0.0
    %916 = vmatmul.mubr.f32.gmra.mrb[0].mxu0 %v794
    %v917 = vpop.f32.mrb[0].mxu0
    %v918 = vadd.f32 0.0, %v917
    %v919 = vpop.f32.mrb[0].mxu0
    %920 = vmatprep.mubr.f32.mxu0 0.0
    %921 = vmatmul.mubr.f32.gmra.mrb[0].mxu0 %v797
    %v922 = vpop.f32.mrb[0].mxu0
    %v923 = vadd.f32 0.0, %v922
    %v924 = vpop.f32.mrb[0].mxu0
    %925 = vmatprep.mubr.f32.mxu0 0.0
    %926 = vmatmul.mubr.f32.gmra.mrb[0].mxu0 %v800
    %v927 = vpop.f32.mrb[0].mxu0
    %v928 = vadd.f32 0.0, %v927
    %v929 = vpop.f32.mrb[0].mxu0
    %930 = vdwg.mxu0
    %vm931 = vcmask 523264
    %v932 = vsel %vm931, %v740, -inf
    %933 = vmax.xlane.f32.xlu0 %v932
    %v934 = vpop.xlane.xlu0 %933
    %v935 = vsel %vm931, %v745, -inf
    %936 = vmax.xlane.f32.xlu0 %v935
    %v937 = vpop.xlane.xlu0 %936
    %v938 = vsel %vm931, %v750, -inf
    %939 = vmax.xlane.f32.xlu0 %v938
    %v940 = vpop.xlane.xlu0 %939
    %v941 = vsel %vm931, %v755, -inf
    %942 = vmax.xlane.f32.xlu0 %v941
    %v943 = vpop.xlane.xlu0 %942
    %v944 = vsel %vm931, %v760, -inf
    %945 = vmax.xlane.f32.xlu0 %v944
    %v946 = vpop.xlane.xlu0 %945
    %v947 = vsel %vm931, %v765, -inf
    %948 = vmax.xlane.f32.xlu0 %v947
    %v949 = vpop.xlane.xlu0 %948
    %v950 = vsel %vm931, %v770, -inf
    %951 = vmax.xlane.f32.xlu0 %v950
    %v952 = vpop.xlane.xlu0 %951
    %v953 = vsel %vm931, %v775, -inf
    %954 = vmax.xlane.f32.xlu0 %v953
    %v955 = vpop.xlane.xlu0 %954
    %v956 = vsel %vm931, %v893, -inf
    %957 = vmax.xlane.f32.xlu0 %v956
    %v958 = vpop.xlane.xlu0 %957
    %v959 = vsel %vm931, %v898, -inf
    %960 = vmax.xlane.f32.xlu0 %v959
    %v961 = vpop.xlane.xlu0 %960
    %v962 = vsel %vm931, %v903, -inf
    %963 = vmax.xlane.f32.xlu0 %v962
    %v964 = vpop.xlane.xlu0 %963
    %v965 = vsel %vm931, %v908, -inf
    %966 = vmax.xlane.f32.xlu0 %v965
    %v967 = vpop.xlane.xlu0 %966
    %v968 = vsel %vm931, %v913, -inf
    %969 = vmax.xlane.f32.xlu0 %v968
    %v970 = vpop.xlane.xlu0 %969
    %v971 = vsel %vm931, %v918, -inf
    %972 = vmax.xlane.f32.xlu0 %v971
    %v973 = vpop.xlane.xlu0 %972
    %v974 = vsel %vm931, %v923, -inf
    %975 = vmax.xlane.f32.xlu0 %v974
    %v976 = vpop.xlane.xlu0 %975
    %v977 = vsel %vm931, %v928, -inf
    %978 = vmax.xlane.f32.xlu0 %v977
    %v979 = vpop.xlane.xlu0 %978
    %v980 = vsub.f32 %v740, %v934
    %v981 = vsub.f32 %v745, %v937
    %v982 = vsub.f32 %v750, %v940
    %v983 = vsub.f32 %v755, %v943
    %v984 = vsub.f32 %v760, %v946
    %v985 = vsub.f32 %v765, %v949
    %v986 = vsub.f32 %v770, %v952
    %v987 = vsub.f32 %v775, %v955
    %v988 = vsub.f32 %v893, %v958
    %v989 = vsub.f32 %v898, %v961
    %v990 = vsub.f32 %v903, %v964
    %v991 = vsub.f32 %v908, %v967
    %v992 = vsub.f32 %v913, %v970
    %v993 = vsub.f32 %v918, %v973
    %v994 = vsub.f32 %v923, %v976
    %v995 = vsub.f32 %v928, %v979
    %v996 = vmul.f32 %v980, 1.442695
    %v997 = vpow.pop %v996
    %v998 = vmul.f32 %v981, 1.442695
    %v999 = vpow.pop %v998
    %v1000 = vmul.f32 %v982, 1.442695
    %v1001 = vpow.pop %v1000
    %v1002 = vmul.f32 %v983, 1.442695
    %v1003 = vpow.pop %v1002
    %v1004 = vmul.f32 %v984, 1.442695
    %v1005 = vpow.pop %v1004
    %v1006 = vmul.f32 %v985, 1.442695
    %v1007 = vpow.pop %v1006
    %v1008 = vmul.f32 %v986, 1.442695
    %v1009 = vpow.pop %v1008
    %v1010 = vmul.f32 %v987, 1.442695
    %v1011 = vpow.pop %v1010
    %v1012 = vmul.f32 %v988, 1.442695
    %v1013 = vpow.pop %v1012
    %v1014 = vmul.f32 %v989, 1.442695
    %v1015 = vpow.pop %v1014
    %v1016 = vmul.f32 %v990, 1.442695
    %v1017 = vpow.pop %v1016
    %v1018 = vmul.f32 %v991, 1.442695
    %v1019 = vpow.pop %v1018
    %v1020 = vmul.f32 %v992, 1.442695
    %v1021 = vpow.pop %v1020
    %v1022 = vmul.f32 %v993, 1.442695
    %v1023 = vpow.pop %v1022
    %v1024 = vmul.f32 %v994, 1.442695
    %v1025 = vpow.pop %v1024
    %v1026 = vmul.f32 %v995, 1.442695
    %v1027 = vpow.pop %v1026
    %v1028 = vsel %vm931, %v997, 0.0
    %1029 = vadd.xlane.f32.xlu0 %v1028
    %v1030 = vpop.xlane.xlu0 %1029
    %v1031 = vsel %vm931, %v999, 0.0
    %1032 = vadd.xlane.f32.xlu0 %v1031
    %v1033 = vpop.xlane.xlu0 %1032
    %v1034 = vsel %vm931, %v1001, 0.0
    %1035 = vadd.xlane.f32.xlu0 %v1034
    %v1036 = vpop.xlane.xlu0 %1035
    %v1037 = vsel %vm931, %v1003, 0.0
    %1038 = vadd.xlane.f32.xlu0 %v1037
    %v1039 = vpop.xlane.xlu0 %1038
    %v1040 = vsel %vm931, %v1005, 0.0
    %1041 = vadd.xlane.f32.xlu0 %v1040
    %v1042 = vpop.xlane.xlu0 %1041
    %v1043 = vsel %vm931, %v1007, 0.0
    %1044 = vadd.xlane.f32.xlu0 %v1043
    %v1045 = vpop.xlane.xlu0 %1044
    %v1046 = vsel %vm931, %v1009, 0.0
    %1047 = vadd.xlane.f32.xlu0 %v1046
    %v1048 = vpop.xlane.xlu0 %1047
    %v1049 = vsel %vm931, %v1011, 0.0
    %1050 = vadd.xlane.f32.xlu0 %v1049
    %v1051 = vpop.xlane.xlu0 %1050
    %v1052 = vsel %vm931, %v1013, 0.0
    %1053 = vadd.xlane.f32.xlu0 %v1052
    %v1054 = vpop.xlane.xlu0 %1053
    %v1055 = vsel %vm931, %v1015, 0.0
    %1056 = vadd.xlane.f32.xlu0 %v1055
    %v1057 = vpop.xlane.xlu0 %1056
    %v1058 = vsel %vm931, %v1017, 0.0
    %1059 = vadd.xlane.f32.xlu0 %v1058
    %v1060 = vpop.xlane.xlu0 %1059
    %v1061 = vsel %vm931, %v1019, 0.0
    %1062 = vadd.xlane.f32.xlu0 %v1061
    %v1063 = vpop.xlane.xlu0 %1062
    %v1064 = vsel %vm931, %v1021, 0.0
    %1065 = vadd.xlane.f32.xlu0 %v1064
    %v1066 = vpop.xlane.xlu0 %1065
    %v1067 = vsel %vm931, %v1023, 0.0
    %1068 = vadd.xlane.f32.xlu0 %v1067
    %v1069 = vpop.xlane.xlu0 %1068
    %v1070 = vsel %vm931, %v1025, 0.0
    %1071 = vadd.xlane.f32.xlu0 %v1070
    %v1072 = vpop.xlane.xlu0 %1071
    %v1073 = vsel %vm931, %v1027, 0.0
    %1074 = vadd.xlane.f32.xlu0 %v1073
    %v1075 = vpop.xlane.xlu0 %1074
    %v1076 = vrcp.pop %v1030
    %v1077 = vmul.f32 %v997, %v1076
    %v1078 = vrcp.pop %v1033
    %v1079 = vmul.f32 %v999, %v1078
    %v1080 = vrcp.pop %v1036
    %v1081 = vmul.f32 %v1001, %v1080
    %v1082 = vrcp.pop %v1039
    %v1083 = vmul.f32 %v1003, %v1082
    %v1084 = vrcp.pop %v1042
    %v1085 = vmul.f32 %v1005, %v1084
    %v1086 = vrcp.pop %v1045
    %v1087 = vmul.f32 %v1007, %v1086
    %v1088 = vrcp.pop %v1048
    %v1089 = vmul.f32 %v1009, %v1088
    %v1090 = vrcp.pop %v1051
    %v1091 = vmul.f32 %v1011, %v1090
    %v1092 = vrcp.pop %v1054
    %v1093 = vmul.f32 %v1013, %v1092
    %v1094 = vrcp.pop %v1057
    %v1095 = vmul.f32 %v1015, %v1094
    %v1096 = vrcp.pop %v1060
    %v1097 = vmul.f32 %v1017, %v1096
    %v1098 = vrcp.pop %v1063
    %v1099 = vmul.f32 %v1019, %v1098
    %v1100 = vrcp.pop %v1066
    %v1101 = vmul.f32 %v1021, %v1100
    %v1102 = vrcp.pop %v1069
    %v1103 = vmul.f32 %v1023, %v1102
    %v1104 = vrcp.pop %v1072
    %v1105 = vmul.f32 %v1025, %v1104
    %v1106 = vrcp.pop %v1075
    %v1107 = vmul.f32 %v1027, %v1106
    %v1109 = vsel %vm931, %v1077, 0
    %v1112 = vsel %vm931, %v1079, 0
    %v1115 = vsel %vm931, %v1081, 0
    %v1118 = vsel %vm931, %v1083, 0
    %v1121 = vsel %vm931, %v1085, 0
    %v1124 = vsel %vm931, %v1087, 0
    %v1127 = vsel %vm931, %v1089, 0
    %v1130 = vsel %vm931, %v1091, 0
    %1132 = vmatprep.subr.mxu0 0.0
    %1133 = vmatpush1.msra.mxu0 %v546
    %1134 = vmatprep.subr.mxu0 0.0
    %1135 = vmatpush1.msra.mxu0 %v551
    %1136 = vmatprep.subr.mxu0 0.0
    %1137 = vmatpush1.msra.mxu0 %v556
    %1138 = vmatprep.subr.mxu0 0.0
    %1139 = vmatpush1.msra.mxu0 %v561
    %1140 = vmatprep.subr.mxu0 0.0
    %1141 = vmatpush1.msra.mxu0 %v566
    %1142 = vmatprep.subr.mxu0 0.0
    %1143 = vmatpush1.msra.mxu0 %v571
    %1144 = vmatprep.subr.mxu0 0.0
    %1145 = vmatpush1.msra.mxu0 %v576
    %1146 = vmatprep.subr.mxu0 0.0
    %1147 = vmatpush1.msra.mxu0 %v581
    %1148 = vmatprep.subr.mxu0 0.0
    %1149 = vmatpush1.msra.mxu0 0.0
    %1150 = vmatprep.subr.mxu0 0.0
    %1151 = vmatpush1.msra.mxu0 0.0
    %1152 = vmatprep.subr.mxu0 0.0
    %1153 = vmatpush1.msra.mxu0 0.0
    %1154 = vmatprep.subr.mxu0 0.0
    %1155 = vmatpush1.msra.mxu0 0.0
    %1156 = vmatprep.subr.mxu0 0.0
    %1157 = vmatpush1.msra.mxu0 0.0
    %1158 = vmatprep.subr.mxu0 0.0
    %1159 = vmatpush1.msra.mxu0 0.0
    %1160 = vmatprep.subr.mxu0 0.0
    %1161 = vmatpush1.msra.mxu0 0.0
    %1162 = vmatprep.subr.mxu0 0.0
    %1163 = vmatpush1.msra.mxu0 0.0
    %1164 = vmatprep.subr.mxu0 0.0
    %1165 = vmatpush1.msra.mxu0 0.0
    %1166 = vmatprep.subr.mxu0 0.0
    %1167 = vmatpush1.msra.mxu0 0.0
    %1168 = vmatprep.subr.mxu0 0.0
    %1169 = vmatpush1.msra.mxu0 0.0
    %1170 = vmatprep.subr.mxu0 0.0
    %1171 = vmatpush1.msra.mxu0 0.0
    %1172 = vmatprep.subr.mxu0 0.0
    %1173 = vmatpush1.msra.mxu0 0.0
    %1174 = vmatprep.subr.mxu0 0.0
    %1175 = vmatpush1.msra.mxu0 0.0
    %1176 = vmatprep.subr.mxu0 0.0
    %1177 = vmatpush1.msra.mxu0 0.0
    %1178 = vmatprep.subr.mxu0 0.0
    %1179 = vmatpush1.msra.mxu0 0.0
    %1180 = vmatprep.subr.mxu0 0.0
    %1181 = vmatpush1.msra.mxu0 0.0
    %1182 = vmatprep.subr.mxu0 0.0
    %1183 = vmatpush1.msra.mxu0 0.0
    %1184 = vmatprep.subr.mxu0 0.0
    %1185 = vmatpush1.msra.mxu0 0.0
    %1186 = vmatprep.subr.mxu0 0.0
    %1187 = vmatpush1.msra.mxu0 0.0
    %1188 = vmatprep.subr.mxu0 0.0
    %1189 = vmatpush1.msra.mxu0 0.0
    %1190 = vmatprep.subr.mxu0 0.0
    %1191 = vmatpush1.msra.mxu0 0.0
    %1192 = vmatprep.subr.mxu0 0.0
    %1193 = vmatpush1.msra.mxu0 0.0
    %1194 = vmatprep.subr.mxu0 0.0
    %1195 = vmatpush1.msra.mxu0 0.0
    %1196 = vmatprep.mubr.f32.mxu0 0.0
    %1197 = vmatmul.mubr.f32.gmra.mrb[0].mxu0 %v1109
    %v1198 = vpop.f32.mrb[0].mxu0
    %v1199 = vadd.f32 0.0, %v1198
    %v1200 = vpop.f32.mrb[0].mxu0
    %1201 = vmatprep.mubr.f32.mxu0 0.0
    %1202 = vmatmul.mubr.f32.gmra.mrb[0].mxu0 %v1112
    %v1203 = vpop.f32.mrb[0].mxu0
    %v1204 = vadd.f32 0.0, %v1203
    %v1205 = vpop.f32.mrb[0].mxu0
    %1206 = vmatprep.mubr.f32.mxu0 0.0
    %1207 = vmatmul.mubr.f32.gmra.mrb[0].mxu0 %v1115
    %v1208 = vpop.f32.mrb[0].mxu0
    %v1209 = vadd.f32 0.0, %v1208
    %v1210 = vpop.f32.mrb[0].mxu0
    %1211 = vmatprep.mubr.f32.mxu0 0.0
    %1212 = vmatmul.mubr.f32.gmra.mrb[0].mxu0 %v1118
    %v1213 = vpop.f32.mrb[0].mxu0
    %v1214 = vadd.f32 0.0, %v1213
    %v1215 = vpop.f32.mrb[0].mxu0
    %1216 = vmatprep.mubr.f32.mxu0 0.0
    %1217 = vmatmul.mubr.f32.gmra.mrb[0].mxu0 %v1121
    %v1218 = vpop.f32.mrb[0].mxu0
    %v1219 = vadd.f32 0.0, %v1218
    %v1220 = vpop.f32.mrb[0].mxu0
    %1221 = vmatprep.mubr.f32.mxu0 0.0
    %1222 = vmatmul.mubr.f32.gmra.mrb[0].mxu0 %v1124
    %v1223 = vpop.f32.mrb[0].mxu0
    %v1224 = vadd.f32 0.0, %v1223
    %v1225 = vpop.f32.mrb[0].mxu0
    %1226 = vmatprep.mubr.f32.mxu0 0.0
    %1227 = vmatmul.mubr.f32.gmra.mrb[0].mxu0 %v1127
    %v1228 = vpop.f32.mrb[0].mxu0
    %v1229 = vadd.f32 0.0, %v1228
    %v1230 = vpop.f32.mrb[0].mxu0
    %1231 = vmatprep.mubr.f32.mxu0 0.0
    %1232 = vmatmul.mubr.f32.gmra.mrb[0].mxu0 %v1130
    %v1233 = vpop.f32.mrb[0].mxu0
    %v1234 = vadd.f32 0.0, %v1233
    %v1235 = vpop.f32.mrb[0].mxu0
    %1236 = vdwg.mxu0
    %v1238 = vsel %vm931, %v1093, 0
    %v1241 = vsel %vm931, %v1095, 0
    %v1244 = vsel %vm931, %v1097, 0
    %v1247 = vsel %vm931, %v1099, 0
    %v1250 = vsel %vm931, %v1101, 0
    %v1253 = vsel %vm931, %v1103, 0
    %v1256 = vsel %vm931, %v1105, 0
    %v1259 = vsel %vm931, %v1107, 0
    %1261 = vmatprep.subr.mxu0 0.0
    %1262 = vmatpush1.msra.mxu0 %v586
    %1263 = vmatprep.subr.mxu0 0.0
    %1264 = vmatpush1.msra.mxu0 %v591
    %1265 = vmatprep.subr.mxu0 0.0
    %1266 = vmatpush1.msra.mxu0 %v596
    %1267 = vmatprep.subr.mxu0 0.0
    %1268 = vmatpush1.msra.mxu0 %v601
    %1269 = vmatprep.subr.mxu0 0.0
    %1270 = vmatpush1.msra.mxu0 %v606
    %1271 = vmatprep.subr.mxu0 0.0
    %1272 = vmatpush1.msra.mxu0 %v611
    %1273 = vmatprep.subr.mxu0 0.0
    %1274 = vmatpush1.msra.mxu0 %v616
    %1275 = vmatprep.subr.mxu0 0.0
    %1276 = vmatpush1.msra.mxu0 %v621
    %1277 = vmatprep.subr.mxu0 0.0
    %1278 = vmatpush1.msra.mxu0 0.0
    %1279 = vmatprep.subr.mxu0 0.0
    %1280 = vmatpush1.msra.mxu0 0.0
    %1281 = vmatprep.subr.mxu0 0.0
    %1282 = vmatpush1.msra.mxu0 0.0
    %1283 = vmatprep.subr.mxu0 0.0
    %1284 = vmatpush1.msra.mxu0 0.0
    %1285 = vmatprep.subr.mxu0 0.0
    %1286 = vmatpush1.msra.mxu0 0.0
    %1287 = vmatprep.subr.mxu0 0.0
    %1288 = vmatpush1.msra.mxu0 0.0
    %1289 = vmatprep.subr.mxu0 0.0
    %1290 = vmatpush1.msra.mxu0 0.0
    %1291 = vmatprep.subr.mxu0 0.0
    %1292 = vmatpush1.msra.mxu0 0.0
    %1293 = vmatprep.subr.mxu0 0.0
    %1294 = vmatpush1.msra.mxu0 0.0
    %1295 = vmatprep.subr.mxu0 0.0
    %1296 = vmatpush1.msra.mxu0 0.0
    %1297 = vmatprep.subr.mxu0 0.0
    %1298 = vmatpush1.msra.mxu0 0.0
    %1299 = vmatprep.subr.mxu0 0.0
    %1300 = vmatpush1.msra.mxu0 0.0
    %1301 = vmatprep.subr.mxu0 0.0
    %1302 = vmatpush1.msra.mxu0 0.0
    %1303 = vmatprep.subr.mxu0 0.0
    %1304 = vmatpush1.msra.mxu0 0.0
    %1305 = vmatprep.subr.mxu0 0.0
    %1306 = vmatpush1.msra.mxu0 0.0
    %1307 = vmatprep.subr.mxu0 0.0
    %1308 = vmatpush1.msra.mxu0 0.0
    %1309 = vmatprep.subr.mxu0 0.0
    %1310 = vmatpush1.msra.mxu0 0.0
    %1311 = vmatprep.subr.mxu0 0.0
    %1312 = vmatpush1.msra.mxu0 0.0
    %1313 = vmatprep.subr.mxu0 0.0
    %1314 = vmatpush1.msra.mxu0 0.0
    %1315 = vmatprep.subr.mxu0 0.0
    %1316 = vmatpush1.msra.mxu0 0.0
    %1317 = vmatprep.subr.mxu0 0.0
    %1318 = vmatpush1.msra.mxu0 0.0
    %1319 = vmatprep.subr.mxu0 0.0
    %1320 = vmatpush1.msra.mxu0 0.0
    %1321 = vmatprep.subr.mxu0 0.0
    %1322 = vmatpush1.msra.mxu0 0.0
    %1323 = vmatprep.subr.mxu0 0.0
    %1324 = vmatpush1.msra.mxu0 0.0
    %1325 = vmatprep.mubr.f32.mxu0 0.0
    %1326 = vmatmul.mubr.f32.gmra.mrb[0].mxu0 %v1238
    %v1327 = vpop.f32.mrb[0].mxu0
    %v1328 = vadd.f32 0.0, %v1327
    %v1329 = vpop.f32.mrb[0].mxu0
    %1330 = vmatprep.mubr.f32.mxu0 0.0
    %1331 = vmatmul.mubr.f32.gmra.mrb[0].mxu0 %v1241
    %v1332 = vpop.f32.mrb[0].mxu0
    %v1333 = vadd.f32 0.0, %v1332
    %v1334 = vpop.f32.mrb[0].mxu0
    %1335 = vmatprep.mubr.f32.mxu0 0.0
    %1336 = vmatmul.mubr.f32.gmra.mrb[0].mxu0 %v1244
    %v1337 = vpop.f32.mrb[0].mxu0
    %v1338 = vadd.f32 0.0, %v1337
    %v1339 = vpop.f32.mrb[0].mxu0
    %1340 = vmatprep.mubr.f32.mxu0 0.0
    %1341 = vmatmul.mubr.f32.gmra.mrb[0].mxu0 %v1247
    %v1342 = vpop.f32.mrb[0].mxu0
    %v1343 = vadd.f32 0.0, %v1342
    %v1344 = vpop.f32.mrb[0].mxu0
    %1345 = vmatprep.mubr.f32.mxu0 0.0
    %1346 = vmatmul.mubr.f32.gmra.mrb[0].mxu0 %v1250
    %v1347 = vpop.f32.mrb[0].mxu0
    %v1348 = vadd.f32 0.0, %v1347
    %v1349 = vpop.f32.mrb[0].mxu0
    %1350 = vmatprep.mubr.f32.mxu0 0.0
    %1351 = vmatmul.mubr.f32.gmra.mrb[0].mxu0 %v1253
    %v1352 = vpop.f32.mrb[0].mxu0
    %v1353 = vadd.f32 0.0, %v1352
    %v1354 = vpop.f32.mrb[0].mxu0
    %1355 = vmatprep.mubr.f32.mxu0 0.0
    %1356 = vmatmul.mubr.f32.gmra.mrb[0].mxu0 %v1256
    %v1357 = vpop.f32.mrb[0].mxu0
    %v1358 = vadd.f32 0.0, %v1357
    %v1359 = vpop.f32.mrb[0].mxu0
    %1360 = vmatprep.mubr.f32.mxu0 0.0
    %1361 = vmatmul.mubr.f32.gmra.mrb[0].mxu0 %v1259
    %v1362 = vpop.f32.mrb[0].mxu0
    %v1363 = vadd.f32 0.0, %v1362
    %v1364 = vpop.f32.mrb[0].mxu0
    %1365 = vdwg.mxu0
    %1366 = vrot.lane.b32.xlu0 %v318, 96
    %v1367 = vpop.permute.xlu0 %1366
    %1368 = vrot.lane.b32.xlu0 %v319, 96
    %v1369 = vpop.permute.xlu0 %1368
    %1370 = vrot.lane.b32.xlu0 %v320, 96
    %v1371 = vpop.permute.xlu0 %1370
    %1372 = vrot.lane.b32.xlu0 %v321, 96
    %v1373 = vpop.permute.xlu0 %1372
    %1374 = vrot.lane.b32.xlu0 %v322, 96
    %v1375 = vpop.permute.xlu0 %1374
    %1376 = vrot.lane.b32.xlu0 %v323, 96
    %v1377 = vpop.permute.xlu0 %1376
    %1378 = vrot.lane.b32.xlu0 %v324, 96
    %v1379 = vpop.permute.xlu0 %1378
    %1380 = vrot.lane.b32.xlu0 %v325, 96
    %v1381 = vpop.permute.xlu0 %1380
    %1382 = vrot.lane.b32.xlu0 %v401, 96
    %v1383 = vpop.permute.xlu0 %1382
    %1384 = vrot.lane.b32.xlu0 %v406, 96
    %v1385 = vpop.permute.xlu0 %1384
    %1386 = vrot.lane.b32.xlu0 %v411, 96
    %v1387 = vpop.permute.xlu0 %1386
    %1388 = vrot.lane.b32.xlu0 %v416, 96
    %v1389 = vpop.permute.xlu0 %1388
    %1390 = vrot.lane.b32.xlu0 %v421, 96
    %v1391 = vpop.permute.xlu0 %1390
    %1392 = vrot.lane.b32.xlu0 %v426, 96
    %v1393 = vpop.permute.xlu0 %1392
    %1394 = vrot.lane.b32.xlu0 %v431, 96
    %v1395 = vpop.permute.xlu0 %1394
    %1396 = vrot.lane.b32.xlu0 %v436, 96
    %v1397 = vpop.permute.xlu0 %1396
    %v1398 = vsel %vm624, %v1367, 0
    %v1400 = vsel %vm624, %v1369, 0
    %v1402 = vsel %vm624, %v1371, 0
    %v1404 = vsel %vm624, %v1373, 0
    %v1406 = vsel %vm624, %v1375, 0
    %v1408 = vsel %vm624, %v1377, 0
    %v1410 = vsel %vm624, %v1379, 0
    %v1412 = vsel %vm624, %v1381, 0
    %v1414 = vsel %vm624, %v1383, 0
    %v1416 = vsel %vm624, %v1385, 0
    %v1418 = vsel %vm624, %v1387, 0
    %v1420 = vsel %vm624, %v1389, 0
    %v1422 = vsel %vm624, %v1391, 0
    %v1424 = vsel %vm624, %v1393, 0
    %v1426 = vsel %vm624, %v1395, 0
    %v1428 = vsel %vm624, %v1397, 0
    %1430 = vmatprep.subr.mxu0 0.0
    %1431 = vmatpush1.xpose.msra.mxu0 %v1414
    %1432 = vmatprep.subr.mxu0 0.0
    %1433 = vmatpush1.xpose.msra.mxu0 %v1416
    %1434 = vmatprep.subr.mxu0 0.0
    %1435 = vmatpush1.xpose.msra.mxu0 %v1418
    %1436 = vmatprep.subr.mxu0 0.0
    %1437 = vmatpush1.xpose.msra.mxu0 %v1420
    %1438 = vmatprep.subr.mxu0 0.0
    %1439 = vmatpush1.xpose.msra.mxu0 %v1422
    %1440 = vmatprep.subr.mxu0 0.0
    %1441 = vmatpush1.xpose.msra.mxu0 %v1424
    %1442 = vmatprep.subr.mxu0 0.0
    %1443 = vmatpush1.xpose.msra.mxu0 %v1426
    %1444 = vmatprep.subr.mxu0 0.0
    %1445 = vmatpush1.xpose.msra.mxu0 %v1428
    %1446 = vmatprep.subr.mxu0 0.0
    %1447 = vmatpush1.xpose.msra.mxu0 0.0
    %1448 = vmatprep.subr.mxu0 0.0
    %1449 = vmatpush1.xpose.msra.mxu0 0.0
    %1450 = vmatprep.subr.mxu0 0.0
    %1451 = vmatpush1.xpose.msra.mxu0 0.0
    %1452 = vmatprep.subr.mxu0 0.0
    %1453 = vmatpush1.xpose.msra.mxu0 0.0
    %1454 = vmatprep.subr.mxu0 0.0
    %1455 = vmatpush1.xpose.msra.mxu0 0.0
    %1456 = vmatprep.subr.mxu0 0.0
    %1457 = vmatpush1.xpose.msra.mxu0 0.0
    %1458 = vmatprep.subr.mxu0 0.0
    %1459 = vmatpush1.xpose.msra.mxu0 0.0
    %1460 = vmatprep.subr.mxu0 0.0
    %1461 = vmatpush1.xpose.msra.mxu0 0.0
    %1462 = vmatprep.subr.mxu0 0.0
    %1463 = vmatpush1.xpose.msra.mxu0 0.0
    %1464 = vmatprep.subr.mxu0 0.0
    %1465 = vmatpush1.xpose.msra.mxu0 0.0
    %1466 = vmatprep.subr.mxu0 0.0
    %1467 = vmatpush1.xpose.msra.mxu0 0.0
    %1468 = vmatprep.subr.mxu0 0.0
    %1469 = vmatpush1.xpose.msra.mxu0 0.0
    %1470 = vmatprep.subr.mxu0 0.0
    %1471 = vmatpush1.xpose.msra.mxu0 0.0
    %1472 = vmatprep.subr.mxu0 0.0
    %1473 = vmatpush1.xpose.msra.mxu0 0.0
    %1474 = vmatprep.subr.mxu0 0.0
    %1475 = vmatpush1.xpose.msra.mxu0 0.0
    %1476 = vmatprep.subr.mxu0 0.0
    %1477 = vmatpush1.xpose.msra.mxu0 0.0
    %1478 = vmatprep.subr.mxu0 0.0
    %1479 = vmatpush1.xpose.msra.mxu0 0.0
    %1480 = vmatprep.subr.mxu0 0.0
    %1481 = vmatpush1.xpose.msra.mxu0 0.0
    %1482 = vmatprep.subr.mxu0 0.0
    %1483 = vmatpush1.xpose.msra.mxu0 0.0
    %1484 = vmatprep.subr.mxu0 0.0
    %1485 = vmatpush1.xpose.msra.mxu0 0.0
    %1486 = vmatprep.subr.mxu0 0.0
    %1487 = vmatpush1.xpose.msra.mxu0 0.0
    %1488 = vmatprep.subr.mxu0 0.0
    %1489 = vmatpush1.xpose.msra.mxu0 0.0
    %1490 = vmatprep.subr.mxu0 0.0
    %1491 = vmatpush1.xpose.msra.mxu0 0.0
    %1492 = vmatprep.subr.mxu0 0.0
    %1493 = vmatpush1.xpose.msra.mxu0 0.0
    %1494 = vmatprep.mubr.f32.mxu0 0.0
    %1495 = vmatmul.mubr.f32.gmra.mrb[0].mxu0 %v1398
    %v1496 = vpop.f32.mrb[0].mxu0
    %v1497 = vadd.f32 0.0, %v1496
    %v1498 = vpop.f32.mrb[0].mxu0
    %1499 = vmatprep.mubr.f32.mxu0 0.0
    %1500 = vmatmul.mubr.f32.gmra.mrb[0].mxu0 %v1400
    %v1501 = vpop.f32.mrb[0].mxu0
    %v1502 = vadd.f32 0.0, %v1501
    %v1503 = vpop.f32.mrb[0].mxu0
    %1504 = vmatprep.mubr.f32.mxu0 0.0
    %1505 = vmatmul.mubr.f32.gmra.mrb[0].mxu0 %v1402
    %v1506 = vpop.f32.mrb[0].mxu0
    %v1507 = vadd.f32 0.0, %v1506
    %v1508 = vpop.f32.mrb[0].mxu0
    %1509 = vmatprep.mubr.f32.mxu0 0.0
    %1510 = vmatmul.mubr.f32.gmra.mrb[0].mxu0 %v1404
    %v1511 = vpop.f32.mrb[0].mxu0
    %v1512 = vadd.f32 0.0, %v1511
    %v1513 = vpop.f32.mrb[0].mxu0
    %1514 = vmatprep.mubr.f32.mxu0 0.0
    %1515 = vmatmul.mubr.f32.gmra.mrb[0].mxu0 %v1406
    %v1516 = vpop.f32.mrb[0].mxu0
    %v1517 = vadd.f32 0.0, %v1516
    %v1518 = vpop.f32.mrb[0].mxu0
    %1519 = vmatprep.mubr.f32.mxu0 0.0
    %1520 = vmatmul.mubr.f32.gmra.mrb[0].mxu0 %v1408
    %v1521 = vpop.f32.mrb[0].mxu0
    %v1522 = vadd.f32 0.0, %v1521
    %v1523 = vpop.f32.mrb[0].mxu0
    %1524 = vmatprep.mubr.f32.mxu0 0.0
    %1525 = vmatmul.mubr.f32.gmra.mrb[0].mxu0 %v1410
    %v1526 = vpop.f32.mrb[0].mxu0
    %v1527 = vadd.f32 0.0, %v1526
    %v1528 = vpop.f32.mrb[0].mxu0
    %1529 = vmatprep.mubr.f32.mxu0 0.0
    %1530 = vmatmul.mubr.f32.gmra.mrb[0].mxu0 %v1412
    %v1531 = vpop.f32.mrb[0].mxu0
    %v1532 = vadd.f32 0.0, %v1531
    %v1533 = vpop.f32.mrb[0].mxu0
    %1534 = vdwg.mxu0
    %1535 = vrot.lane.b32.xlu0 %v326, 96
    %v1536 = vpop.permute.xlu0 %1535
    %1537 = vrot.lane.b32.xlu0 %v327, 96
    %v1538 = vpop.permute.xlu0 %1537
    %1539 = vrot.lane.b32.xlu0 %v328, 96
    %v1540 = vpop.permute.xlu0 %1539
    %1541 = vrot.lane.b32.xlu0 %v329, 96
    %v1542 = vpop.permute.xlu0 %1541
    %1543 = vrot.lane.b32.xlu0 %v330, 96
    %v1544 = vpop.permute.xlu0 %1543
    %1545 = vrot.lane.b32.xlu0 %v331, 96
    %v1546 = vpop.permute.xlu0 %1545
    %1547 = vrot.lane.b32.xlu0 %v332, 96
    %v1548 = vpop.permute.xlu0 %1547
    %1549 = vrot.lane.b32.xlu0 %v333, 96
    %v1550 = vpop.permute.xlu0 %1549
    %1551 = vrot.lane.b32.xlu0 %v441, 96
    %v1552 = vpop.permute.xlu0 %1551
    %1553 = vrot.lane.b32.xlu0 %v446, 96
    %v1554 = vpop.permute.xlu0 %1553
    %1555 = vrot.lane.b32.xlu0 %v451, 96
    %v1556 = vpop.permute.xlu0 %1555
    %1557 = vrot.lane.b32.xlu0 %v456, 96
    %v1558 = vpop.permute.xlu0 %1557
    %1559 = vrot.lane.b32.xlu0 %v461, 96
    %v1560 = vpop.permute.xlu0 %1559
    %1561 = vrot.lane.b32.xlu0 %v466, 96
    %v1562 = vpop.permute.xlu0 %1561
    %1563 = vrot.lane.b32.xlu0 %v471, 96
    %v1564 = vpop.permute.xlu0 %1563
    %1565 = vrot.lane.b32.xlu0 %v476, 96
    %v1566 = vpop.permute.xlu0 %1565
    %v1567 = vsel %vm624, %v1536, 0
    %v1569 = vsel %vm624, %v1538, 0
    %v1571 = vsel %vm624, %v1540, 0
    %v1573 = vsel %vm624, %v1542, 0
    %v1575 = vsel %vm624, %v1544, 0
    %v1577 = vsel %vm624, %v1546, 0
    %v1579 = vsel %vm624, %v1548, 0
    %v1581 = vsel %vm624, %v1550, 0
    %v1583 = vsel %vm624, %v1552, 0
    %v1585 = vsel %vm624, %v1554, 0
    %v1587 = vsel %vm624, %v1556, 0
    %v1589 = vsel %vm624, %v1558, 0
    %v1591 = vsel %vm624, %v1560, 0
    %v1593 = vsel %vm624, %v1562, 0
    %v1595 = vsel %vm624, %v1564, 0
    %v1597 = vsel %vm624, %v1566, 0
    %1599 = vmatprep.subr.mxu0 0.0
    %1600 = vmatpush1.xpose.msra.mxu0 %v1583
    %1601 = vmatprep.subr.mxu0 0.0
    %1602 = vmatpush1.xpose.msra.mxu0 %v1585
    %1603 = vmatprep.subr.mxu0 0.0
    %1604 = vmatpush1.xpose.msra.mxu0 %v1587
    %1605 = vmatprep.subr.mxu0 0.0
    %1606 = vmatpush1.xpose.msra.mxu0 %v1589
    %1607 = vmatprep.subr.mxu0 0.0
    %1608 = vmatpush1.xpose.msra.mxu0 %v1591
    %1609 = vmatprep.subr.mxu0 0.0
    %1610 = vmatpush1.xpose.msra.mxu0 %v1593
    %1611 = vmatprep.subr.mxu0 0.0
    %1612 = vmatpush1.xpose.msra.mxu0 %v1595
    %1613 = vmatprep.subr.mxu0 0.0
    %1614 = vmatpush1.xpose.msra.mxu0 %v1597
    %1615 = vmatprep.subr.mxu0 0.0
    %1616 = vmatpush1.xpose.msra.mxu0 0.0
    %1617 = vmatprep.subr.mxu0 0.0
    %1618 = vmatpush1.xpose.msra.mxu0 0.0
    %1619 = vmatprep.subr.mxu0 0.0
    %1620 = vmatpush1.xpose.msra.mxu0 0.0
    %1621 = vmatprep.subr.mxu0 0.0
    %1622 = vmatpush1.xpose.msra.mxu0 0.0
    %1623 = vmatprep.subr.mxu0 0.0
    %1624 = vmatpush1.xpose.msra.mxu0 0.0
    %1625 = vmatprep.subr.mxu0 0.0
    %1626 = vmatpush1.xpose.msra.mxu0 0.0
    %1627 = vmatprep.subr.mxu0 0.0
    %1628 = vmatpush1.xpose.msra.mxu0 0.0
    %1629 = vmatprep.subr.mxu0 0.0
    %1630 = vmatpush1.xpose.msra.mxu0 0.0
    %1631 = vmatprep.subr.mxu0 0.0
    %1632 = vmatpush1.xpose.msra.mxu0 0.0
    %1633 = vmatprep.subr.mxu0 0.0
    %1634 = vmatpush1.xpose.msra.mxu0 0.0
    %1635 = vmatprep.subr.mxu0 0.0
    %1636 = vmatpush1.xpose.msra.mxu0 0.0
    %1637 = vmatprep.subr.mxu0 0.0
    %1638 = vmatpush1.xpose.msra.mxu0 0.0
    %1639 = vmatprep.subr.mxu0 0.0
    %1640 = vmatpush1.xpose.msra.mxu0 0.0
    %1641 = vmatprep.subr.mxu0 0.0
    %1642 = vmatpush1.xpose.msra.mxu0 0.0
    %1643 = vmatprep.subr.mxu0 0.0
    %1644 = vmatpush1.xpose.msra.mxu0 0.0
    %1645 = vmatprep.subr.mxu0 0.0
    %1646 = vmatpush1.xpose.msra.mxu0 0.0
    %1647 = vmatprep.subr.mxu0 0.0
    %1648 = vmatpush1.xpose.msra.mxu0 0.0
    %1649 = vmatprep.subr.mxu0 0.0
    %1650 = vmatpush1.xpose.msra.mxu0 0.0
    %1651 = vmatprep.subr.mxu0 0.0
    %1652 = vmatpush1.xpose.msra.mxu0 0.0
    %1653 = vmatprep.subr.mxu0 0.0
    %1654 = vmatpush1.xpose.msra.mxu0 0.0
    %1655 = vmatprep.subr.mxu0 0.0
    %1656 = vmatpush1.xpose.msra.mxu0 0.0
    %1657 = vmatprep.subr.mxu0 0.0
    %1658 = vmatpush1.xpose.msra.mxu0 0.0
    %1659 = vmatprep.subr.mxu0 0.0
    %1660 = vmatpush1.xpose.msra.mxu0 0.0
    %1661 = vmatprep.subr.mxu0 0.0
    %1662 = vmatpush1.xpose.msra.mxu0 0.0
    %1663 = vmatprep.mubr.f32.mxu0 0.0
    %1664 = vmatmul.mubr.f32.gmra.mrb[0].mxu0 %v1567
    %v1665 = vpop.f32.mrb[0].mxu0
    %v1666 = vadd.f32 0.0, %v1665
    %v1667 = vpop.f32.mrb[0].mxu0
    %1668 = vmatprep.mubr.f32.mxu0 0.0
    %1669 = vmatmul.mubr.f32.gmra.mrb[0].mxu0 %v1569
    %v1670 = vpop.f32.mrb[0].mxu0
    %v1671 = vadd.f32 0.0, %v1670
    %v1672 = vpop.f32.mrb[0].mxu0
    %1673 = vmatprep.mubr.f32.mxu0 0.0
    %1674 = vmatmul.mubr.f32.gmra.mrb[0].mxu0 %v1571
    %v1675 = vpop.f32.mrb[0].mxu0
    %v1676 = vadd.f32 0.0, %v1675
    %v1677 = vpop.f32.mrb[0].mxu0
    %1678 = vmatprep.mubr.f32.mxu0 0.0
    %1679 = vmatmul.mubr.f32.gmra.mrb[0].mxu0 %v1573
    %v1680 = vpop.f32.mrb[0].mxu0
    %v1681 = vadd.f32 0.0, %v1680
    %v1682 = vpop.f32.mrb[0].mxu0
    %1683 = vmatprep.mubr.f32.mxu0 0.0
    %1684 = vmatmul.mubr.f32.gmra.mrb[0].mxu0 %v1575
    %v1685 = vpop.f32.mrb[0].mxu0
    %v1686 = vadd.f32 0.0, %v1685
    %v1687 = vpop.f32.mrb[0].mxu0
    %1688 = vmatprep.mubr.f32.mxu0 0.0
    %1689 = vmatmul.mubr.f32.gmra.mrb[0].mxu0 %v1577
    %v1690 = vpop.f32.mrb[0].mxu0
    %v1691 = vadd.f32 0.0, %v1690
    %v1692 = vpop.f32.mrb[0].mxu0
    %1693 = vmatprep.mubr.f32.mxu0 0.0
    %1694 = vmatmul.mubr.f32.gmra.mrb[0].mxu0 %v1579
    %v1695 = vpop.f32.mrb[0].mxu0
    %v1696 = vadd.f32 0.0, %v1695
    %v1697 = vpop.f32.mrb[0].mxu0
    %1698 = vmatprep.mubr.f32.mxu0 0.0
    %1699 = vmatmul.mubr.f32.gmra.mrb[0].mxu0 %v1581
    %v1700 = vpop.f32.mrb[0].mxu0
    %v1701 = vadd.f32 0.0, %v1700
    %v1702 = vpop.f32.mrb[0].mxu0
    %1703 = vdwg.mxu0
    %v1704 = vsel %vm931, %v1497, -inf
    %1705 = vmax.xlane.f32.xlu0 %v1704
    %v1706 = vpop.xlane.xlu0 %1705
    %v1707 = vsel %vm931, %v1502, -inf
    %1708 = vmax.xlane.f32.xlu0 %v1707
    %v1709 = vpop.xlane.xlu0 %1708
    %v1710 = vsel %vm931, %v1507, -inf
    %1711 = vmax.xlane.f32.xlu0 %v1710
    %v1712 = vpop.xlane.xlu0 %1711
    %v1713 = vsel %vm931, %v1512, -inf
    %1714 = vmax.xlane.f32.xlu0 %v1713
    %v1715 = vpop.xlane.xlu0 %1714
    %v1716 = vsel %vm931, %v1517, -inf
    %1717 = vmax.xlane.f32.xlu0 %v1716
    %v1718 = vpop.xlane.xlu0 %1717
    %v1719 = vsel %vm931, %v1522, -inf
    %1720 = vmax.xlane.f32.xlu0 %v1719
    %v1721 = vpop.xlane.xlu0 %1720
    %v1722 = vsel %vm931, %v1527, -inf
    %1723 = vmax.xlane.f32.xlu0 %v1722
    %v1724 = vpop.xlane.xlu0 %1723
    %v1725 = vsel %vm931, %v1532, -inf
    %1726 = vmax.xlane.f32.xlu0 %v1725
    %v1727 = vpop.xlane.xlu0 %1726
    %v1728 = vsel %vm931, %v1666, -inf
    %1729 = vmax.xlane.f32.xlu0 %v1728
    %v1730 = vpop.xlane.xlu0 %1729
    %v1731 = vsel %vm931, %v1671, -inf
    %1732 = vmax.xlane.f32.xlu0 %v1731
    %v1733 = vpop.xlane.xlu0 %1732
    %v1734 = vsel %vm931, %v1676, -inf
    %1735 = vmax.xlane.f32.xlu0 %v1734
    %v1736 = vpop.xlane.xlu0 %1735
    %v1737 = vsel %vm931, %v1681, -inf
    %1738 = vmax.xlane.f32.xlu0 %v1737
    %v1739 = vpop.xlane.xlu0 %1738
    %v1740 = vsel %vm931, %v1686, -inf
    %1741 = vmax.xlane.f32.xlu0 %v1740
    %v1742 = vpop.xlane.xlu0 %1741
    %v1743 = vsel %vm931, %v1691, -inf
    %1744 = vmax.xlane.f32.xlu0 %v1743
    %v1745 = vpop.xlane.xlu0 %1744
    %v1746 = vsel %vm931, %v1696, -inf
    %1747 = vmax.xlane.f32.xlu0 %v1746
    %v1748 = vpop.xlane.xlu0 %1747
    %v1749 = vsel %vm931, %v1701, -inf
    %1750 = vmax.xlane.f32.xlu0 %v1749
    %v1751 = vpop.xlane.xlu0 %1750
    %v1752 = vsub.f32 %v1497, %v1706
    %v1753 = vsub.f32 %v1502, %v1709
    %v1754 = vsub.f32 %v1507, %v1712
    %v1755 = vsub.f32 %v1512, %v1715
    %v1756 = vsub.f32 %v1517, %v1718
    %v1757 = vsub.f32 %v1522, %v1721
    %v1758 = vsub.f32 %v1527, %v1724
    %v1759 = vsub.f32 %v1532, %v1727
    %v1760 = vsub.f32 %v1666, %v1730
    %v1761 = vsub.f32 %v1671, %v1733
    %v1762 = vsub.f32 %v1676, %v1736
    %v1763 = vsub.f32 %v1681, %v1739
    %v1764 = vsub.f32 %v1686, %v1742
    %v1765 = vsub.f32 %v1691, %v1745
    %v1766 = vsub.f32 %v1696, %v1748
    %v1767 = vsub.f32 %v1701, %v1751
    %v1768 = vmul.f32 %v1752, 1.442695
    %v1769 = vpow.pop %v1768
    %v1770 = vmul.f32 %v1753, 1.442695
    %v1771 = vpow.pop %v1770
    %v1772 = vmul.f32 %v1754, 1.442695
    %v1773 = vpow.pop %v1772
    %v1774 = vmul.f32 %v1755, 1.442695
    %v1775 = vpow.pop %v1774
    %v1776 = vmul.f32 %v1756, 1.442695
    %v1777 = vpow.pop %v1776
    %v1778 = vmul.f32 %v1757, 1.442695
    %v1779 = vpow.pop %v1778
    %v1780 = vmul.f32 %v1758, 1.442695
    %v1781 = vpow.pop %v1780
    %v1782 = vmul.f32 %v1759, 1.442695
    %v1783 = vpow.pop %v1782
    %v1784 = vmul.f32 %v1760, 1.442695
    %v1785 = vpow.pop %v1784
    %v1786 = vmul.f32 %v1761, 1.442695
    %v1787 = vpow.pop %v1786
    %v1788 = vmul.f32 %v1762, 1.442695
    %v1789 = vpow.pop %v1788
    %v1790 = vmul.f32 %v1763, 1.442695
    %v1791 = vpow.pop %v1790
    %v1792 = vmul.f32 %v1764, 1.442695
    %v1793 = vpow.pop %v1792
    %v1794 = vmul.f32 %v1765, 1.442695
    %v1795 = vpow.pop %v1794
    %v1796 = vmul.f32 %v1766, 1.442695
    %v1797 = vpow.pop %v1796
    %v1798 = vmul.f32 %v1767, 1.442695
    %v1799 = vpow.pop %v1798
    %v1800 = vsel %vm931, %v1769, 0.0
    %1801 = vadd.xlane.f32.xlu0 %v1800
    %v1802 = vpop.xlane.xlu0 %1801
    %v1803 = vsel %vm931, %v1771, 0.0
    %1804 = vadd.xlane.f32.xlu0 %v1803
    %v1805 = vpop.xlane.xlu0 %1804
    %v1806 = vsel %vm931, %v1773, 0.0
    %1807 = vadd.xlane.f32.xlu0 %v1806
    %v1808 = vpop.xlane.xlu0 %1807
    %v1809 = vsel %vm931, %v1775, 0.0
    %1810 = vadd.xlane.f32.xlu0 %v1809
    %v1811 = vpop.xlane.xlu0 %1810
    %v1812 = vsel %vm931, %v1777, 0.0
    %1813 = vadd.xlane.f32.xlu0 %v1812
    %v1814 = vpop.xlane.xlu0 %1813
    %v1815 = vsel %vm931, %v1779, 0.0
    %1816 = vadd.xlane.f32.xlu0 %v1815
    %v1817 = vpop.xlane.xlu0 %1816
    %v1818 = vsel %vm931, %v1781, 0.0
    %1819 = vadd.xlane.f32.xlu0 %v1818
    %v1820 = vpop.xlane.xlu0 %1819
    %v1821 = vsel %vm931, %v1783, 0.0
    %1822 = vadd.xlane.f32.xlu0 %v1821
    %v1823 = vpop.xlane.xlu0 %1822
    %v1824 = vsel %vm931, %v1785, 0.0
    %1825 = vadd.xlane.f32.xlu0 %v1824
    %v1826 = vpop.xlane.xlu0 %1825
    %v1827 = vsel %vm931, %v1787, 0.0
    %1828 = vadd.xlane.f32.xlu0 %v1827
    %v1829 = vpop.xlane.xlu0 %1828
    %v1830 = vsel %vm931, %v1789, 0.0
    %1831 = vadd.xlane.f32.xlu0 %v1830
    %v1832 = vpop.xlane.xlu0 %1831
    %v1833 = vsel %vm931, %v1791, 0.0
    %1834 = vadd.xlane.f32.xlu0 %v1833
    %v1835 = vpop.xlane.xlu0 %1834
    %v1836 = vsel %vm931, %v1793, 0.0
    %1837 = vadd.xlane.f32.xlu0 %v1836
    %v1838 = vpop.xlane.xlu0 %1837
    %v1839 = vsel %vm931, %v1795, 0.0
    %1840 = vadd.xlane.f32.xlu0 %v1839
    %v1841 = vpop.xlane.xlu0 %1840
    %v1842 = vsel %vm931, %v1797, 0.0
    %1843 = vadd.xlane.f32.xlu0 %v1842
    %v1844 = vpop.xlane.xlu0 %1843
    %v1845 = vsel %vm931, %v1799, 0.0
    %1846 = vadd.xlane.f32.xlu0 %v1845
    %v1847 = vpop.xlane.xlu0 %1846
    %v1848 = vrcp.pop %v1802
    %v1849 = vmul.f32 %v1769, %v1848
    %v1850 = vrcp.pop %v1805
    %v1851 = vmul.f32 %v1771, %v1850
    %v1852 = vrcp.pop %v1808
    %v1853 = vmul.f32 %v1773, %v1852
    %v1854 = vrcp.pop %v1811
    %v1855 = vmul.f32 %v1775, %v1854
    %v1856 = vrcp.pop %v1814
    %v1857 = vmul.f32 %v1777, %v1856
    %v1858 = vrcp.pop %v1817
    %v1859 = vmul.f32 %v1779, %v1858
    %v1860 = vrcp.pop %v1820
    %v1861 = vmul.f32 %v1781, %v1860
    %v1862 = vrcp.pop %v1823
    %v1863 = vmul.f32 %v1783, %v1862
    %v1864 = vrcp.pop %v1826
    %v1865 = vmul.f32 %v1785, %v1864
    %v1866 = vrcp.pop %v1829
    %v1867 = vmul.f32 %v1787, %v1866
    %v1868 = vrcp.pop %v1832
    %v1869 = vmul.f32 %v1789, %v1868
    %v1870 = vrcp.pop %v1835
    %v1871 = vmul.f32 %v1791, %v1870
    %v1872 = vrcp.pop %v1838
    %v1873 = vmul.f32 %v1793, %v1872
    %v1874 = vrcp.pop %v1841
    %v1875 = vmul.f32 %v1795, %v1874
    %v1876 = vrcp.pop %v1844
    %v1877 = vmul.f32 %v1797, %v1876
    %v1878 = vrcp.pop %v1847
    %v1879 = vmul.f32 %v1799, %v1878
    %1888 = vrot.lane.b32.xlu0 %v546, 96
    %v1889 = vpop.permute.xlu0 %1888
    %1890 = vrot.lane.b32.xlu0 %v551, 96
    %v1891 = vpop.permute.xlu0 %1890
    %1892 = vrot.lane.b32.xlu0 %v556, 96
    %v1893 = vpop.permute.xlu0 %1892
    %1894 = vrot.lane.b32.xlu0 %v561, 96
    %v1895 = vpop.permute.xlu0 %1894
    %1896 = vrot.lane.b32.xlu0 %v566, 96
    %v1897 = vpop.permute.xlu0 %1896
    %1898 = vrot.lane.b32.xlu0 %v571, 96
    %v1899 = vpop.permute.xlu0 %1898
    %1900 = vrot.lane.b32.xlu0 %v576, 96
    %v1901 = vpop.permute.xlu0 %1900
    %1902 = vrot.lane.b32.xlu0 %v581, 96
    %v1903 = vpop.permute.xlu0 %1902
    %v1913 = vsel %vm931, %v1849, 0
    %v1916 = vsel %vm931, %v1851, 0
    %v1919 = vsel %vm931, %v1853, 0
    %v1922 = vsel %vm931, %v1855, 0
    %v1925 = vsel %vm931, %v1857, 0
    %v1928 = vsel %vm931, %v1859, 0
    %v1931 = vsel %vm931, %v1861, 0
    %v1934 = vsel %vm931, %v1863, 0
    %1936 = vmatprep.subr.mxu0 0.0
    %1937 = vmatpush1.msra.mxu0 %v1889
    %1938 = vmatprep.subr.mxu0 0.0
    %1939 = vmatpush1.msra.mxu0 %v1891
    %1940 = vmatprep.subr.mxu0 0.0
    %1941 = vmatpush1.msra.mxu0 %v1893
    %1942 = vmatprep.subr.mxu0 0.0
    %1943 = vmatpush1.msra.mxu0 %v1895
    %1944 = vmatprep.subr.mxu0 0.0
    %1945 = vmatpush1.msra.mxu0 %v1897
    %1946 = vmatprep.subr.mxu0 0.0
    %1947 = vmatpush1.msra.mxu0 %v1899
    %1948 = vmatprep.subr.mxu0 0.0
    %1949 = vmatpush1.msra.mxu0 %v1901
    %1950 = vmatprep.subr.mxu0 0.0
    %1951 = vmatpush1.msra.mxu0 %v1903
    %1952 = vmatprep.subr.mxu0 0.0
    %1953 = vmatpush1.msra.mxu0 0.0
    %1954 = vmatprep.subr.mxu0 0.0
    %1955 = vmatpush1.msra.mxu0 0.0
    %1956 = vmatprep.subr.mxu0 0.0
    %1957 = vmatpush1.msra.mxu0 0.0
    %1958 = vmatprep.subr.mxu0 0.0
    %1959 = vmatpush1.msra.mxu0 0.0
    %1960 = vmatprep.subr.mxu0 0.0
    %1961 = vmatpush1.msra.mxu0 0.0
    %1962 = vmatprep.subr.mxu0 0.0
    %1963 = vmatpush1.msra.mxu0 0.0
    %1964 = vmatprep.subr.mxu0 0.0
    %1965 = vmatpush1.msra.mxu0 0.0
    %1966 = vmatprep.subr.mxu0 0.0
    %1967 = vmatpush1.msra.mxu0 0.0
    %1968 = vmatprep.subr.mxu0 0.0
    %1969 = vmatpush1.msra.mxu0 0.0
    %1970 = vmatprep.subr.mxu0 0.0
    %1971 = vmatpush1.msra.mxu0 0.0
    %1972 = vmatprep.subr.mxu0 0.0
    %1973 = vmatpush1.msra.mxu0 0.0
    %1974 = vmatprep.subr.mxu0 0.0
    %1975 = vmatpush1.msra.mxu0 0.0
    %1976 = vmatprep.subr.mxu0 0.0
    %1977 = vmatpush1.msra.mxu0 0.0
    %1978 = vmatprep.subr.mxu0 0.0
    %1979 = vmatpush1.msra.mxu0 0.0
    %1980 = vmatprep.subr.mxu0 0.0
    %1981 = vmatpush1.msra.mxu0 0.0
    %1982 = vmatprep.subr.mxu0 0.0
    %1983 = vmatpush1.msra.mxu0 0.0
    %1984 = vmatprep.subr.mxu0 0.0
    %1985 = vmatpush1.msra.mxu0 0.0
    %1986 = vmatprep.subr.mxu0 0.0
    %1987 = vmatpush1.msra.mxu0 0.0
    %1988 = vmatprep.subr.mxu0 0.0
    %1989 = vmatpush1.msra.mxu0 0.0
    %1990 = vmatprep.subr.mxu0 0.0
    %1991 = vmatpush1.msra.mxu0 0.0
    %1992 = vmatprep.subr.mxu0 0.0
    %1993 = vmatpush1.msra.mxu0 0.0
    %1994 = vmatprep.subr.mxu0 0.0
    %1995 = vmatpush1.msra.mxu0 0.0
    %1996 = vmatprep.subr.mxu0 0.0
    %1997 = vmatpush1.msra.mxu0 0.0
    %1998 = vmatprep.subr.mxu0 0.0
    %1999 = vmatpush1.msra.mxu0 0.0
    %2000 = vmatprep.mubr.f32.mxu0 0.0
    %2001 = vmatmul.mubr.f32.gmra.mrb[0].mxu0 %v1913
    %v2002 = vpop.f32.mrb[0].mxu0
    %v2003 = vadd.f32 0.0, %v2002
    %v2004 = vpop.f32.mrb[0].mxu0
    %2005 = vmatprep.mubr.f32.mxu0 0.0
    %2006 = vmatmul.mubr.f32.gmra.mrb[0].mxu0 %v1916
    %v2007 = vpop.f32.mrb[0].mxu0
    %v2008 = vadd.f32 0.0, %v2007
    %v2009 = vpop.f32.mrb[0].mxu0
    %2010 = vmatprep.mubr.f32.mxu0 0.0
    %2011 = vmatmul.mubr.f32.gmra.mrb[0].mxu0 %v1919
    %v2012 = vpop.f32.mrb[0].mxu0
    %v2013 = vadd.f32 0.0, %v2012
    %v2014 = vpop.f32.mrb[0].mxu0
    %2015 = vmatprep.mubr.f32.mxu0 0.0
    %2016 = vmatmul.mubr.f32.gmra.mrb[0].mxu0 %v1922
    %v2017 = vpop.f32.mrb[0].mxu0
    %v2018 = vadd.f32 0.0, %v2017
    %v2019 = vpop.f32.mrb[0].mxu0
    %2020 = vmatprep.mubr.f32.mxu0 0.0
    %2021 = vmatmul.mubr.f32.gmra.mrb[0].mxu0 %v1925
    %v2022 = vpop.f32.mrb[0].mxu0
    %v2023 = vadd.f32 0.0, %v2022
    %v2024 = vpop.f32.mrb[0].mxu0
    %2025 = vmatprep.mubr.f32.mxu0 0.0
    %2026 = vmatmul.mubr.f32.gmra.mrb[0].mxu0 %v1928
    %v2027 = vpop.f32.mrb[0].mxu0
    %v2028 = vadd.f32 0.0, %v2027
    %v2029 = vpop.f32.mrb[0].mxu0
    %2030 = vmatprep.mubr.f32.mxu0 0.0
    %2031 = vmatmul.mubr.f32.gmra.mrb[0].mxu0 %v1931
    %v2032 = vpop.f32.mrb[0].mxu0
    %v2033 = vadd.f32 0.0, %v2032
    %v2034 = vpop.f32.mrb[0].mxu0
    %2035 = vmatprep.mubr.f32.mxu0 0.0
    %2036 = vmatmul.mubr.f32.gmra.mrb[0].mxu0 %v1934
    %v2037 = vpop.f32.mrb[0].mxu0
    %v2038 = vadd.f32 0.0, %v2037
    %v2039 = vpop.f32.mrb[0].mxu0
    %2040 = vdwg.mxu0
    %2049 = vrot.lane.b32.xlu0 %v586, 96
    %v2050 = vpop.permute.xlu0 %2049
    %2051 = vrot.lane.b32.xlu0 %v591, 96
    %v2052 = vpop.permute.xlu0 %2051
    %2053 = vrot.lane.b32.xlu0 %v596, 96
    %v2054 = vpop.permute.xlu0 %2053
    %2055 = vrot.lane.b32.xlu0 %v601, 96
    %v2056 = vpop.permute.xlu0 %2055
    %2057 = vrot.lane.b32.xlu0 %v606, 96
    %v2058 = vpop.permute.xlu0 %2057
    %2059 = vrot.lane.b32.xlu0 %v611, 96
    %v2060 = vpop.permute.xlu0 %2059
    %2061 = vrot.lane.b32.xlu0 %v616, 96
    %v2062 = vpop.permute.xlu0 %2061
    %2063 = vrot.lane.b32.xlu0 %v621, 96
    %v2064 = vpop.permute.xlu0 %2063
    %v2074 = vsel %vm931, %v1865, 0
    %v2077 = vsel %vm931, %v1867, 0
    %v2080 = vsel %vm931, %v1869, 0
    %v2083 = vsel %vm931, %v1871, 0
    %v2086 = vsel %vm931, %v1873, 0
    %v2089 = vsel %vm931, %v1875, 0
    %v2092 = vsel %vm931, %v1877, 0
    %v2095 = vsel %vm931, %v1879, 0
    %2097 = vmatprep.subr.mxu0 0.0
    %2098 = vmatpush1.msra.mxu0 %v2050
    %2099 = vmatprep.subr.mxu0 0.0
    %2100 = vmatpush1.msra.mxu0 %v2052
    %2101 = vmatprep.subr.mxu0 0.0
    %2102 = vmatpush1.msra.mxu0 %v2054
    %2103 = vmatprep.subr.mxu0 0.0
    %2104 = vmatpush1.msra.mxu0 %v2056
    %2105 = vmatprep.subr.mxu0 0.0
    %2106 = vmatpush1.msra.mxu0 %v2058
    %2107 = vmatprep.subr.mxu0 0.0
    %2108 = vmatpush1.msra.mxu0 %v2060
    %2109 = vmatprep.subr.mxu0 0.0
    %2110 = vmatpush1.msra.mxu0 %v2062
    %2111 = vmatprep.subr.mxu0 0.0
    %2112 = vmatpush1.msra.mxu0 %v2064
    %2113 = vmatprep.subr.mxu0 0.0
    %2114 = vmatpush1.msra.mxu0 0.0
    %2115 = vmatprep.subr.mxu0 0.0
    %2116 = vmatpush1.msra.mxu0 0.0
    %2117 = vmatprep.subr.mxu0 0.0
    %2118 = vmatpush1.msra.mxu0 0.0
    %2119 = vmatprep.subr.mxu0 0.0
    %2120 = vmatpush1.msra.mxu0 0.0
    %2121 = vmatprep.subr.mxu0 0.0
    %2122 = vmatpush1.msra.mxu0 0.0
    %2123 = vmatprep.subr.mxu0 0.0
    %2124 = vmatpush1.msra.mxu0 0.0
    %2125 = vmatprep.subr.mxu0 0.0
    %2126 = vmatpush1.msra.mxu0 0.0
    %2127 = vmatprep.subr.mxu0 0.0
    %2128 = vmatpush1.msra.mxu0 0.0
    %2129 = vmatprep.subr.mxu0 0.0
    %2130 = vmatpush1.msra.mxu0 0.0
    %2131 = vmatprep.subr.mxu0 0.0
    %2132 = vmatpush1.msra.mxu0 0.0
    %2133 = vmatprep.subr.mxu0 0.0
    %2134 = vmatpush1.msra.mxu0 0.0
    %2135 = vmatprep.subr.mxu0 0.0
    %2136 = vmatpush1.msra.mxu0 0.0
    %2137 = vmatprep.subr.mxu0 0.0
    %2138 = vmatpush1.msra.mxu0 0.0
    %2139 = vmatprep.subr.mxu0 0.0
    %2140 = vmatpush1.msra.mxu0 0.0
    %2141 = vmatprep.subr.mxu0 0.0
    %2142 = vmatpush1.msra.mxu0 0.0
    %2143 = vmatprep.subr.mxu0 0.0
    %2144 = vmatpush1.msra.mxu0 0.0
    %2145 = vmatprep.subr.mxu0 0.0
    %2146 = vmatpush1.msra.mxu0 0.0
    %2147 = vmatprep.subr.mxu0 0.0
    %2148 = vmatpush1.msra.mxu0 0.0
    %2149 = vmatprep.subr.mxu0 0.0
    %2150 = vmatpush1.msra.mxu0 0.0
    %2151 = vmatprep.subr.mxu0 0.0
    %2152 = vmatpush1.msra.mxu0 0.0
    %2153 = vmatprep.subr.mxu0 0.0
    %2154 = vmatpush1.msra.mxu0 0.0
    %2155 = vmatprep.subr.mxu0 0.0
    %2156 = vmatpush1.msra.mxu0 0.0
    %2157 = vmatprep.subr.mxu0 0.0
    %2158 = vmatpush1.msra.mxu0 0.0
    %2159 = vmatprep.subr.mxu0 0.0
    %2160 = vmatpush1.msra.mxu0 0.0
    %2161 = vmatprep.mubr.f32.mxu0 0.0
    %2162 = vmatmul.mubr.f32.gmra.mrb[0].mxu0 %v2074
    %v2163 = vpop.f32.mrb[0].mxu0
    %v2164 = vadd.f32 0.0, %v2163
    %v2165 = vpop.f32.mrb[0].mxu0
    %2166 = vmatprep.mubr.f32.mxu0 0.0
    %2167 = vmatmul.mubr.f32.gmra.mrb[0].mxu0 %v2077
    %v2168 = vpop.f32.mrb[0].mxu0
    %v2169 = vadd.f32 0.0, %v2168
    %v2170 = vpop.f32.mrb[0].mxu0
    %2171 = vmatprep.mubr.f32.mxu0 0.0
    %2172 = vmatmul.mubr.f32.gmra.mrb[0].mxu0 %v2080
    %v2173 = vpop.f32.mrb[0].mxu0
    %v2174 = vadd.f32 0.0, %v2173
    %v2175 = vpop.f32.mrb[0].mxu0
    %2176 = vmatprep.mubr.f32.mxu0 0.0
    %2177 = vmatmul.mubr.f32.gmra.mrb[0].mxu0 %v2083
    %v2178 = vpop.f32.mrb[0].mxu0
    %v2179 = vadd.f32 0.0, %v2178
    %v2180 = vpop.f32.mrb[0].mxu0
    %2181 = vmatprep.mubr.f32.mxu0 0.0
    %2182 = vmatmul.mubr.f32.gmra.mrb[0].mxu0 %v2086
    %v2183 = vpop.f32.mrb[0].mxu0
    %v2184 = vadd.f32 0.0, %v2183
    %v2185 = vpop.f32.mrb[0].mxu0
    %2186 = vmatprep.mubr.f32.mxu0 0.0
    %2187 = vmatmul.mubr.f32.gmra.mrb[0].mxu0 %v2089
    %v2188 = vpop.f32.mrb[0].mxu0
    %v2189 = vadd.f32 0.0, %v2188
    %v2190 = vpop.f32.mrb[0].mxu0
    %2191 = vmatprep.mubr.f32.mxu0 0.0
    %2192 = vmatmul.mubr.f32.gmra.mrb[0].mxu0 %v2092
    %v2193 = vpop.f32.mrb[0].mxu0
    %v2194 = vadd.f32 0.0, %v2193
    %v2195 = vpop.f32.mrb[0].mxu0
    %2196 = vmatprep.mubr.f32.mxu0 0.0
    %2197 = vmatmul.mubr.f32.gmra.mrb[0].mxu0 %v2095
    %v2198 = vpop.f32.mrb[0].mxu0
    %v2199 = vadd.f32 0.0, %v2198
    %v2200 = vpop.f32.mrb[0].mxu0
    %2201 = vdwg.mxu0
    %v2203 = vsel %vm624, %v2003, 0
    %v2206 = vsel %vm624, %v2008, 0
    %v2209 = vsel %vm624, %v2013, 0
    %v2212 = vsel %vm624, %v2018, 0
    %v2215 = vsel %vm624, %v2023, 0
    %v2218 = vsel %vm624, %v2028, 0
    %v2221 = vsel %vm624, %v2033, 0
    %v2224 = vsel %vm624, %v2038, 0
    %v2227 = vsel %vm624, %v2164, 0
    %v2230 = vsel %vm624, %v2169, 0
    %v2233 = vsel %vm624, %v2174, 0
    %v2236 = vsel %vm624, %v2179, 0
    %v2239 = vsel %vm624, %v2184, 0
    %v2242 = vsel %vm624, %v2189, 0
    %v2245 = vsel %vm624, %v2194, 0
    %v2248 = vsel %vm624, %v2199, 0
    %2250 = vmatprep.subr.mxu0 0.0
    %2251 = vmatpush1.msra.mxu0 %v160
    %2252 = vmatprep.subr.mxu0 0.0
    %2253 = vmatpush1.msra.mxu0 %v161
    %2254 = vmatprep.subr.mxu0 0.0
    %2255 = vmatpush1.msra.mxu0 %v162
    %2256 = vmatprep.subr.mxu0 0.0
    %2257 = vmatpush1.msra.mxu0 %v163
    %2258 = vmatprep.subr.mxu0 0.0
    %2259 = vmatpush1.msra.mxu0 0.0
    %2260 = vmatprep.subr.mxu0 0.0
    %2261 = vmatpush1.msra.mxu0 0.0
    %2262 = vmatprep.subr.mxu0 0.0
    %2263 = vmatpush1.msra.mxu0 0.0
    %2264 = vmatprep.subr.mxu0 0.0
    %2265 = vmatpush1.msra.mxu0 0.0
    %2266 = vmatprep.subr.mxu0 0.0
    %2267 = vmatpush1.msra.mxu0 0.0
    %2268 = vmatprep.subr.mxu0 0.0
    %2269 = vmatpush1.msra.mxu0 0.0
    %2270 = vmatprep.subr.mxu0 0.0
    %2271 = vmatpush1.msra.mxu0 0.0
    %2272 = vmatprep.subr.mxu0 0.0
    %2273 = vmatpush1.msra.mxu0 0.0
    %2274 = vmatprep.subr.mxu0 0.0
    %2275 = vmatpush1.msra.mxu0 0.0
    %2276 = vmatprep.subr.mxu0 0.0
    %2277 = vmatpush1.msra.mxu0 0.0
    %2278 = vmatprep.subr.mxu0 0.0
    %2279 = vmatpush1.msra.mxu0 0.0
    %2280 = vmatprep.subr.mxu0 0.0
    %2281 = vmatpush1.msra.mxu0 0.0
    %2282 = vmatprep.subr.mxu0 0.0
    %2283 = vmatpush1.msra.mxu0 0.0
    %2284 = vmatprep.subr.mxu0 0.0
    %2285 = vmatpush1.msra.mxu0 0.0
    %2286 = vmatprep.subr.mxu0 0.0
    %2287 = vmatpush1.msra.mxu0 0.0
    %2288 = vmatprep.subr.mxu0 0.0
    %2289 = vmatpush1.msra.mxu0 0.0
    %2290 = vmatprep.subr.mxu0 0.0
    %2291 = vmatpush1.msra.mxu0 0.0
    %2292 = vmatprep.subr.mxu0 0.0
    %2293 = vmatpush1.msra.mxu0 0.0
    %2294 = vmatprep.subr.mxu0 0.0
    %2295 = vmatpush1.msra.mxu0 0.0
    %2296 = vmatprep.subr.mxu0 0.0
    %2297 = vmatpush1.msra.mxu0 0.0
    %2298 = vmatprep.subr.mxu0 0.0
    %2299 = vmatpush1.msra.mxu0 0.0
    %2300 = vmatprep.subr.mxu0 0.0
    %2301 = vmatpush1.msra.mxu0 0.0
    %2302 = vmatprep.subr.mxu0 0.0
    %2303 = vmatpush1.msra.mxu0 0.0
    %2304 = vmatprep.subr.mxu0 0.0
    %2305 = vmatpush1.msra.mxu0 0.0
    %2306 = vmatprep.subr.mxu0 0.0
    %2307 = vmatpush1.msra.mxu0 0.0
    %2308 = vmatprep.subr.mxu0 0.0
    %2309 = vmatpush1.msra.mxu0 0.0
    %2310 = vmatprep.subr.mxu0 0.0
    %2311 = vmatpush1.msra.mxu0 0.0
    %2312 = vmatprep.subr.mxu0 0.0
    %2313 = vmatpush1.msra.mxu0 0.0
    %2314 = vmatprep.mubr.f32.mxu0 0.0
    %2315 = vmatmul.mubr.f32.gmra.mrb[0].mxu0 %v2203
    %v2316 = vpop.f32.mrb[0].mxu0
    %v2317 = vadd.f32 0.0, %v2316
    %v2318 = vpop.f32.mrb[0].mxu0
    %2319 = vmatprep.mubr.f32.mxu0 0.0
    %2320 = vmatmul.mubr.f32.gmra.mrb[0].mxu0 %v2206
    %v2321 = vpop.f32.mrb[0].mxu0
    %v2322 = vadd.f32 0.0, %v2321
    %v2323 = vpop.f32.mrb[0].mxu0
    %2324 = vmatprep.mubr.f32.mxu0 0.0
    %2325 = vmatmul.mubr.f32.gmra.mrb[0].mxu0 %v2209
    %v2326 = vpop.f32.mrb[0].mxu0
    %v2327 = vadd.f32 0.0, %v2326
    %v2328 = vpop.f32.mrb[0].mxu0
    %2329 = vmatprep.mubr.f32.mxu0 0.0
    %2330 = vmatmul.mubr.f32.gmra.mrb[0].mxu0 %v2212
    %v2331 = vpop.f32.mrb[0].mxu0
    %v2332 = vadd.f32 0.0, %v2331
    %v2333 = vpop.f32.mrb[0].mxu0
    %2334 = vmatprep.mubr.f32.mxu0 0.0
    %2335 = vmatmul.mubr.f32.gmra.mrb[0].mxu0 %v2215
    %v2336 = vpop.f32.mrb[0].mxu0
    %v2337 = vadd.f32 0.0, %v2336
    %v2338 = vpop.f32.mrb[0].mxu0
    %2339 = vmatprep.mubr.f32.mxu0 0.0
    %2340 = vmatmul.mubr.f32.gmra.mrb[0].mxu0 %v2218
    %v2341 = vpop.f32.mrb[0].mxu0
    %v2342 = vadd.f32 0.0, %v2341
    %v2343 = vpop.f32.mrb[0].mxu0
    %2344 = vmatprep.mubr.f32.mxu0 0.0
    %2345 = vmatmul.mubr.f32.gmra.mrb[0].mxu0 %v2221
    %v2346 = vpop.f32.mrb[0].mxu0
    %v2347 = vadd.f32 0.0, %v2346
    %v2348 = vpop.f32.mrb[0].mxu0
    %2349 = vmatprep.mubr.f32.mxu0 0.0
    %2350 = vmatmul.mubr.f32.gmra.mrb[0].mxu0 %v2224
    %v2351 = vpop.f32.mrb[0].mxu0
    %v2352 = vadd.f32 0.0, %v2351
    %v2353 = vpop.f32.mrb[0].mxu0
    %2354 = vmatprep.mubr.f32.mxu0 0.0
    %2355 = vmatmul.mubr.f32.gmra.mrb[0].mxu0 %v2227
    %v2356 = vpop.f32.mrb[0].mxu0
    %v2357 = vadd.f32 0.0, %v2356
    %v2358 = vpop.f32.mrb[0].mxu0
    %2359 = vmatprep.mubr.f32.mxu0 0.0
    %2360 = vmatmul.mubr.f32.gmra.mrb[0].mxu0 %v2230
    %v2361 = vpop.f32.mrb[0].mxu0
    %v2362 = vadd.f32 0.0, %v2361
    %v2363 = vpop.f32.mrb[0].mxu0
    %2364 = vmatprep.mubr.f32.mxu0 0.0
    %2365 = vmatmul.mubr.f32.gmra.mrb[0].mxu0 %v2233
    %v2366 = vpop.f32.mrb[0].mxu0
    %v2367 = vadd.f32 0.0, %v2366
    %v2368 = vpop.f32.mrb[0].mxu0
    %2369 = vmatprep.mubr.f32.mxu0 0.0
    %2370 = vmatmul.mubr.f32.gmra.mrb[0].mxu0 %v2236
    %v2371 = vpop.f32.mrb[0].mxu0
    %v2372 = vadd.f32 0.0, %v2371
    %v2373 = vpop.f32.mrb[0].mxu0
    %2374 = vmatprep.mubr.f32.mxu0 0.0
    %2375 = vmatmul.mubr.f32.gmra.mrb[0].mxu0 %v2239
    %v2376 = vpop.f32.mrb[0].mxu0
    %v2377 = vadd.f32 0.0, %v2376
    %v2378 = vpop.f32.mrb[0].mxu0
    %2379 = vmatprep.mubr.f32.mxu0 0.0
    %2380 = vmatmul.mubr.f32.gmra.mrb[0].mxu0 %v2242
    %v2381 = vpop.f32.mrb[0].mxu0
    %v2382 = vadd.f32 0.0, %v2381
    %v2383 = vpop.f32.mrb[0].mxu0
    %2384 = vmatprep.mubr.f32.mxu0 0.0
    %2385 = vmatmul.mubr.f32.gmra.mrb[0].mxu0 %v2245
    %v2386 = vpop.f32.mrb[0].mxu0
    %v2387 = vadd.f32 0.0, %v2386
    %v2388 = vpop.f32.mrb[0].mxu0
    %2389 = vmatprep.mubr.f32.mxu0 0.0
    %2390 = vmatmul.mubr.f32.gmra.mrb[0].mxu0 %v2248
    %v2391 = vpop.f32.mrb[0].mxu0
    %v2392 = vadd.f32 0.0, %v2391
    %v2393 = vpop.f32.mrb[0].mxu0
    %2394 = vdwg.mxu0
    %v2396 = vsel %vm624, %v1199, 0
    %v2399 = vsel %vm624, %v1204, 0
    %v2402 = vsel %vm624, %v1209, 0
    %v2405 = vsel %vm624, %v1214, 0
    %v2408 = vsel %vm624, %v1219, 0
    %v2411 = vsel %vm624, %v1224, 0
    %v2414 = vsel %vm624, %v1229, 0
    %v2417 = vsel %vm624, %v1234, 0
    %v2420 = vsel %vm624, %v1328, 0
    %v2423 = vsel %vm624, %v1333, 0
    %v2426 = vsel %vm624, %v1338, 0
    %v2429 = vsel %vm624, %v1343, 0
    %v2432 = vsel %vm624, %v1348, 0
    %v2435 = vsel %vm624, %v1353, 0
    %v2438 = vsel %vm624, %v1358, 0
    %v2441 = vsel %vm624, %v1363, 0
    %2443 = vmatprep.subr.mxu0 0.0
    %2444 = vmatpush1.msra.mxu0 %v156
    %2445 = vmatprep.subr.mxu0 0.0
    %2446 = vmatpush1.msra.mxu0 %v157
    %2447 = vmatprep.subr.mxu0 0.0
    %2448 = vmatpush1.msra.mxu0 %v158
    %2449 = vmatprep.subr.mxu0 0.0
    %2450 = vmatpush1.msra.mxu0 %v159
    %2451 = vmatprep.subr.mxu0 0.0
    %2452 = vmatpush1.msra.mxu0 0.0
    %2453 = vmatprep.subr.mxu0 0.0
    %2454 = vmatpush1.msra.mxu0 0.0
    %2455 = vmatprep.subr.mxu0 0.0
    %2456 = vmatpush1.msra.mxu0 0.0
    %2457 = vmatprep.subr.mxu0 0.0
    %2458 = vmatpush1.msra.mxu0 0.0
    %2459 = vmatprep.subr.mxu0 0.0
    %2460 = vmatpush1.msra.mxu0 0.0
    %2461 = vmatprep.subr.mxu0 0.0
    %2462 = vmatpush1.msra.mxu0 0.0
    %2463 = vmatprep.subr.mxu0 0.0
    %2464 = vmatpush1.msra.mxu0 0.0
    %2465 = vmatprep.subr.mxu0 0.0
    %2466 = vmatpush1.msra.mxu0 0.0
    %2467 = vmatprep.subr.mxu0 0.0
    %2468 = vmatpush1.msra.mxu0 0.0
    %2469 = vmatprep.subr.mxu0 0.0
    %2470 = vmatpush1.msra.mxu0 0.0
    %2471 = vmatprep.subr.mxu0 0.0
    %2472 = vmatpush1.msra.mxu0 0.0
    %2473 = vmatprep.subr.mxu0 0.0
    %2474 = vmatpush1.msra.mxu0 0.0
    %2475 = vmatprep.subr.mxu0 0.0
    %2476 = vmatpush1.msra.mxu0 0.0
    %2477 = vmatprep.subr.mxu0 0.0
    %2478 = vmatpush1.msra.mxu0 0.0
    %2479 = vmatprep.subr.mxu0 0.0
    %2480 = vmatpush1.msra.mxu0 0.0
    %2481 = vmatprep.subr.mxu0 0.0
    %2482 = vmatpush1.msra.mxu0 0.0
    %2483 = vmatprep.subr.mxu0 0.0
    %2484 = vmatpush1.msra.mxu0 0.0
    %2485 = vmatprep.subr.mxu0 0.0
    %2486 = vmatpush1.msra.mxu0 0.0
    %2487 = vmatprep.subr.mxu0 0.0
    %2488 = vmatpush1.msra.mxu0 0.0
    %2489 = vmatprep.subr.mxu0 0.0
    %2490 = vmatpush1.msra.mxu0 0.0
    %2491 = vmatprep.subr.mxu0 0.0
    %2492 = vmatpush1.msra.mxu0 0.0
    %2493 = vmatprep.subr.mxu0 0.0
    %2494 = vmatpush1.msra.mxu0 0.0
    %2495 = vmatprep.subr.mxu0 0.0
    %2496 = vmatpush1.msra.mxu0 0.0
    %2497 = vmatprep.subr.mxu0 0.0
    %2498 = vmatpush1.msra.mxu0 0.0
    %2499 = vmatprep.subr.mxu0 0.0
    %2500 = vmatpush1.msra.mxu0 0.0
    %2501 = vmatprep.subr.mxu0 0.0
    %2502 = vmatpush1.msra.mxu0 0.0
    %2503 = vmatprep.subr.mxu0 0.0
    %2504 = vmatpush1.msra.mxu0 0.0
    %2505 = vmatprep.subr.mxu0 0.0
    %2506 = vmatpush1.msra.mxu0 0.0
    %2507 = vmatprep.mubr.f32.mxu0 0.0
    %2508 = vmatmul.mubr.f32.gmra.mrb[0].mxu0 %v2396
    %v2509 = vpop.f32.mrb[0].mxu0
    %v2510 = vadd.f32 %v2317, %v2509
    %v2511 = vpop.f32.mrb[0].mxu0
    %2512 = vmatprep.mubr.f32.mxu0 0.0
    %2513 = vmatmul.mubr.f32.gmra.mrb[0].mxu0 %v2399
    %v2514 = vpop.f32.mrb[0].mxu0
    %v2515 = vadd.f32 %v2322, %v2514
    %v2516 = vpop.f32.mrb[0].mxu0
    %2517 = vmatprep.mubr.f32.mxu0 0.0
    %2518 = vmatmul.mubr.f32.gmra.mrb[0].mxu0 %v2402
    %v2519 = vpop.f32.mrb[0].mxu0
    %v2520 = vadd.f32 %v2327, %v2519
    %v2521 = vpop.f32.mrb[0].mxu0
    %2522 = vmatprep.mubr.f32.mxu0 0.0
    %2523 = vmatmul.mubr.f32.gmra.mrb[0].mxu0 %v2405
    %v2524 = vpop.f32.mrb[0].mxu0
    %v2525 = vadd.f32 %v2332, %v2524
    %v2526 = vpop.f32.mrb[0].mxu0
    %2527 = vmatprep.mubr.f32.mxu0 0.0
    %2528 = vmatmul.mubr.f32.gmra.mrb[0].mxu0 %v2408
    %v2529 = vpop.f32.mrb[0].mxu0
    %v2530 = vadd.f32 %v2337, %v2529
    %v2531 = vpop.f32.mrb[0].mxu0
    %2532 = vmatprep.mubr.f32.mxu0 0.0
    %2533 = vmatmul.mubr.f32.gmra.mrb[0].mxu0 %v2411
    %v2534 = vpop.f32.mrb[0].mxu0
    %v2535 = vadd.f32 %v2342, %v2534
    %v2536 = vpop.f32.mrb[0].mxu0
    %2537 = vmatprep.mubr.f32.mxu0 0.0
    %2538 = vmatmul.mubr.f32.gmra.mrb[0].mxu0 %v2414
    %v2539 = vpop.f32.mrb[0].mxu0
    %v2540 = vadd.f32 %v2347, %v2539
    %v2541 = vpop.f32.mrb[0].mxu0
    %2542 = vmatprep.mubr.f32.mxu0 0.0
    %2543 = vmatmul.mubr.f32.gmra.mrb[0].mxu0 %v2417
    %v2544 = vpop.f32.mrb[0].mxu0
    %v2545 = vadd.f32 %v2352, %v2544
    %v2546 = vpop.f32.mrb[0].mxu0
    %2547 = vmatprep.mubr.f32.mxu0 0.0
    %2548 = vmatmul.mubr.f32.gmra.mrb[0].mxu0 %v2420
    %v2549 = vpop.f32.mrb[0].mxu0
    %v2550 = vadd.f32 %v2357, %v2549
    %v2551 = vpop.f32.mrb[0].mxu0
    %2552 = vmatprep.mubr.f32.mxu0 0.0
    %2553 = vmatmul.mubr.f32.gmra.mrb[0].mxu0 %v2423
    %v2554 = vpop.f32.mrb[0].mxu0
    %v2555 = vadd.f32 %v2362, %v2554
    %v2556 = vpop.f32.mrb[0].mxu0
    %2557 = vmatprep.mubr.f32.mxu0 0.0
    %2558 = vmatmul.mubr.f32.gmra.mrb[0].mxu0 %v2426
    %v2559 = vpop.f32.mrb[0].mxu0
    %v2560 = vadd.f32 %v2367, %v2559
    %v2561 = vpop.f32.mrb[0].mxu0
    %2562 = vmatprep.mubr.f32.mxu0 0.0
    %2563 = vmatmul.mubr.f32.gmra.mrb[0].mxu0 %v2429
    %v2564 = vpop.f32.mrb[0].mxu0
    %v2565 = vadd.f32 %v2372, %v2564
    %v2566 = vpop.f32.mrb[0].mxu0
    %2567 = vmatprep.mubr.f32.mxu0 0.0
    %2568 = vmatmul.mubr.f32.gmra.mrb[0].mxu0 %v2432
    %v2569 = vpop.f32.mrb[0].mxu0
    %v2570 = vadd.f32 %v2377, %v2569
    %v2571 = vpop.f32.mrb[0].mxu0
    %2572 = vmatprep.mubr.f32.mxu0 0.0
    %2573 = vmatmul.mubr.f32.gmra.mrb[0].mxu0 %v2435
    %v2574 = vpop.f32.mrb[0].mxu0
    %v2575 = vadd.f32 %v2382, %v2574
    %v2576 = vpop.f32.mrb[0].mxu0
    %2577 = vmatprep.mubr.f32.mxu0 0.0
    %2578 = vmatmul.mubr.f32.gmra.mrb[0].mxu0 %v2438
    %v2579 = vpop.f32.mrb[0].mxu0
    %v2580 = vadd.f32 %v2387, %v2579
    %v2581 = vpop.f32.mrb[0].mxu0
    %2582 = vmatprep.mubr.f32.mxu0 0.0
    %2583 = vmatmul.mubr.f32.gmra.mrb[0].mxu0 %v2441
    %v2584 = vpop.f32.mrb[0].mxu0
    %v2585 = vadd.f32 %v2392, %v2584
    %v2586 = vpop.f32.mrb[0].mxu0
    %2587 = vdwg.mxu0
    %2588 = vrot.lane.b32.xlu0 %v318, 64
    %v2589 = vpop.permute.xlu0 %2588
    %2590 = vrot.lane.b32.xlu0 %v319, 64
    %v2591 = vpop.permute.xlu0 %2590
    %2592 = vrot.lane.b32.xlu0 %v320, 64
    %v2593 = vpop.permute.xlu0 %2592
    %2594 = vrot.lane.b32.xlu0 %v321, 64
    %v2595 = vpop.permute.xlu0 %2594
    %2596 = vrot.lane.b32.xlu0 %v322, 64
    %v2597 = vpop.permute.xlu0 %2596
    %2598 = vrot.lane.b32.xlu0 %v323, 64
    %v2599 = vpop.permute.xlu0 %2598
    %2600 = vrot.lane.b32.xlu0 %v324, 64
    %v2601 = vpop.permute.xlu0 %2600
    %2602 = vrot.lane.b32.xlu0 %v325, 64
    %v2603 = vpop.permute.xlu0 %2602
    %2604 = vrot.lane.b32.xlu0 %v401, 64
    %v2605 = vpop.permute.xlu0 %2604
    %2606 = vrot.lane.b32.xlu0 %v406, 64
    %v2607 = vpop.permute.xlu0 %2606
    %2608 = vrot.lane.b32.xlu0 %v411, 64
    %v2609 = vpop.permute.xlu0 %2608
    %2610 = vrot.lane.b32.xlu0 %v416, 64
    %v2611 = vpop.permute.xlu0 %2610
    %2612 = vrot.lane.b32.xlu0 %v421, 64
    %v2613 = vpop.permute.xlu0 %2612
    %2614 = vrot.lane.b32.xlu0 %v426, 64
    %v2615 = vpop.permute.xlu0 %2614
    %2616 = vrot.lane.b32.xlu0 %v431, 64
    %v2617 = vpop.permute.xlu0 %2616
    %2618 = vrot.lane.b32.xlu0 %v436, 64
    %v2619 = vpop.permute.xlu0 %2618
    %v2620 = vsel %vm624, %v2589, 0
    %v2622 = vsel %vm624, %v2591, 0
    %v2624 = vsel %vm624, %v2593, 0
    %v2626 = vsel %vm624, %v2595, 0
    %v2628 = vsel %vm624, %v2597, 0
    %v2630 = vsel %vm624, %v2599, 0
    %v2632 = vsel %vm624, %v2601, 0
    %v2634 = vsel %vm624, %v2603, 0
    %v2636 = vsel %vm624, %v2605, 0
    %v2638 = vsel %vm624, %v2607, 0
    %v2640 = vsel %vm624, %v2609, 0
    %v2642 = vsel %vm624, %v2611, 0
    %v2644 = vsel %vm624, %v2613, 0
    %v2646 = vsel %vm624, %v2615, 0
    %v2648 = vsel %vm624, %v2617, 0
    %v2650 = vsel %vm624, %v2619, 0
    %2652 = vmatprep.subr.mxu0 0.0
    %2653 = vmatpush1.xpose.msra.mxu0 %v2636
    %2654 = vmatprep.subr.mxu0 0.0
    %2655 = vmatpush1.xpose.msra.mxu0 %v2638
    %2656 = vmatprep.subr.mxu0 0.0
    %2657 = vmatpush1.xpose.msra.mxu0 %v2640
    %2658 = vmatprep.subr.mxu0 0.0
    %2659 = vmatpush1.xpose.msra.mxu0 %v2642
    %2660 = vmatprep.subr.mxu0 0.0
    %2661 = vmatpush1.xpose.msra.mxu0 %v2644
    %2662 = vmatprep.subr.mxu0 0.0
    %2663 = vmatpush1.xpose.msra.mxu0 %v2646
    %2664 = vmatprep.subr.mxu0 0.0
    %2665 = vmatpush1.xpose.msra.mxu0 %v2648
    %2666 = vmatprep.subr.mxu0 0.0
    %2667 = vmatpush1.xpose.msra.mxu0 %v2650
    %2668 = vmatprep.subr.mxu0 0.0
    %2669 = vmatpush1.xpose.msra.mxu0 0.0
    %2670 = vmatprep.subr.mxu0 0.0
    %2671 = vmatpush1.xpose.msra.mxu0 0.0
    %2672 = vmatprep.subr.mxu0 0.0
    %2673 = vmatpush1.xpose.msra.mxu0 0.0
    %2674 = vmatprep.subr.mxu0 0.0
    %2675 = vmatpush1.xpose.msra.mxu0 0.0
    %2676 = vmatprep.subr.mxu0 0.0
    %2677 = vmatpush1.xpose.msra.mxu0 0.0
    %2678 = vmatprep.subr.mxu0 0.0
    %2679 = vmatpush1.xpose.msra.mxu0 0.0
    %2680 = vmatprep.subr.mxu0 0.0
    %2681 = vmatpush1.xpose.msra.mxu0 0.0
    %2682 = vmatprep.subr.mxu0 0.0
    %2683 = vmatpush1.xpose.msra.mxu0 0.0
    %2684 = vmatprep.subr.mxu0 0.0
    %2685 = vmatpush1.xpose.msra.mxu0 0.0
    %2686 = vmatprep.subr.mxu0 0.0
    %2687 = vmatpush1.xpose.msra.mxu0 0.0
    %2688 = vmatprep.subr.mxu0 0.0
    %2689 = vmatpush1.xpose.msra.mxu0 0.0
    %2690 = vmatprep.subr.mxu0 0.0
    %2691 = vmatpush1.xpose.msra.mxu0 0.0
    %2692 = vmatprep.subr.mxu0 0.0
    %2693 = vmatpush1.xpose.msra.mxu0 0.0
    %2694 = vmatprep.subr.mxu0 0.0
    %2695 = vmatpush1.xpose.msra.mxu0 0.0
    %2696 = vmatprep.subr.mxu0 0.0
    %2697 = vmatpush1.xpose.msra.mxu0 0.0
    %2698 = vmatprep.subr.mxu0 0.0
    %2699 = vmatpush1.xpose.msra.mxu0 0.0
    %2700 = vmatprep.subr.mxu0 0.0
    %2701 = vmatpush1.xpose.msra.mxu0 0.0
    %2702 = vmatprep.subr.mxu0 0.0
    %2703 = vmatpush1.xpose.msra.mxu0 0.0
    %2704 = vmatprep.subr.mxu0 0.0
    %2705 = vmatpush1.xpose.msra.mxu0 0.0
    %2706 = vmatprep.subr.mxu0 0.0
    %2707 = vmatpush1.xpose.msra.mxu0 0.0
    %2708 = vmatprep.subr.mxu0 0.0
    %2709 = vmatpush1.xpose.msra.mxu0 0.0
    %2710 = vmatprep.subr.mxu0 0.0
    %2711 = vmatpush1.xpose.msra.mxu0 0.0
    %2712 = vmatprep.subr.mxu0 0.0
    %2713 = vmatpush1.xpose.msra.mxu0 0.0
    %2714 = vmatprep.subr.mxu0 0.0
    %2715 = vmatpush1.xpose.msra.mxu0 0.0
    %2716 = vmatprep.mubr.f32.mxu0 0.0
    %2717 = vmatmul.mubr.f32.gmra.mrb[0].mxu0 %v2620
    %v2718 = vpop.f32.mrb[0].mxu0
    %v2719 = vadd.f32 0.0, %v2718
    %v2720 = vpop.f32.mrb[0].mxu0
    %2721 = vmatprep.mubr.f32.mxu0 0.0
    %2722 = vmatmul.mubr.f32.gmra.mrb[0].mxu0 %v2622
    %v2723 = vpop.f32.mrb[0].mxu0
    %v2724 = vadd.f32 0.0, %v2723
    %v2725 = vpop.f32.mrb[0].mxu0
    %2726 = vmatprep.mubr.f32.mxu0 0.0
    %2727 = vmatmul.mubr.f32.gmra.mrb[0].mxu0 %v2624
    %v2728 = vpop.f32.mrb[0].mxu0
    %v2729 = vadd.f32 0.0, %v2728
    %v2730 = vpop.f32.mrb[0].mxu0
    %2731 = vmatprep.mubr.f32.mxu0 0.0
    %2732 = vmatmul.mubr.f32.gmra.mrb[0].mxu0 %v2626
    %v2733 = vpop.f32.mrb[0].mxu0
    %v2734 = vadd.f32 0.0, %v2733
    %v2735 = vpop.f32.mrb[0].mxu0
    %2736 = vmatprep.mubr.f32.mxu0 0.0
    %2737 = vmatmul.mubr.f32.gmra.mrb[0].mxu0 %v2628
    %v2738 = vpop.f32.mrb[0].mxu0
    %v2739 = vadd.f32 0.0, %v2738
    %v2740 = vpop.f32.mrb[0].mxu0
    %2741 = vmatprep.mubr.f32.mxu0 0.0
    %2742 = vmatmul.mubr.f32.gmra.mrb[0].mxu0 %v2630
    %v2743 = vpop.f32.mrb[0].mxu0
    %v2744 = vadd.f32 0.0, %v2743
    %v2745 = vpop.f32.mrb[0].mxu0
    %2746 = vmatprep.mubr.f32.mxu0 0.0
    %2747 = vmatmul.mubr.f32.gmra.mrb[0].mxu0 %v2632
    %v2748 = vpop.f32.mrb[0].mxu0
    %v2749 = vadd.f32 0.0, %v2748
    %v2750 = vpop.f32.mrb[0].mxu0
    %2751 = vmatprep.mubr.f32.mxu0 0.0
    %2752 = vmatmul.mubr.f32.gmra.mrb[0].mxu0 %v2634
    %v2753 = vpop.f32.mrb[0].mxu0
    %v2754 = vadd.f32 0.0, %v2753
    %v2755 = vpop.f32.mrb[0].mxu0
    %2756 = vdwg.mxu0
    %2757 = vrot.lane.b32.xlu0 %v326, 64
    %v2758 = vpop.permute.xlu0 %2757
    %2759 = vrot.lane.b32.xlu0 %v327, 64
    %v2760 = vpop.permute.xlu0 %2759
    %2761 = vrot.lane.b32.xlu0 %v328, 64
    %v2762 = vpop.permute.xlu0 %2761
    %2763 = vrot.lane.b32.xlu0 %v329, 64
    %v2764 = vpop.permute.xlu0 %2763
    %2765 = vrot.lane.b32.xlu0 %v330, 64
    %v2766 = vpop.permute.xlu0 %2765
    %2767 = vrot.lane.b32.xlu0 %v331, 64
    %v2768 = vpop.permute.xlu0 %2767
    %2769 = vrot.lane.b32.xlu0 %v332, 64
    %v2770 = vpop.permute.xlu0 %2769
    %2771 = vrot.lane.b32.xlu0 %v333, 64
    %v2772 = vpop.permute.xlu0 %2771
    %2773 = vrot.lane.b32.xlu0 %v441, 64
    %v2774 = vpop.permute.xlu0 %2773
    %2775 = vrot.lane.b32.xlu0 %v446, 64
    %v2776 = vpop.permute.xlu0 %2775
    %2777 = vrot.lane.b32.xlu0 %v451, 64
    %v2778 = vpop.permute.xlu0 %2777
    %2779 = vrot.lane.b32.xlu0 %v456, 64
    %v2780 = vpop.permute.xlu0 %2779
    %2781 = vrot.lane.b32.xlu0 %v461, 64
    %v2782 = vpop.permute.xlu0 %2781
    %2783 = vrot.lane.b32.xlu0 %v466, 64
    %v2784 = vpop.permute.xlu0 %2783
    %2785 = vrot.lane.b32.xlu0 %v471, 64
    %v2786 = vpop.permute.xlu0 %2785
    %2787 = vrot.lane.b32.xlu0 %v476, 64
    %v2788 = vpop.permute.xlu0 %2787
    %v2789 = vsel %vm624, %v2758, 0
    %v2791 = vsel %vm624, %v2760, 0
    %v2793 = vsel %vm624, %v2762, 0
    %v2795 = vsel %vm624, %v2764, 0
    %v2797 = vsel %vm624, %v2766, 0
    %v2799 = vsel %vm624, %v2768, 0
    %v2801 = vsel %vm624, %v2770, 0
    %v2803 = vsel %vm624, %v2772, 0
    %v2805 = vsel %vm624, %v2774, 0
    %v2807 = vsel %vm624, %v2776, 0
    %v2809 = vsel %vm624, %v2778, 0
    %v2811 = vsel %vm624, %v2780, 0
    %v2813 = vsel %vm624, %v2782, 0
    %v2815 = vsel %vm624, %v2784, 0
    %v2817 = vsel %vm624, %v2786, 0
    %v2819 = vsel %vm624, %v2788, 0
    %2821 = vmatprep.subr.mxu0 0.0
    %2822 = vmatpush1.xpose.msra.mxu0 %v2805
    %2823 = vmatprep.subr.mxu0 0.0
    %2824 = vmatpush1.xpose.msra.mxu0 %v2807
    %2825 = vmatprep.subr.mxu0 0.0
    %2826 = vmatpush1.xpose.msra.mxu0 %v2809
    %2827 = vmatprep.subr.mxu0 0.0
    %2828 = vmatpush1.xpose.msra.mxu0 %v2811
    %2829 = vmatprep.subr.mxu0 0.0
    %2830 = vmatpush1.xpose.msra.mxu0 %v2813
    %2831 = vmatprep.subr.mxu0 0.0
    %2832 = vmatpush1.xpose.msra.mxu0 %v2815
    %2833 = vmatprep.subr.mxu0 0.0
    %2834 = vmatpush1.xpose.msra.mxu0 %v2817
    %2835 = vmatprep.subr.mxu0 0.0
    %2836 = vmatpush1.xpose.msra.mxu0 %v2819
    %2837 = vmatprep.subr.mxu0 0.0
    %2838 = vmatpush1.xpose.msra.mxu0 0.0
    %2839 = vmatprep.subr.mxu0 0.0
    %2840 = vmatpush1.xpose.msra.mxu0 0.0
    %2841 = vmatprep.subr.mxu0 0.0
    %2842 = vmatpush1.xpose.msra.mxu0 0.0
    %2843 = vmatprep.subr.mxu0 0.0
    %2844 = vmatpush1.xpose.msra.mxu0 0.0
    %2845 = vmatprep.subr.mxu0 0.0
    %2846 = vmatpush1.xpose.msra.mxu0 0.0
    %2847 = vmatprep.subr.mxu0 0.0
    %2848 = vmatpush1.xpose.msra.mxu0 0.0
    %2849 = vmatprep.subr.mxu0 0.0
    %2850 = vmatpush1.xpose.msra.mxu0 0.0
    %2851 = vmatprep.subr.mxu0 0.0
    %2852 = vmatpush1.xpose.msra.mxu0 0.0
    %2853 = vmatprep.subr.mxu0 0.0
    %2854 = vmatpush1.xpose.msra.mxu0 0.0
    %2855 = vmatprep.subr.mxu0 0.0
    %2856 = vmatpush1.xpose.msra.mxu0 0.0
    %2857 = vmatprep.subr.mxu0 0.0
    %2858 = vmatpush1.xpose.msra.mxu0 0.0
    %2859 = vmatprep.subr.mxu0 0.0
    %2860 = vmatpush1.xpose.msra.mxu0 0.0
    %2861 = vmatprep.subr.mxu0 0.0
    %2862 = vmatpush1.xpose.msra.mxu0 0.0
    %2863 = vmatprep.subr.mxu0 0.0
    %2864 = vmatpush1.xpose.msra.mxu0 0.0
    %2865 = vmatprep.subr.mxu0 0.0
    %2866 = vmatpush1.xpose.msra.mxu0 0.0
    %2867 = vmatprep.subr.mxu0 0.0
    %2868 = vmatpush1.xpose.msra.mxu0 0.0
    %2869 = vmatprep.subr.mxu0 0.0
    %2870 = vmatpush1.xpose.msra.mxu0 0.0
    %2871 = vmatprep.subr.mxu0 0.0
    %2872 = vmatpush1.xpose.msra.mxu0 0.0
    %2873 = vmatprep.subr.mxu0 0.0
    %2874 = vmatpush1.xpose.msra.mxu0 0.0
    %2875 = vmatprep.subr.mxu0 0.0
    %2876 = vmatpush1.xpose.msra.mxu0 0.0
    %2877 = vmatprep.subr.mxu0 0.0
    %2878 = vmatpush1.xpose.msra.mxu0 0.0
    %2879 = vmatprep.subr.mxu0 0.0
    %2880 = vmatpush1.xpose.msra.mxu0 0.0
    %2881 = vmatprep.subr.mxu0 0.0
    %2882 = vmatpush1.xpose.msra.mxu0 0.0
    %2883 = vmatprep.subr.mxu0 0.0
    %2884 = vmatpush1.xpose.msra.mxu0 0.0
    %2885 = vmatprep.mubr.f32.mxu0 0.0
    %2886 = vmatmul.mubr.f32.gmra.mrb[0].mxu0 %v2789
    %v2887 = vpop.f32.mrb[0].mxu0
    %v2888 = vadd.f32 0.0, %v2887
    %v2889 = vpop.f32.mrb[0].mxu0
    %2890 = vmatprep.mubr.f32.mxu0 0.0
    %2891 = vmatmul.mubr.f32.gmra.mrb[0].mxu0 %v2791
    %v2892 = vpop.f32.mrb[0].mxu0
    %v2893 = vadd.f32 0.0, %v2892
    %v2894 = vpop.f32.mrb[0].mxu0
    %2895 = vmatprep.mubr.f32.mxu0 0.0
    %2896 = vmatmul.mubr.f32.gmra.mrb[0].mxu0 %v2793
    %v2897 = vpop.f32.mrb[0].mxu0
    %v2898 = vadd.f32 0.0, %v2897
    %v2899 = vpop.f32.mrb[0].mxu0
    %2900 = vmatprep.mubr.f32.mxu0 0.0
    %2901 = vmatmul.mubr.f32.gmra.mrb[0].mxu0 %v2795
    %v2902 = vpop.f32.mrb[0].mxu0
    %v2903 = vadd.f32 0.0, %v2902
    %v2904 = vpop.f32.mrb[0].mxu0
    %2905 = vmatprep.mubr.f32.mxu0 0.0
    %2906 = vmatmul.mubr.f32.gmra.mrb[0].mxu0 %v2797
    %v2907 = vpop.f32.mrb[0].mxu0
    %v2908 = vadd.f32 0.0, %v2907
    %v2909 = vpop.f32.mrb[0].mxu0
    %2910 = vmatprep.mubr.f32.mxu0 0.0
    %2911 = vmatmul.mubr.f32.gmra.mrb[0].mxu0 %v2799
    %v2912 = vpop.f32.mrb[0].mxu0
    %v2913 = vadd.f32 0.0, %v2912
    %v2914 = vpop.f32.mrb[0].mxu0
    %2915 = vmatprep.mubr.f32.mxu0 0.0
    %2916 = vmatmul.mubr.f32.gmra.mrb[0].mxu0 %v2801
    %v2917 = vpop.f32.mrb[0].mxu0
    %v2918 = vadd.f32 0.0, %v2917
    %v2919 = vpop.f32.mrb[0].mxu0
    %2920 = vmatprep.mubr.f32.mxu0 0.0
    %2921 = vmatmul.mubr.f32.gmra.mrb[0].mxu0 %v2803
    %v2922 = vpop.f32.mrb[0].mxu0
    %v2923 = vadd.f32 0.0, %v2922
    %v2924 = vpop.f32.mrb[0].mxu0
    %2925 = vdwg.mxu0
    %v2926 = vsel %vm931, %v2719, -inf
    %2927 = vmax.xlane.f32.xlu0 %v2926
    %v2928 = vpop.xlane.xlu0 %2927
    %v2929 = vsel %vm931, %v2724, -inf
    %2930 = vmax.xlane.f32.xlu0 %v2929
    %v2931 = vpop.xlane.xlu0 %2930
    %v2932 = vsel %vm931, %v2729, -inf
    %2933 = vmax.xlane.f32.xlu0 %v2932
    %v2934 = vpop.xlane.xlu0 %2933
    %v2935 = vsel %vm931, %v2734, -inf
    %2936 = vmax.xlane.f32.xlu0 %v2935
    %v2937 = vpop.xlane.xlu0 %2936
    %v2938 = vsel %vm931, %v2739, -inf
    %2939 = vmax.xlane.f32.xlu0 %v2938
    %v2940 = vpop.xlane.xlu0 %2939
    %v2941 = vsel %vm931, %v2744, -inf
    %2942 = vmax.xlane.f32.xlu0 %v2941
    %v2943 = vpop.xlane.xlu0 %2942
    %v2944 = vsel %vm931, %v2749, -inf
    %2945 = vmax.xlane.f32.xlu0 %v2944
    %v2946 = vpop.xlane.xlu0 %2945
    %v2947 = vsel %vm931, %v2754, -inf
    %2948 = vmax.xlane.f32.xlu0 %v2947
    %v2949 = vpop.xlane.xlu0 %2948
    %v2950 = vsel %vm931, %v2888, -inf
    %2951 = vmax.xlane.f32.xlu0 %v2950
    %v2952 = vpop.xlane.xlu0 %2951
    %v2953 = vsel %vm931, %v2893, -inf
    %2954 = vmax.xlane.f32.xlu0 %v2953
    %v2955 = vpop.xlane.xlu0 %2954
    %v2956 = vsel %vm931, %v2898, -inf
    %2957 = vmax.xlane.f32.xlu0 %v2956
    %v2958 = vpop.xlane.xlu0 %2957
    %v2959 = vsel %vm931, %v2903, -inf
    %2960 = vmax.xlane.f32.xlu0 %v2959
    %v2961 = vpop.xlane.xlu0 %2960
    %v2962 = vsel %vm931, %v2908, -inf
    %2963 = vmax.xlane.f32.xlu0 %v2962
    %v2964 = vpop.xlane.xlu0 %2963
    %v2965 = vsel %vm931, %v2913, -inf
    %2966 = vmax.xlane.f32.xlu0 %v2965
    %v2967 = vpop.xlane.xlu0 %2966
    %v2968 = vsel %vm931, %v2918, -inf
    %2969 = vmax.xlane.f32.xlu0 %v2968
    %v2970 = vpop.xlane.xlu0 %2969
    %v2971 = vsel %vm931, %v2923, -inf
    %2972 = vmax.xlane.f32.xlu0 %v2971
    %v2973 = vpop.xlane.xlu0 %2972
    %v2974 = vsub.f32 %v2719, %v2928
    %v2975 = vsub.f32 %v2724, %v2931
    %v2976 = vsub.f32 %v2729, %v2934
    %v2977 = vsub.f32 %v2734, %v2937
    %v2978 = vsub.f32 %v2739, %v2940
    %v2979 = vsub.f32 %v2744, %v2943
    %v2980 = vsub.f32 %v2749, %v2946
    %v2981 = vsub.f32 %v2754, %v2949
    %v2982 = vsub.f32 %v2888, %v2952
    %v2983 = vsub.f32 %v2893, %v2955
    %v2984 = vsub.f32 %v2898, %v2958
    %v2985 = vsub.f32 %v2903, %v2961
    %v2986 = vsub.f32 %v2908, %v2964
    %v2987 = vsub.f32 %v2913, %v2967
    %v2988 = vsub.f32 %v2918, %v2970
    %v2989 = vsub.f32 %v2923, %v2973
    %v2990 = vmul.f32 %v2974, 1.442695
    %v2991 = vpow.pop %v2990
    %v2992 = vmul.f32 %v2975, 1.442695
    %v2993 = vpow.pop %v2992
    %v2994 = vmul.f32 %v2976, 1.442695
    %v2995 = vpow.pop %v2994
    %v2996 = vmul.f32 %v2977, 1.442695
    %v2997 = vpow.pop %v2996
    %v2998 = vmul.f32 %v2978, 1.442695
    %v2999 = vpow.pop %v2998
    %v3000 = vmul.f32 %v2979, 1.442695
    %v3001 = vpow.pop %v3000
    %v3002 = vmul.f32 %v2980, 1.442695
    %v3003 = vpow.pop %v3002
    %v3004 = vmul.f32 %v2981, 1.442695
    %v3005 = vpow.pop %v3004
    %v3006 = vmul.f32 %v2982, 1.442695
    %v3007 = vpow.pop %v3006
    %v3008 = vmul.f32 %v2983, 1.442695
    %v3009 = vpow.pop %v3008
    %v3010 = vmul.f32 %v2984, 1.442695
    %v3011 = vpow.pop %v3010
    %v3012 = vmul.f32 %v2985, 1.442695
    %v3013 = vpow.pop %v3012
    %v3014 = vmul.f32 %v2986, 1.442695
    %v3015 = vpow.pop %v3014
    %v3016 = vmul.f32 %v2987, 1.442695
    %v3017 = vpow.pop %v3016
    %v3018 = vmul.f32 %v2988, 1.442695
    %v3019 = vpow.pop %v3018
    %v3020 = vmul.f32 %v2989, 1.442695
    %v3021 = vpow.pop %v3020
    %v3022 = vsel %vm931, %v2991, 0.0
    %3023 = vadd.xlane.f32.xlu0 %v3022
    %v3024 = vpop.xlane.xlu0 %3023
    %v3025 = vsel %vm931, %v2993, 0.0
    %3026 = vadd.xlane.f32.xlu0 %v3025
    %v3027 = vpop.xlane.xlu0 %3026
    %v3028 = vsel %vm931, %v2995, 0.0
    %3029 = vadd.xlane.f32.xlu0 %v3028
    %v3030 = vpop.xlane.xlu0 %3029
    %v3031 = vsel %vm931, %v2997, 0.0
    %3032 = vadd.xlane.f32.xlu0 %v3031
    %v3033 = vpop.xlane.xlu0 %3032
    %v3034 = vsel %vm931, %v2999, 0.0
    %3035 = vadd.xlane.f32.xlu0 %v3034
    %v3036 = vpop.xlane.xlu0 %3035
    %v3037 = vsel %vm931, %v3001, 0.0
    %3038 = vadd.xlane.f32.xlu0 %v3037
    %v3039 = vpop.xlane.xlu0 %3038
    %v3040 = vsel %vm931, %v3003, 0.0
    %3041 = vadd.xlane.f32.xlu0 %v3040
    %v3042 = vpop.xlane.xlu0 %3041
    %v3043 = vsel %vm931, %v3005, 0.0
    %3044 = vadd.xlane.f32.xlu0 %v3043
    %v3045 = vpop.xlane.xlu0 %3044
    %v3046 = vsel %vm931, %v3007, 0.0
    %3047 = vadd.xlane.f32.xlu0 %v3046
    %v3048 = vpop.xlane.xlu0 %3047
    %v3049 = vsel %vm931, %v3009, 0.0
    %3050 = vadd.xlane.f32.xlu0 %v3049
    %v3051 = vpop.xlane.xlu0 %3050
    %v3052 = vsel %vm931, %v3011, 0.0
    %3053 = vadd.xlane.f32.xlu0 %v3052
    %v3054 = vpop.xlane.xlu0 %3053
    %v3055 = vsel %vm931, %v3013, 0.0
    %3056 = vadd.xlane.f32.xlu0 %v3055
    %v3057 = vpop.xlane.xlu0 %3056
    %v3058 = vsel %vm931, %v3015, 0.0
    %3059 = vadd.xlane.f32.xlu0 %v3058
    %v3060 = vpop.xlane.xlu0 %3059
    %v3061 = vsel %vm931, %v3017, 0.0
    %3062 = vadd.xlane.f32.xlu0 %v3061
    %v3063 = vpop.xlane.xlu0 %3062
    %v3064 = vsel %vm931, %v3019, 0.0
    %3065 = vadd.xlane.f32.xlu0 %v3064
    %v3066 = vpop.xlane.xlu0 %3065
    %v3067 = vsel %vm931, %v3021, 0.0
    %3068 = vadd.xlane.f32.xlu0 %v3067
    %v3069 = vpop.xlane.xlu0 %3068
    %v3070 = vrcp.pop %v3024
    %v3071 = vmul.f32 %v2991, %v3070
    %v3072 = vrcp.pop %v3027
    %v3073 = vmul.f32 %v2993, %v3072
    %v3074 = vrcp.pop %v3030
    %v3075 = vmul.f32 %v2995, %v3074
    %v3076 = vrcp.pop %v3033
    %v3077 = vmul.f32 %v2997, %v3076
    %v3078 = vrcp.pop %v3036
    %v3079 = vmul.f32 %v2999, %v3078
    %v3080 = vrcp.pop %v3039
    %v3081 = vmul.f32 %v3001, %v3080
    %v3082 = vrcp.pop %v3042
    %v3083 = vmul.f32 %v3003, %v3082
    %v3084 = vrcp.pop %v3045
    %v3085 = vmul.f32 %v3005, %v3084
    %v3086 = vrcp.pop %v3048
    %v3087 = vmul.f32 %v3007, %v3086
    %v3088 = vrcp.pop %v3051
    %v3089 = vmul.f32 %v3009, %v3088
    %v3090 = vrcp.pop %v3054
    %v3091 = vmul.f32 %v3011, %v3090
    %v3092 = vrcp.pop %v3057
    %v3093 = vmul.f32 %v3013, %v3092
    %v3094 = vrcp.pop %v3060
    %v3095 = vmul.f32 %v3015, %v3094
    %v3096 = vrcp.pop %v3063
    %v3097 = vmul.f32 %v3017, %v3096
    %v3098 = vrcp.pop %v3066
    %v3099 = vmul.f32 %v3019, %v3098
    %v3100 = vrcp.pop %v3069
    %v3101 = vmul.f32 %v3021, %v3100
    %3102 = vrot.lane.b32.xlu0 %v546, 64
    %v3103 = vpop.permute.xlu0 %3102
    %3104 = vrot.lane.b32.xlu0 %v551, 64
    %v3105 = vpop.permute.xlu0 %3104
    %3106 = vrot.lane.b32.xlu0 %v556, 64
    %v3107 = vpop.permute.xlu0 %3106
    %3108 = vrot.lane.b32.xlu0 %v561, 64
    %v3109 = vpop.permute.xlu0 %3108
    %3110 = vrot.lane.b32.xlu0 %v566, 64
    %v3111 = vpop.permute.xlu0 %3110
    %3112 = vrot.lane.b32.xlu0 %v571, 64
    %v3113 = vpop.permute.xlu0 %3112
    %3114 = vrot.lane.b32.xlu0 %v576, 64
    %v3115 = vpop.permute.xlu0 %3114
    %3116 = vrot.lane.b32.xlu0 %v581, 64
    %v3117 = vpop.permute.xlu0 %3116
    %v3127 = vsel %vm931, %v3071, 0
    %v3130 = vsel %vm931, %v3073, 0
    %v3133 = vsel %vm931, %v3075, 0
    %v3136 = vsel %vm931, %v3077, 0
    %v3139 = vsel %vm931, %v3079, 0
    %v3142 = vsel %vm931, %v3081, 0
    %v3145 = vsel %vm931, %v3083, 0
    %v3148 = vsel %vm931, %v3085, 0
    %3150 = vmatprep.subr.mxu0 0.0
    %3151 = vmatpush1.msra.mxu0 %v3103
    %3152 = vmatprep.subr.mxu0 0.0
    %3153 = vmatpush1.msra.mxu0 %v3105
    %3154 = vmatprep.subr.mxu0 0.0
    %3155 = vmatpush1.msra.mxu0 %v3107
    %3156 = vmatprep.subr.mxu0 0.0
    %3157 = vmatpush1.msra.mxu0 %v3109
    %3158 = vmatprep.subr.mxu0 0.0
    %3159 = vmatpush1.msra.mxu0 %v3111
    %3160 = vmatprep.subr.mxu0 0.0
    %3161 = vmatpush1.msra.mxu0 %v3113
    %3162 = vmatprep.subr.mxu0 0.0
    %3163 = vmatpush1.msra.mxu0 %v3115
    %3164 = vmatprep.subr.mxu0 0.0
    %3165 = vmatpush1.msra.mxu0 %v3117
    %3166 = vmatprep.subr.mxu0 0.0
    %3167 = vmatpush1.msra.mxu0 0.0
    %3168 = vmatprep.subr.mxu0 0.0
    %3169 = vmatpush1.msra.mxu0 0.0
    %3170 = vmatprep.subr.mxu0 0.0
    %3171 = vmatpush1.msra.mxu0 0.0
    %3172 = vmatprep.subr.mxu0 0.0
    %3173 = vmatpush1.msra.mxu0 0.0
    %3174 = vmatprep.subr.mxu0 0.0
    %3175 = vmatpush1.msra.mxu0 0.0
    %3176 = vmatprep.subr.mxu0 0.0
    %3177 = vmatpush1.msra.mxu0 0.0
    %3178 = vmatprep.subr.mxu0 0.0
    %3179 = vmatpush1.msra.mxu0 0.0
    %3180 = vmatprep.subr.mxu0 0.0
    %3181 = vmatpush1.msra.mxu0 0.0
    %3182 = vmatprep.subr.mxu0 0.0
    %3183 = vmatpush1.msra.mxu0 0.0
    %3184 = vmatprep.subr.mxu0 0.0
    %3185 = vmatpush1.msra.mxu0 0.0
    %3186 = vmatprep.subr.mxu0 0.0
    %3187 = vmatpush1.msra.mxu0 0.0
    %3188 = vmatprep.subr.mxu0 0.0
    %3189 = vmatpush1.msra.mxu0 0.0
    %3190 = vmatprep.subr.mxu0 0.0
    %3191 = vmatpush1.msra.mxu0 0.0
    %3192 = vmatprep.subr.mxu0 0.0
    %3193 = vmatpush1.msra.mxu0 0.0
    %3194 = vmatprep.subr.mxu0 0.0
    %3195 = vmatpush1.msra.mxu0 0.0
    %3196 = vmatprep.subr.mxu0 0.0
    %3197 = vmatpush1.msra.mxu0 0.0
    %3198 = vmatprep.subr.mxu0 0.0
    %3199 = vmatpush1.msra.mxu0 0.0
    %3200 = vmatprep.subr.mxu0 0.0
    %3201 = vmatpush1.msra.mxu0 0.0
    %3202 = vmatprep.subr.mxu0 0.0
    %3203 = vmatpush1.msra.mxu0 0.0
    %3204 = vmatprep.subr.mxu0 0.0
    %3205 = vmatpush1.msra.mxu0 0.0
    %3206 = vmatprep.subr.mxu0 0.0
    %3207 = vmatpush1.msra.mxu0 0.0
    %3208 = vmatprep.subr.mxu0 0.0
    %3209 = vmatpush1.msra.mxu0 0.0
    %3210 = vmatprep.subr.mxu0 0.0
    %3211 = vmatpush1.msra.mxu0 0.0
    %3212 = vmatprep.subr.mxu0 0.0
    %3213 = vmatpush1.msra.mxu0 0.0
    %3214 = vmatprep.mubr.f32.mxu0 0.0
    %3215 = vmatmul.mubr.f32.gmra.mrb[0].mxu0 %v3127
    %v3216 = vpop.f32.mrb[0].mxu0
    %v3217 = vadd.f32 0.0, %v3216
    %v3218 = vpop.f32.mrb[0].mxu0
    %3219 = vmatprep.mubr.f32.mxu0 0.0
    %3220 = vmatmul.mubr.f32.gmra.mrb[0].mxu0 %v3130
    %v3221 = vpop.f32.mrb[0].mxu0
    %v3222 = vadd.f32 0.0, %v3221
    %v3223 = vpop.f32.mrb[0].mxu0
    %3224 = vmatprep.mubr.f32.mxu0 0.0
    %3225 = vmatmul.mubr.f32.gmra.mrb[0].mxu0 %v3133
    %v3226 = vpop.f32.mrb[0].mxu0
    %v3227 = vadd.f32 0.0, %v3226
    %v3228 = vpop.f32.mrb[0].mxu0
    %3229 = vmatprep.mubr.f32.mxu0 0.0
    %3230 = vmatmul.mubr.f32.gmra.mrb[0].mxu0 %v3136
    %v3231 = vpop.f32.mrb[0].mxu0
    %v3232 = vadd.f32 0.0, %v3231
    %v3233 = vpop.f32.mrb[0].mxu0
    %3234 = vmatprep.mubr.f32.mxu0 0.0
    %3235 = vmatmul.mubr.f32.gmra.mrb[0].mxu0 %v3139
    %v3236 = vpop.f32.mrb[0].mxu0
    %v3237 = vadd.f32 0.0, %v3236
    %v3238 = vpop.f32.mrb[0].mxu0
    %3239 = vmatprep.mubr.f32.mxu0 0.0
    %3240 = vmatmul.mubr.f32.gmra.mrb[0].mxu0 %v3142
    %v3241 = vpop.f32.mrb[0].mxu0
    %v3242 = vadd.f32 0.0, %v3241
    %v3243 = vpop.f32.mrb[0].mxu0
    %3244 = vmatprep.mubr.f32.mxu0 0.0
    %3245 = vmatmul.mubr.f32.gmra.mrb[0].mxu0 %v3145
    %v3246 = vpop.f32.mrb[0].mxu0
    %v3247 = vadd.f32 0.0, %v3246
    %v3248 = vpop.f32.mrb[0].mxu0
    %3249 = vmatprep.mubr.f32.mxu0 0.0
    %3250 = vmatmul.mubr.f32.gmra.mrb[0].mxu0 %v3148
    %v3251 = vpop.f32.mrb[0].mxu0
    %v3252 = vadd.f32 0.0, %v3251
    %v3253 = vpop.f32.mrb[0].mxu0
    %3254 = vdwg.mxu0
    %3255 = vrot.lane.b32.xlu0 %v586, 64
    %v3256 = vpop.permute.xlu0 %3255
    %3257 = vrot.lane.b32.xlu0 %v591, 64
    %v3258 = vpop.permute.xlu0 %3257
    %3259 = vrot.lane.b32.xlu0 %v596, 64
    %v3260 = vpop.permute.xlu0 %3259
    %3261 = vrot.lane.b32.xlu0 %v601, 64
    %v3262 = vpop.permute.xlu0 %3261
    %3263 = vrot.lane.b32.xlu0 %v606, 64
    %v3264 = vpop.permute.xlu0 %3263
    %3265 = vrot.lane.b32.xlu0 %v611, 64
    %v3266 = vpop.permute.xlu0 %3265
    %3267 = vrot.lane.b32.xlu0 %v616, 64
    %v3268 = vpop.permute.xlu0 %3267
    %3269 = vrot.lane.b32.xlu0 %v621, 64
    %v3270 = vpop.permute.xlu0 %3269
    %v3280 = vsel %vm931, %v3087, 0
    %v3283 = vsel %vm931, %v3089, 0
    %v3286 = vsel %vm931, %v3091, 0
    %v3289 = vsel %vm931, %v3093, 0
    %v3292 = vsel %vm931, %v3095, 0
    %v3295 = vsel %vm931, %v3097, 0
    %v3298 = vsel %vm931, %v3099, 0
    %v3301 = vsel %vm931, %v3101, 0
    %3303 = vmatprep.subr.mxu0 0.0
    %3304 = vmatpush1.msra.mxu0 %v3256
    %3305 = vmatprep.subr.mxu0 0.0
    %3306 = vmatpush1.msra.mxu0 %v3258
    %3307 = vmatprep.subr.mxu0 0.0
    %3308 = vmatpush1.msra.mxu0 %v3260
    %3309 = vmatprep.subr.mxu0 0.0
    %3310 = vmatpush1.msra.mxu0 %v3262
    %3311 = vmatprep.subr.mxu0 0.0
    %3312 = vmatpush1.msra.mxu0 %v3264
    %3313 = vmatprep.subr.mxu0 0.0
    %3314 = vmatpush1.msra.mxu0 %v3266
    %3315 = vmatprep.subr.mxu0 0.0
    %3316 = vmatpush1.msra.mxu0 %v3268
    %3317 = vmatprep.subr.mxu0 0.0
    %3318 = vmatpush1.msra.mxu0 %v3270
    %3319 = vmatprep.subr.mxu0 0.0
    %3320 = vmatpush1.msra.mxu0 0.0
    %3321 = vmatprep.subr.mxu0 0.0
    %3322 = vmatpush1.msra.mxu0 0.0
    %3323 = vmatprep.subr.mxu0 0.0
    %3324 = vmatpush1.msra.mxu0 0.0
    %3325 = vmatprep.subr.mxu0 0.0
    %3326 = vmatpush1.msra.mxu0 0.0
    %3327 = vmatprep.subr.mxu0 0.0
    %3328 = vmatpush1.msra.mxu0 0.0
    %3329 = vmatprep.subr.mxu0 0.0
    %3330 = vmatpush1.msra.mxu0 0.0
    %3331 = vmatprep.subr.mxu0 0.0
    %3332 = vmatpush1.msra.mxu0 0.0
    %3333 = vmatprep.subr.mxu0 0.0
    %3334 = vmatpush1.msra.mxu0 0.0
    %3335 = vmatprep.subr.mxu0 0.0
    %3336 = vmatpush1.msra.mxu0 0.0
    %3337 = vmatprep.subr.mxu0 0.0
    %3338 = vmatpush1.msra.mxu0 0.0
    %3339 = vmatprep.subr.mxu0 0.0
    %3340 = vmatpush1.msra.mxu0 0.0
    %3341 = vmatprep.subr.mxu0 0.0
    %3342 = vmatpush1.msra.mxu0 0.0
    %3343 = vmatprep.subr.mxu0 0.0
    %3344 = vmatpush1.msra.mxu0 0.0
    %3345 = vmatprep.subr.mxu0 0.0
    %3346 = vmatpush1.msra.mxu0 0.0
    %3347 = vmatprep.subr.mxu0 0.0
    %3348 = vmatpush1.msra.mxu0 0.0
    %3349 = vmatprep.subr.mxu0 0.0
    %3350 = vmatpush1.msra.mxu0 0.0
    %3351 = vmatprep.subr.mxu0 0.0
    %3352 = vmatpush1.msra.mxu0 0.0
    %3353 = vmatprep.subr.mxu0 0.0
    %3354 = vmatpush1.msra.mxu0 0.0
    %3355 = vmatprep.subr.mxu0 0.0
    %3356 = vmatpush1.msra.mxu0 0.0
    %3357 = vmatprep.subr.mxu0 0.0
    %3358 = vmatpush1.msra.mxu0 0.0
    %3359 = vmatprep.subr.mxu0 0.0
    %3360 = vmatpush1.msra.mxu0 0.0
    %3361 = vmatprep.subr.mxu0 0.0
    %3362 = vmatpush1.msra.mxu0 0.0
    %3363 = vmatprep.subr.mxu0 0.0
    %3364 = vmatpush1.msra.mxu0 0.0
    %3365 = vmatprep.subr.mxu0 0.0
    %3366 = vmatpush1.msra.mxu0 0.0
    %3367 = vmatprep.mubr.f32.mxu0 0.0
    %3368 = vmatmul.mubr.f32.gmra.mrb[0].mxu0 %v3280
    %v3369 = vpop.f32.mrb[0].mxu0
    %v3370 = vadd.f32 0.0, %v3369
    %v3371 = vpop.f32.mrb[0].mxu0
    %3372 = vmatprep.mubr.f32.mxu0 0.0
    %3373 = vmatmul.mubr.f32.gmra.mrb[0].mxu0 %v3283
    %v3374 = vpop.f32.mrb[0].mxu0
    %v3375 = vadd.f32 0.0, %v3374
    %v3376 = vpop.f32.mrb[0].mxu0
    %3377 = vmatprep.mubr.f32.mxu0 0.0
    %3378 = vmatmul.mubr.f32.gmra.mrb[0].mxu0 %v3286
    %v3379 = vpop.f32.mrb[0].mxu0
    %v3380 = vadd.f32 0.0, %v3379
    %v3381 = vpop.f32.mrb[0].mxu0
    %3382 = vmatprep.mubr.f32.mxu0 0.0
    %3383 = vmatmul.mubr.f32.gmra.mrb[0].mxu0 %v3289
    %v3384 = vpop.f32.mrb[0].mxu0
    %v3385 = vadd.f32 0.0, %v3384
    %v3386 = vpop.f32.mrb[0].mxu0
    %3387 = vmatprep.mubr.f32.mxu0 0.0
    %3388 = vmatmul.mubr.f32.gmra.mrb[0].mxu0 %v3292
    %v3389 = vpop.f32.mrb[0].mxu0
    %v3390 = vadd.f32 0.0, %v3389
    %v3391 = vpop.f32.mrb[0].mxu0
    %3392 = vmatprep.mubr.f32.mxu0 0.0
    %3393 = vmatmul.mubr.f32.gmra.mrb[0].mxu0 %v3295
    %v3394 = vpop.f32.mrb[0].mxu0
    %v3395 = vadd.f32 0.0, %v3394
    %v3396 = vpop.f32.mrb[0].mxu0
    %3397 = vmatprep.mubr.f32.mxu0 0.0
    %3398 = vmatmul.mubr.f32.gmra.mrb[0].mxu0 %v3298
    %v3399 = vpop.f32.mrb[0].mxu0
    %v3400 = vadd.f32 0.0, %v3399
    %v3401 = vpop.f32.mrb[0].mxu0
    %3402 = vmatprep.mubr.f32.mxu0 0.0
    %3403 = vmatmul.mubr.f32.gmra.mrb[0].mxu0 %v3301
    %v3404 = vpop.f32.mrb[0].mxu0
    %v3405 = vadd.f32 0.0, %v3404
    %v3406 = vpop.f32.mrb[0].mxu0
    %3407 = vdwg.mxu0
    %v3409 = vsel %vm624, %v3217, 0
    %v3412 = vsel %vm624, %v3222, 0
    %v3415 = vsel %vm624, %v3227, 0
    %v3418 = vsel %vm624, %v3232, 0
    %v3421 = vsel %vm624, %v3237, 0
    %v3424 = vsel %vm624, %v3242, 0
    %v3427 = vsel %vm624, %v3247, 0
    %v3430 = vsel %vm624, %v3252, 0
    %v3433 = vsel %vm624, %v3370, 0
    %v3436 = vsel %vm624, %v3375, 0
    %v3439 = vsel %vm624, %v3380, 0
    %v3442 = vsel %vm624, %v3385, 0
    %v3445 = vsel %vm624, %v3390, 0
    %v3448 = vsel %vm624, %v3395, 0
    %v3451 = vsel %vm624, %v3400, 0
    %v3454 = vsel %vm624, %v3405, 0
    %3456 = vmatprep.subr.mxu0 0.0
    %3457 = vmatpush1.msra.mxu0 %v164
    %3458 = vmatprep.subr.mxu0 0.0
    %3459 = vmatpush1.msra.mxu0 %v165
    %3460 = vmatprep.subr.mxu0 0.0
    %3461 = vmatpush1.msra.mxu0 %v166
    %3462 = vmatprep.subr.mxu0 0.0
    %3463 = vmatpush1.msra.mxu0 %v167
    %3464 = vmatprep.subr.mxu0 0.0
    %3465 = vmatpush1.msra.mxu0 0.0
    %3466 = vmatprep.subr.mxu0 0.0
    %3467 = vmatpush1.msra.mxu0 0.0
    %3468 = vmatprep.subr.mxu0 0.0
    %3469 = vmatpush1.msra.mxu0 0.0
    %3470 = vmatprep.subr.mxu0 0.0
    %3471 = vmatpush1.msra.mxu0 0.0
    %3472 = vmatprep.subr.mxu0 0.0
    %3473 = vmatpush1.msra.mxu0 0.0
    %3474 = vmatprep.subr.mxu0 0.0
    %3475 = vmatpush1.msra.mxu0 0.0
    %3476 = vmatprep.subr.mxu0 0.0
    %3477 = vmatpush1.msra.mxu0 0.0
    %3478 = vmatprep.subr.mxu0 0.0
    %3479 = vmatpush1.msra.mxu0 0.0
    %3480 = vmatprep.subr.mxu0 0.0
    %3481 = vmatpush1.msra.mxu0 0.0
    %3482 = vmatprep.subr.mxu0 0.0
    %3483 = vmatpush1.msra.mxu0 0.0
    %3484 = vmatprep.subr.mxu0 0.0
    %3485 = vmatpush1.msra.mxu0 0.0
    %3486 = vmatprep.subr.mxu0 0.0
    %3487 = vmatpush1.msra.mxu0 0.0
    %3488 = vmatprep.subr.mxu0 0.0
    %3489 = vmatpush1.msra.mxu0 0.0
    %3490 = vmatprep.subr.mxu0 0.0
    %3491 = vmatpush1.msra.mxu0 0.0
    %3492 = vmatprep.subr.mxu0 0.0
    %3493 = vmatpush1.msra.mxu0 0.0
    %3494 = vmatprep.subr.mxu0 0.0
    %3495 = vmatpush1.msra.mxu0 0.0
    %3496 = vmatprep.subr.mxu0 0.0
    %3497 = vmatpush1.msra.mxu0 0.0
    %3498 = vmatprep.subr.mxu0 0.0
    %3499 = vmatpush1.msra.mxu0 0.0
    %3500 = vmatprep.subr.mxu0 0.0
    %3501 = vmatpush1.msra.mxu0 0.0
    %3502 = vmatprep.subr.mxu0 0.0
    %3503 = vmatpush1.msra.mxu0 0.0
    %3504 = vmatprep.subr.mxu0 0.0
    %3505 = vmatpush1.msra.mxu0 0.0
    %3506 = vmatprep.subr.mxu0 0.0
    %3507 = vmatpush1.msra.mxu0 0.0
    %3508 = vmatprep.subr.mxu0 0.0
    %3509 = vmatpush1.msra.mxu0 0.0
    %3510 = vmatprep.subr.mxu0 0.0
    %3511 = vmatpush1.msra.mxu0 0.0
    %3512 = vmatprep.subr.mxu0 0.0
    %3513 = vmatpush1.msra.mxu0 0.0
    %3514 = vmatprep.subr.mxu0 0.0
    %3515 = vmatpush1.msra.mxu0 0.0
    %3516 = vmatprep.subr.mxu0 0.0
    %3517 = vmatpush1.msra.mxu0 0.0
    %3518 = vmatprep.subr.mxu0 0.0
    %3519 = vmatpush1.msra.mxu0 0.0
    %3520 = vmatprep.mubr.f32.mxu0 0.0
    %3521 = vmatmul.mubr.f32.gmra.mrb[0].mxu0 %v3409
    %v3522 = vpop.f32.mrb[0].mxu0
    %v3523 = vadd.f32 0.0, %v3522
    %v3524 = vpop.f32.mrb[0].mxu0
    %3525 = vmatprep.mubr.f32.mxu0 0.0
    %3526 = vmatmul.mubr.f32.gmra.mrb[0].mxu0 %v3412
    %v3527 = vpop.f32.mrb[0].mxu0
    %v3528 = vadd.f32 0.0, %v3527
    %v3529 = vpop.f32.mrb[0].mxu0
    %3530 = vmatprep.mubr.f32.mxu0 0.0
    %3531 = vmatmul.mubr.f32.gmra.mrb[0].mxu0 %v3415
    %v3532 = vpop.f32.mrb[0].mxu0
    %v3533 = vadd.f32 0.0, %v3532
    %v3534 = vpop.f32.mrb[0].mxu0
    %3535 = vmatprep.mubr.f32.mxu0 0.0
    %3536 = vmatmul.mubr.f32.gmra.mrb[0].mxu0 %v3418
    %v3537 = vpop.f32.mrb[0].mxu0
    %v3538 = vadd.f32 0.0, %v3537
    %v3539 = vpop.f32.mrb[0].mxu0
    %3540 = vmatprep.mubr.f32.mxu0 0.0
    %3541 = vmatmul.mubr.f32.gmra.mrb[0].mxu0 %v3421
    %v3542 = vpop.f32.mrb[0].mxu0
    %v3543 = vadd.f32 0.0, %v3542
    %v3544 = vpop.f32.mrb[0].mxu0
    %3545 = vmatprep.mubr.f32.mxu0 0.0
    %3546 = vmatmul.mubr.f32.gmra.mrb[0].mxu0 %v3424
    %v3547 = vpop.f32.mrb[0].mxu0
    %v3548 = vadd.f32 0.0, %v3547
    %v3549 = vpop.f32.mrb[0].mxu0
    %3550 = vmatprep.mubr.f32.mxu0 0.0
    %3551 = vmatmul.mubr.f32.gmra.mrb[0].mxu0 %v3427
    %v3552 = vpop.f32.mrb[0].mxu0
    %v3553 = vadd.f32 0.0, %v3552
    %v3554 = vpop.f32.mrb[0].mxu0
    %3555 = vmatprep.mubr.f32.mxu0 0.0
    %3556 = vmatmul.mubr.f32.gmra.mrb[0].mxu0 %v3430
    %v3557 = vpop.f32.mrb[0].mxu0
    %v3558 = vadd.f32 0.0, %v3557
    %v3559 = vpop.f32.mrb[0].mxu0
    %3560 = vmatprep.mubr.f32.mxu0 0.0
    %3561 = vmatmul.mubr.f32.gmra.mrb[0].mxu0 %v3433
    %v3562 = vpop.f32.mrb[0].mxu0
    %v3563 = vadd.f32 0.0, %v3562
    %v3564 = vpop.f32.mrb[0].mxu0
    %3565 = vmatprep.mubr.f32.mxu0 0.0
    %3566 = vmatmul.mubr.f32.gmra.mrb[0].mxu0 %v3436
    %v3567 = vpop.f32.mrb[0].mxu0
    %v3568 = vadd.f32 0.0, %v3567
    %v3569 = vpop.f32.mrb[0].mxu0
    %3570 = vmatprep.mubr.f32.mxu0 0.0
    %3571 = vmatmul.mubr.f32.gmra.mrb[0].mxu0 %v3439
    %v3572 = vpop.f32.mrb[0].mxu0
    %v3573 = vadd.f32 0.0, %v3572
    %v3574 = vpop.f32.mrb[0].mxu0
    %3575 = vmatprep.mubr.f32.mxu0 0.0
    %3576 = vmatmul.mubr.f32.gmra.mrb[0].mxu0 %v3442
    %v3577 = vpop.f32.mrb[0].mxu0
    %v3578 = vadd.f32 0.0, %v3577
    %v3579 = vpop.f32.mrb[0].mxu0
    %3580 = vmatprep.mubr.f32.mxu0 0.0
    %3581 = vmatmul.mubr.f32.gmra.mrb[0].mxu0 %v3445
    %v3582 = vpop.f32.mrb[0].mxu0
    %v3583 = vadd.f32 0.0, %v3582
    %v3584 = vpop.f32.mrb[0].mxu0
    %3585 = vmatprep.mubr.f32.mxu0 0.0
    %3586 = vmatmul.mubr.f32.gmra.mrb[0].mxu0 %v3448
    %v3587 = vpop.f32.mrb[0].mxu0
    %v3588 = vadd.f32 0.0, %v3587
    %v3589 = vpop.f32.mrb[0].mxu0
    %3590 = vmatprep.mubr.f32.mxu0 0.0
    %3591 = vmatmul.mubr.f32.gmra.mrb[0].mxu0 %v3451
    %v3592 = vpop.f32.mrb[0].mxu0
    %v3593 = vadd.f32 0.0, %v3592
    %v3594 = vpop.f32.mrb[0].mxu0
    %3595 = vmatprep.mubr.f32.mxu0 0.0
    %3596 = vmatmul.mubr.f32.gmra.mrb[0].mxu0 %v3454
    %v3597 = vpop.f32.mrb[0].mxu0
    %v3598 = vadd.f32 0.0, %v3597
    %v3599 = vpop.f32.mrb[0].mxu0
    %3600 = vdwg.mxu0
    %v3601 = vadd.f32 %v2510, %v3523
    %v3602 = vadd.f32 %v2515, %v3528
    %v3603 = vadd.f32 %v2520, %v3533
    %v3604 = vadd.f32 %v2525, %v3538
    %v3605 = vadd.f32 %v2530, %v3543
    %v3606 = vadd.f32 %v2535, %v3548
    %v3607 = vadd.f32 %v2540, %v3553
    %v3608 = vadd.f32 %v2545, %v3558
    %v3609 = vadd.f32 %v2550, %v3563
    %v3610 = vadd.f32 %v2555, %v3568
    %v3611 = vadd.f32 %v2560, %v3573
    %v3612 = vadd.f32 %v2565, %v3578
    %v3613 = vadd.f32 %v2570, %v3583
    %v3614 = vadd.f32 %v2575, %v3588
    %v3615 = vadd.f32 %v2580, %v3593
    %v3616 = vadd.f32 %v2585, %v3598
    %3617 = vrot.lane.b32.xlu0 %v318, 32
    %v3618 = vpop.permute.xlu0 %3617
    %3619 = vrot.lane.b32.xlu0 %v319, 32
    %v3620 = vpop.permute.xlu0 %3619
    %3621 = vrot.lane.b32.xlu0 %v320, 32
    %v3622 = vpop.permute.xlu0 %3621
    %3623 = vrot.lane.b32.xlu0 %v321, 32
    %v3624 = vpop.permute.xlu0 %3623
    %3625 = vrot.lane.b32.xlu0 %v322, 32
    %v3626 = vpop.permute.xlu0 %3625
    %3627 = vrot.lane.b32.xlu0 %v323, 32
    %v3628 = vpop.permute.xlu0 %3627
    %3629 = vrot.lane.b32.xlu0 %v324, 32
    %v3630 = vpop.permute.xlu0 %3629
    %3631 = vrot.lane.b32.xlu0 %v325, 32
    %v3632 = vpop.permute.xlu0 %3631
    %3633 = vrot.lane.b32.xlu0 %v401, 32
    %v3634 = vpop.permute.xlu0 %3633
    %3635 = vrot.lane.b32.xlu0 %v406, 32
    %v3636 = vpop.permute.xlu0 %3635
    %3637 = vrot.lane.b32.xlu0 %v411, 32
    %v3638 = vpop.permute.xlu0 %3637
    %3639 = vrot.lane.b32.xlu0 %v416, 32
    %v3640 = vpop.permute.xlu0 %3639
    %3641 = vrot.lane.b32.xlu0 %v421, 32
    %v3642 = vpop.permute.xlu0 %3641
    %3643 = vrot.lane.b32.xlu0 %v426, 32
    %v3644 = vpop.permute.xlu0 %3643
    %3645 = vrot.lane.b32.xlu0 %v431, 32
    %v3646 = vpop.permute.xlu0 %3645
    %3647 = vrot.lane.b32.xlu0 %v436, 32
    %v3648 = vpop.permute.xlu0 %3647
    %v3649 = vsel %vm624, %v3618, 0
    %v3651 = vsel %vm624, %v3620, 0
    %v3653 = vsel %vm624, %v3622, 0
    %v3655 = vsel %vm624, %v3624, 0
    %v3657 = vsel %vm624, %v3626, 0
    %v3659 = vsel %vm624, %v3628, 0
    %v3661 = vsel %vm624, %v3630, 0
    %v3663 = vsel %vm624, %v3632, 0
    %v3665 = vsel %vm624, %v3634, 0
    %v3667 = vsel %vm624, %v3636, 0
    %v3669 = vsel %vm624, %v3638, 0
    %v3671 = vsel %vm624, %v3640, 0
    %v3673 = vsel %vm624, %v3642, 0
    %v3675 = vsel %vm624, %v3644, 0
    %v3677 = vsel %vm624, %v3646, 0
    %v3679 = vsel %vm624, %v3648, 0
    %3681 = vmatprep.subr.mxu0 0.0
    %3682 = vmatpush1.xpose.msra.mxu0 %v3665
    %3683 = vmatprep.subr.mxu0 0.0
    %3684 = vmatpush1.xpose.msra.mxu0 %v3667
    %3685 = vmatprep.subr.mxu0 0.0
    %3686 = vmatpush1.xpose.msra.mxu0 %v3669
    %3687 = vmatprep.subr.mxu0 0.0
    %3688 = vmatpush1.xpose.msra.mxu0 %v3671
    %3689 = vmatprep.subr.mxu0 0.0
    %3690 = vmatpush1.xpose.msra.mxu0 %v3673
    %3691 = vmatprep.subr.mxu0 0.0
    %3692 = vmatpush1.xpose.msra.mxu0 %v3675
    %3693 = vmatprep.subr.mxu0 0.0
    %3694 = vmatpush1.xpose.msra.mxu0 %v3677
    %3695 = vmatprep.subr.mxu0 0.0
    %3696 = vmatpush1.xpose.msra.mxu0 %v3679
    %3697 = vmatprep.subr.mxu0 0.0
    %3698 = vmatpush1.xpose.msra.mxu0 0.0
    %3699 = vmatprep.subr.mxu0 0.0
    %3700 = vmatpush1.xpose.msra.mxu0 0.0
    %3701 = vmatprep.subr.mxu0 0.0
    %3702 = vmatpush1.xpose.msra.mxu0 0.0
    %3703 = vmatprep.subr.mxu0 0.0
    %3704 = vmatpush1.xpose.msra.mxu0 0.0
    %3705 = vmatprep.subr.mxu0 0.0
    %3706 = vmatpush1.xpose.msra.mxu0 0.0
    %3707 = vmatprep.subr.mxu0 0.0
    %3708 = vmatpush1.xpose.msra.mxu0 0.0
    %3709 = vmatprep.subr.mxu0 0.0
    %3710 = vmatpush1.xpose.msra.mxu0 0.0
    %3711 = vmatprep.subr.mxu0 0.0
    %3712 = vmatpush1.xpose.msra.mxu0 0.0
    %3713 = vmatprep.subr.mxu0 0.0
    %3714 = vmatpush1.xpose.msra.mxu0 0.0
    %3715 = vmatprep.subr.mxu0 0.0
    %3716 = vmatpush1.xpose.msra.mxu0 0.0
    %3717 = vmatprep.subr.mxu0 0.0
    %3718 = vmatpush1.xpose.msra.mxu0 0.0
    %3719 = vmatprep.subr.mxu0 0.0
    %3720 = vmatpush1.xpose.msra.mxu0 0.0
    %3721 = vmatprep.subr.mxu0 0.0
    %3722 = vmatpush1.xpose.msra.mxu0 0.0
    %3723 = vmatprep.subr.mxu0 0.0
    %3724 = vmatpush1.xpose.msra.mxu0 0.0
    %3725 = vmatprep.subr.mxu0 0.0
    %3726 = vmatpush1.xpose.msra.mxu0 0.0
    %3727 = vmatprep.subr.mxu0 0.0
    %3728 = vmatpush1.xpose.msra.mxu0 0.0
    %3729 = vmatprep.subr.mxu0 0.0
    %3730 = vmatpush1.xpose.msra.mxu0 0.0
    %3731 = vmatprep.subr.mxu0 0.0
    %3732 = vmatpush1.xpose.msra.mxu0 0.0
    %3733 = vmatprep.subr.mxu0 0.0
    %3734 = vmatpush1.xpose.msra.mxu0 0.0
    %3735 = vmatprep.subr.mxu0 0.0
    %3736 = vmatpush1.xpose.msra.mxu0 0.0
    %3737 = vmatprep.subr.mxu0 0.0
    %3738 = vmatpush1.xpose.msra.mxu0 0.0
    %3739 = vmatprep.subr.mxu0 0.0
    %3740 = vmatpush1.xpose.msra.mxu0 0.0
    %3741 = vmatprep.subr.mxu0 0.0
    %3742 = vmatpush1.xpose.msra.mxu0 0.0
    %3743 = vmatprep.subr.mxu0 0.0
    %3744 = vmatpush1.xpose.msra.mxu0 0.0
    %3745 = vmatprep.mubr.f32.mxu0 0.0
    %3746 = vmatmul.mubr.f32.gmra.mrb[0].mxu0 %v3649
    %v3747 = vpop.f32.mrb[0].mxu0
    %v3748 = vadd.f32 0.0, %v3747
    %v3749 = vpop.f32.mrb[0].mxu0
    %3750 = vmatprep.mubr.f32.mxu0 0.0
    %3751 = vmatmul.mubr.f32.gmra.mrb[0].mxu0 %v3651
    %v3752 = vpop.f32.mrb[0].mxu0
    %v3753 = vadd.f32 0.0, %v3752
    %v3754 = vpop.f32.mrb[0].mxu0
    %3755 = vmatprep.mubr.f32.mxu0 0.0
    %3756 = vmatmul.mubr.f32.gmra.mrb[0].mxu0 %v3653
    %v3757 = vpop.f32.mrb[0].mxu0
    %v3758 = vadd.f32 0.0, %v3757
    %v3759 = vpop.f32.mrb[0].mxu0
    %3760 = vmatprep.mubr.f32.mxu0 0.0
    %3761 = vmatmul.mubr.f32.gmra.mrb[0].mxu0 %v3655
    %v3762 = vpop.f32.mrb[0].mxu0
    %v3763 = vadd.f32 0.0, %v3762
    %v3764 = vpop.f32.mrb[0].mxu0
    %3765 = vmatprep.mubr.f32.mxu0 0.0
    %3766 = vmatmul.mubr.f32.gmra.mrb[0].mxu0 %v3657
    %v3767 = vpop.f32.mrb[0].mxu0
    %v3768 = vadd.f32 0.0, %v3767
    %v3769 = vpop.f32.mrb[0].mxu0
    %3770 = vmatprep.mubr.f32.mxu0 0.0
    %3771 = vmatmul.mubr.f32.gmra.mrb[0].mxu0 %v3659
    %v3772 = vpop.f32.mrb[0].mxu0
    %v3773 = vadd.f32 0.0, %v3772
    %v3774 = vpop.f32.mrb[0].mxu0
    %3775 = vmatprep.mubr.f32.mxu0 0.0
    %3776 = vmatmul.mubr.f32.gmra.mrb[0].mxu0 %v3661
    %v3777 = vpop.f32.mrb[0].mxu0
    %v3778 = vadd.f32 0.0, %v3777
    %v3779 = vpop.f32.mrb[0].mxu0
    %3780 = vmatprep.mubr.f32.mxu0 0.0
    %3781 = vmatmul.mubr.f32.gmra.mrb[0].mxu0 %v3663
    %v3782 = vpop.f32.mrb[0].mxu0
    %v3783 = vadd.f32 0.0, %v3782
    %v3784 = vpop.f32.mrb[0].mxu0
    %3785 = vdwg.mxu0
    %3786 = vrot.lane.b32.xlu0 %v326, 32
    %v3787 = vpop.permute.xlu0 %3786
    %3788 = vrot.lane.b32.xlu0 %v327, 32
    %v3789 = vpop.permute.xlu0 %3788
    %3790 = vrot.lane.b32.xlu0 %v328, 32
    %v3791 = vpop.permute.xlu0 %3790
    %3792 = vrot.lane.b32.xlu0 %v329, 32
    %v3793 = vpop.permute.xlu0 %3792
    %3794 = vrot.lane.b32.xlu0 %v330, 32
    %v3795 = vpop.permute.xlu0 %3794
    %3796 = vrot.lane.b32.xlu0 %v331, 32
    %v3797 = vpop.permute.xlu0 %3796
    %3798 = vrot.lane.b32.xlu0 %v332, 32
    %v3799 = vpop.permute.xlu0 %3798
    %3800 = vrot.lane.b32.xlu0 %v333, 32
    %v3801 = vpop.permute.xlu0 %3800
    %3802 = vrot.lane.b32.xlu0 %v441, 32
    %v3803 = vpop.permute.xlu0 %3802
    %3804 = vrot.lane.b32.xlu0 %v446, 32
    %v3805 = vpop.permute.xlu0 %3804
    %3806 = vrot.lane.b32.xlu0 %v451, 32
    %v3807 = vpop.permute.xlu0 %3806
    %3808 = vrot.lane.b32.xlu0 %v456, 32
    %v3809 = vpop.permute.xlu0 %3808
    %3810 = vrot.lane.b32.xlu0 %v461, 32
    %v3811 = vpop.permute.xlu0 %3810
    %3812 = vrot.lane.b32.xlu0 %v466, 32
    %v3813 = vpop.permute.xlu0 %3812
    %3814 = vrot.lane.b32.xlu0 %v471, 32
    %v3815 = vpop.permute.xlu0 %3814
    %3816 = vrot.lane.b32.xlu0 %v476, 32
    %v3817 = vpop.permute.xlu0 %3816
    %v3818 = vsel %vm624, %v3787, 0
    %v3820 = vsel %vm624, %v3789, 0
    %v3822 = vsel %vm624, %v3791, 0
    %v3824 = vsel %vm624, %v3793, 0
    %v3826 = vsel %vm624, %v3795, 0
    %v3828 = vsel %vm624, %v3797, 0
    %v3830 = vsel %vm624, %v3799, 0
    %v3832 = vsel %vm624, %v3801, 0
    %v3834 = vsel %vm624, %v3803, 0
    %v3836 = vsel %vm624, %v3805, 0
    %v3838 = vsel %vm624, %v3807, 0
    %v3840 = vsel %vm624, %v3809, 0
    %v3842 = vsel %vm624, %v3811, 0
    %v3844 = vsel %vm624, %v3813, 0
    %v3846 = vsel %vm624, %v3815, 0
    %v3848 = vsel %vm624, %v3817, 0
    %3850 = vmatprep.subr.mxu0 0.0
    %3851 = vmatpush1.xpose.msra.mxu0 %v3834
    %3852 = vmatprep.subr.mxu0 0.0
    %3853 = vmatpush1.xpose.msra.mxu0 %v3836
    %3854 = vmatprep.subr.mxu0 0.0
    %3855 = vmatpush1.xpose.msra.mxu0 %v3838
    %3856 = vmatprep.subr.mxu0 0.0
    %3857 = vmatpush1.xpose.msra.mxu0 %v3840
    %3858 = vmatprep.subr.mxu0 0.0
    %3859 = vmatpush1.xpose.msra.mxu0 %v3842
    %3860 = vmatprep.subr.mxu0 0.0
    %3861 = vmatpush1.xpose.msra.mxu0 %v3844
    %3862 = vmatprep.subr.mxu0 0.0
    %3863 = vmatpush1.xpose.msra.mxu0 %v3846
    %3864 = vmatprep.subr.mxu0 0.0
    %3865 = vmatpush1.xpose.msra.mxu0 %v3848
    %3866 = vmatprep.subr.mxu0 0.0
    %3867 = vmatpush1.xpose.msra.mxu0 0.0
    %3868 = vmatprep.subr.mxu0 0.0
    %3869 = vmatpush1.xpose.msra.mxu0 0.0
    %3870 = vmatprep.subr.mxu0 0.0
    %3871 = vmatpush1.xpose.msra.mxu0 0.0
    %3872 = vmatprep.subr.mxu0 0.0
    %3873 = vmatpush1.xpose.msra.mxu0 0.0
    %3874 = vmatprep.subr.mxu0 0.0
    %3875 = vmatpush1.xpose.msra.mxu0 0.0
    %3876 = vmatprep.subr.mxu0 0.0
    %3877 = vmatpush1.xpose.msra.mxu0 0.0
    %3878 = vmatprep.subr.mxu0 0.0
    %3879 = vmatpush1.xpose.msra.mxu0 0.0
    %3880 = vmatprep.subr.mxu0 0.0
    %3881 = vmatpush1.xpose.msra.mxu0 0.0
    %3882 = vmatprep.subr.mxu0 0.0
    %3883 = vmatpush1.xpose.msra.mxu0 0.0
    %3884 = vmatprep.subr.mxu0 0.0
    %3885 = vmatpush1.xpose.msra.mxu0 0.0
    %3886 = vmatprep.subr.mxu0 0.0
    %3887 = vmatpush1.xpose.msra.mxu0 0.0
    %3888 = vmatprep.subr.mxu0 0.0
    %3889 = vmatpush1.xpose.msra.mxu0 0.0
    %3890 = vmatprep.subr.mxu0 0.0
    %3891 = vmatpush1.xpose.msra.mxu0 0.0
    %3892 = vmatprep.subr.mxu0 0.0
    %3893 = vmatpush1.xpose.msra.mxu0 0.0
    %3894 = vmatprep.subr.mxu0 0.0
    %3895 = vmatpush1.xpose.msra.mxu0 0.0
    %3896 = vmatprep.subr.mxu0 0.0
    %3897 = vmatpush1.xpose.msra.mxu0 0.0
    %3898 = vmatprep.subr.mxu0 0.0
    %3899 = vmatpush1.xpose.msra.mxu0 0.0
    %3900 = vmatprep.subr.mxu0 0.0
    %3901 = vmatpush1.xpose.msra.mxu0 0.0
    %3902 = vmatprep.subr.mxu0 0.0
    %3903 = vmatpush1.xpose.msra.mxu0 0.0
    %3904 = vmatprep.subr.mxu0 0.0
    %3905 = vmatpush1.xpose.msra.mxu0 0.0
    %3906 = vmatprep.subr.mxu0 0.0
    %3907 = vmatpush1.xpose.msra.mxu0 0.0
    %3908 = vmatprep.subr.mxu0 0.0
    %3909 = vmatpush1.xpose.msra.mxu0 0.0
    %3910 = vmatprep.subr.mxu0 0.0
    %3911 = vmatpush1.xpose.msra.mxu0 0.0
    %3912 = vmatprep.subr.mxu0 0.0
    %3913 = vmatpush1.xpose.msra.mxu0 0.0
    %3914 = vmatprep.mubr.f32.mxu0 0.0
    %3915 = vmatmul.mubr.f32.gmra.mrb[0].mxu0 %v3818
    %v3916 = vpop.f32.mrb[0].mxu0
    %v3917 = vadd.f32 0.0, %v3916
    %v3918 = vpop.f32.mrb[0].mxu0
    %3919 = vmatprep.mubr.f32.mxu0 0.0
    %3920 = vmatmul.mubr.f32.gmra.mrb[0].mxu0 %v3820
    %v3921 = vpop.f32.mrb[0].mxu0
    %v3922 = vadd.f32 0.0, %v3921
    %v3923 = vpop.f32.mrb[0].mxu0
    %3924 = vmatprep.mubr.f32.mxu0 0.0
    %3925 = vmatmul.mubr.f32.gmra.mrb[0].mxu0 %v3822
    %v3926 = vpop.f32.mrb[0].mxu0
    %v3927 = vadd.f32 0.0, %v3926
    %v3928 = vpop.f32.mrb[0].mxu0
    %3929 = vmatprep.mubr.f32.mxu0 0.0
    %3930 = vmatmul.mubr.f32.gmra.mrb[0].mxu0 %v3824
    %v3931 = vpop.f32.mrb[0].mxu0
    %v3932 = vadd.f32 0.0, %v3931
    %v3933 = vpop.f32.mrb[0].mxu0
    %3934 = vmatprep.mubr.f32.mxu0 0.0
    %3935 = vmatmul.mubr.f32.gmra.mrb[0].mxu0 %v3826
    %v3936 = vpop.f32.mrb[0].mxu0
    %v3937 = vadd.f32 0.0, %v3936
    %v3938 = vpop.f32.mrb[0].mxu0
    %3939 = vmatprep.mubr.f32.mxu0 0.0
    %3940 = vmatmul.mubr.f32.gmra.mrb[0].mxu0 %v3828
    %v3941 = vpop.f32.mrb[0].mxu0
    %v3942 = vadd.f32 0.0, %v3941
    %v3943 = vpop.f32.mrb[0].mxu0
    %3944 = vmatprep.mubr.f32.mxu0 0.0
    %3945 = vmatmul.mubr.f32.gmra.mrb[0].mxu0 %v3830
    %v3946 = vpop.f32.mrb[0].mxu0
    %v3947 = vadd.f32 0.0, %v3946
    %v3948 = vpop.f32.mrb[0].mxu0
    %3949 = vmatprep.mubr.f32.mxu0 0.0
    %3950 = vmatmul.mubr.f32.gmra.mrb[0].mxu0 %v3832
    %v3951 = vpop.f32.mrb[0].mxu0
    %v3952 = vadd.f32 0.0, %v3951
    %v3953 = vpop.f32.mrb[0].mxu0
    %3954 = vdwg.mxu0
    %v3955 = vsel %vm931, %v3748, -inf
    %3956 = vmax.xlane.f32.xlu0 %v3955
    %v3957 = vpop.xlane.xlu0 %3956
    %v3958 = vsel %vm931, %v3753, -inf
    %3959 = vmax.xlane.f32.xlu0 %v3958
    %v3960 = vpop.xlane.xlu0 %3959
    %v3961 = vsel %vm931, %v3758, -inf
    %3962 = vmax.xlane.f32.xlu0 %v3961
    %v3963 = vpop.xlane.xlu0 %3962
    %v3964 = vsel %vm931, %v3763, -inf
    %3965 = vmax.xlane.f32.xlu0 %v3964
    %v3966 = vpop.xlane.xlu0 %3965
    %v3967 = vsel %vm931, %v3768, -inf
    %3968 = vmax.xlane.f32.xlu0 %v3967
    %v3969 = vpop.xlane.xlu0 %3968
    %v3970 = vsel %vm931, %v3773, -inf
    %3971 = vmax.xlane.f32.xlu0 %v3970
    %v3972 = vpop.xlane.xlu0 %3971
    %v3973 = vsel %vm931, %v3778, -inf
    %3974 = vmax.xlane.f32.xlu0 %v3973
    %v3975 = vpop.xlane.xlu0 %3974
    %v3976 = vsel %vm931, %v3783, -inf
    %3977 = vmax.xlane.f32.xlu0 %v3976
    %v3978 = vpop.xlane.xlu0 %3977
    %v3979 = vsel %vm931, %v3917, -inf
    %3980 = vmax.xlane.f32.xlu0 %v3979
    %v3981 = vpop.xlane.xlu0 %3980
    %v3982 = vsel %vm931, %v3922, -inf
    %3983 = vmax.xlane.f32.xlu0 %v3982
    %v3984 = vpop.xlane.xlu0 %3983
    %v3985 = vsel %vm931, %v3927, -inf
    %3986 = vmax.xlane.f32.xlu0 %v3985
    %v3987 = vpop.xlane.xlu0 %3986
    %v3988 = vsel %vm931, %v3932, -inf
    %3989 = vmax.xlane.f32.xlu0 %v3988
    %v3990 = vpop.xlane.xlu0 %3989
    %v3991 = vsel %vm931, %v3937, -inf
    %3992 = vmax.xlane.f32.xlu0 %v3991
    %v3993 = vpop.xlane.xlu0 %3992
    %v3994 = vsel %vm931, %v3942, -inf
    %3995 = vmax.xlane.f32.xlu0 %v3994
    %v3996 = vpop.xlane.xlu0 %3995
    %v3997 = vsel %vm931, %v3947, -inf
    %3998 = vmax.xlane.f32.xlu0 %v3997
    %v3999 = vpop.xlane.xlu0 %3998
    %v4000 = vsel %vm931, %v3952, -inf
    %4001 = vmax.xlane.f32.xlu0 %v4000
    %v4002 = vpop.xlane.xlu0 %4001
    %v4003 = vsub.f32 %v3748, %v3957
    %v4004 = vsub.f32 %v3753, %v3960
    %v4005 = vsub.f32 %v3758, %v3963
    %v4006 = vsub.f32 %v3763, %v3966
    %v4007 = vsub.f32 %v3768, %v3969
    %v4008 = vsub.f32 %v3773, %v3972
    %v4009 = vsub.f32 %v3778, %v3975
    %v4010 = vsub.f32 %v3783, %v3978
    %v4011 = vsub.f32 %v3917, %v3981
    %v4012 = vsub.f32 %v3922, %v3984
    %v4013 = vsub.f32 %v3927, %v3987
    %v4014 = vsub.f32 %v3932, %v3990
    %v4015 = vsub.f32 %v3937, %v3993
    %v4016 = vsub.f32 %v3942, %v3996
    %v4017 = vsub.f32 %v3947, %v3999
    %v4018 = vsub.f32 %v3952, %v4002
    %v4019 = vmul.f32 %v4003, 1.442695
    %v4020 = vpow.pop %v4019
    %v4021 = vmul.f32 %v4004, 1.442695
    %v4022 = vpow.pop %v4021
    %v4023 = vmul.f32 %v4005, 1.442695
    %v4024 = vpow.pop %v4023
    %v4025 = vmul.f32 %v4006, 1.442695
    %v4026 = vpow.pop %v4025
    %v4027 = vmul.f32 %v4007, 1.442695
    %v4028 = vpow.pop %v4027
    %v4029 = vmul.f32 %v4008, 1.442695
    %v4030 = vpow.pop %v4029
    %v4031 = vmul.f32 %v4009, 1.442695
    %v4032 = vpow.pop %v4031
    %v4033 = vmul.f32 %v4010, 1.442695
    %v4034 = vpow.pop %v4033
    %v4035 = vmul.f32 %v4011, 1.442695
    %v4036 = vpow.pop %v4035
    %v4037 = vmul.f32 %v4012, 1.442695
    %v4038 = vpow.pop %v4037
    %v4039 = vmul.f32 %v4013, 1.442695
    %v4040 = vpow.pop %v4039
    %v4041 = vmul.f32 %v4014, 1.442695
    %v4042 = vpow.pop %v4041
    %v4043 = vmul.f32 %v4015, 1.442695
    %v4044 = vpow.pop %v4043
    %v4045 = vmul.f32 %v4016, 1.442695
    %v4046 = vpow.pop %v4045
    %v4047 = vmul.f32 %v4017, 1.442695
    %v4048 = vpow.pop %v4047
    %v4049 = vmul.f32 %v4018, 1.442695
    %v4050 = vpow.pop %v4049
    %v4051 = vsel %vm931, %v4020, 0.0
    %4052 = vadd.xlane.f32.xlu0 %v4051
    %v4053 = vpop.xlane.xlu0 %4052
    %v4054 = vsel %vm931, %v4022, 0.0
    %4055 = vadd.xlane.f32.xlu0 %v4054
    %v4056 = vpop.xlane.xlu0 %4055
    %v4057 = vsel %vm931, %v4024, 0.0
    %4058 = vadd.xlane.f32.xlu0 %v4057
    %v4059 = vpop.xlane.xlu0 %4058
    %v4060 = vsel %vm931, %v4026, 0.0
    %4061 = vadd.xlane.f32.xlu0 %v4060
    %v4062 = vpop.xlane.xlu0 %4061
    %v4063 = vsel %vm931, %v4028, 0.0
    %4064 = vadd.xlane.f32.xlu0 %v4063
    %v4065 = vpop.xlane.xlu0 %4064
    %v4066 = vsel %vm931, %v4030, 0.0
    %4067 = vadd.xlane.f32.xlu0 %v4066
    %v4068 = vpop.xlane.xlu0 %4067
    %v4069 = vsel %vm931, %v4032, 0.0
    %4070 = vadd.xlane.f32.xlu0 %v4069
    %v4071 = vpop.xlane.xlu0 %4070
    %v4072 = vsel %vm931, %v4034, 0.0
    %4073 = vadd.xlane.f32.xlu0 %v4072
    %v4074 = vpop.xlane.xlu0 %4073
    %v4075 = vsel %vm931, %v4036, 0.0
    %4076 = vadd.xlane.f32.xlu0 %v4075
    %v4077 = vpop.xlane.xlu0 %4076
    %v4078 = vsel %vm931, %v4038, 0.0
    %4079 = vadd.xlane.f32.xlu0 %v4078
    %v4080 = vpop.xlane.xlu0 %4079
    %v4081 = vsel %vm931, %v4040, 0.0
    %4082 = vadd.xlane.f32.xlu0 %v4081
    %v4083 = vpop.xlane.xlu0 %4082
    %v4084 = vsel %vm931, %v4042, 0.0
    %4085 = vadd.xlane.f32.xlu0 %v4084
    %v4086 = vpop.xlane.xlu0 %4085
    %v4087 = vsel %vm931, %v4044, 0.0
    %4088 = vadd.xlane.f32.xlu0 %v4087
    %v4089 = vpop.xlane.xlu0 %4088
    %v4090 = vsel %vm931, %v4046, 0.0
    %4091 = vadd.xlane.f32.xlu0 %v4090
    %v4092 = vpop.xlane.xlu0 %4091
    %v4093 = vsel %vm931, %v4048, 0.0
    %4094 = vadd.xlane.f32.xlu0 %v4093
    %v4095 = vpop.xlane.xlu0 %4094
    %v4096 = vsel %vm931, %v4050, 0.0
    %4097 = vadd.xlane.f32.xlu0 %v4096
    %v4098 = vpop.xlane.xlu0 %4097
    %v4099 = vrcp.pop %v4053
    %v4100 = vmul.f32 %v4020, %v4099
    %v4101 = vrcp.pop %v4056
    %v4102 = vmul.f32 %v4022, %v4101
    %v4103 = vrcp.pop %v4059
    %v4104 = vmul.f32 %v4024, %v4103
    %v4105 = vrcp.pop %v4062
    %v4106 = vmul.f32 %v4026, %v4105
    %v4107 = vrcp.pop %v4065
    %v4108 = vmul.f32 %v4028, %v4107
    %v4109 = vrcp.pop %v4068
    %v4110 = vmul.f32 %v4030, %v4109
    %v4111 = vrcp.pop %v4071
    %v4112 = vmul.f32 %v4032, %v4111
    %v4113 = vrcp.pop %v4074
    %v4114 = vmul.f32 %v4034, %v4113
    %v4115 = vrcp.pop %v4077
    %v4116 = vmul.f32 %v4036, %v4115
    %v4117 = vrcp.pop %v4080
    %v4118 = vmul.f32 %v4038, %v4117
    %v4119 = vrcp.pop %v4083
    %v4120 = vmul.f32 %v4040, %v4119
    %v4121 = vrcp.pop %v4086
    %v4122 = vmul.f32 %v4042, %v4121
    %v4123 = vrcp.pop %v4089
    %v4124 = vmul.f32 %v4044, %v4123
    %v4125 = vrcp.pop %v4092
    %v4126 = vmul.f32 %v4046, %v4125
    %v4127 = vrcp.pop %v4095
    %v4128 = vmul.f32 %v4048, %v4127
    %v4129 = vrcp.pop %v4098
    %v4130 = vmul.f32 %v4050, %v4129
    %4131 = vrot.lane.b32.xlu0 %v546, 32
    %v4132 = vpop.permute.xlu0 %4131
    %4133 = vrot.lane.b32.xlu0 %v551, 32
    %v4134 = vpop.permute.xlu0 %4133
    %4135 = vrot.lane.b32.xlu0 %v556, 32
    %v4136 = vpop.permute.xlu0 %4135
    %4137 = vrot.lane.b32.xlu0 %v561, 32
    %v4138 = vpop.permute.xlu0 %4137
    %4139 = vrot.lane.b32.xlu0 %v566, 32
    %v4140 = vpop.permute.xlu0 %4139
    %4141 = vrot.lane.b32.xlu0 %v571, 32
    %v4142 = vpop.permute.xlu0 %4141
    %4143 = vrot.lane.b32.xlu0 %v576, 32
    %v4144 = vpop.permute.xlu0 %4143
    %4145 = vrot.lane.b32.xlu0 %v581, 32
    %v4146 = vpop.permute.xlu0 %4145
    %v4156 = vsel %vm931, %v4100, 0
    %v4159 = vsel %vm931, %v4102, 0
    %v4162 = vsel %vm931, %v4104, 0
    %v4165 = vsel %vm931, %v4106, 0
    %v4168 = vsel %vm931, %v4108, 0
    %v4171 = vsel %vm931, %v4110, 0
    %v4174 = vsel %vm931, %v4112, 0
    %v4177 = vsel %vm931, %v4114, 0
    %4179 = vmatprep.subr.mxu0 0.0
    %4180 = vmatpush1.msra.mxu0 %v4132
    %4181 = vmatprep.subr.mxu0 0.0
    %4182 = vmatpush1.msra.mxu0 %v4134
    %4183 = vmatprep.subr.mxu0 0.0
    %4184 = vmatpush1.msra.mxu0 %v4136
    %4185 = vmatprep.subr.mxu0 0.0
    %4186 = vmatpush1.msra.mxu0 %v4138
    %4187 = vmatprep.subr.mxu0 0.0
    %4188 = vmatpush1.msra.mxu0 %v4140
    %4189 = vmatprep.subr.mxu0 0.0
    %4190 = vmatpush1.msra.mxu0 %v4142
    %4191 = vmatprep.subr.mxu0 0.0
    %4192 = vmatpush1.msra.mxu0 %v4144
    %4193 = vmatprep.subr.mxu0 0.0
    %4194 = vmatpush1.msra.mxu0 %v4146
    %4195 = vmatprep.subr.mxu0 0.0
    %4196 = vmatpush1.msra.mxu0 0.0
    %4197 = vmatprep.subr.mxu0 0.0
    %4198 = vmatpush1.msra.mxu0 0.0
    %4199 = vmatprep.subr.mxu0 0.0
    %4200 = vmatpush1.msra.mxu0 0.0
    %4201 = vmatprep.subr.mxu0 0.0
    %4202 = vmatpush1.msra.mxu0 0.0
    %4203 = vmatprep.subr.mxu0 0.0
    %4204 = vmatpush1.msra.mxu0 0.0
    %4205 = vmatprep.subr.mxu0 0.0
    %4206 = vmatpush1.msra.mxu0 0.0
    %4207 = vmatprep.subr.mxu0 0.0
    %4208 = vmatpush1.msra.mxu0 0.0
    %4209 = vmatprep.subr.mxu0 0.0
    %4210 = vmatpush1.msra.mxu0 0.0
    %4211 = vmatprep.subr.mxu0 0.0
    %4212 = vmatpush1.msra.mxu0 0.0
    %4213 = vmatprep.subr.mxu0 0.0
    %4214 = vmatpush1.msra.mxu0 0.0
    %4215 = vmatprep.subr.mxu0 0.0
    %4216 = vmatpush1.msra.mxu0 0.0
    %4217 = vmatprep.subr.mxu0 0.0
    %4218 = vmatpush1.msra.mxu0 0.0
    %4219 = vmatprep.subr.mxu0 0.0
    %4220 = vmatpush1.msra.mxu0 0.0
    %4221 = vmatprep.subr.mxu0 0.0
    %4222 = vmatpush1.msra.mxu0 0.0
    %4223 = vmatprep.subr.mxu0 0.0
    %4224 = vmatpush1.msra.mxu0 0.0
    %4225 = vmatprep.subr.mxu0 0.0
    %4226 = vmatpush1.msra.mxu0 0.0
    %4227 = vmatprep.subr.mxu0 0.0
    %4228 = vmatpush1.msra.mxu0 0.0
    %4229 = vmatprep.subr.mxu0 0.0
    %4230 = vmatpush1.msra.mxu0 0.0
    %4231 = vmatprep.subr.mxu0 0.0
    %4232 = vmatpush1.msra.mxu0 0.0
    %4233 = vmatprep.subr.mxu0 0.0
    %4234 = vmatpush1.msra.mxu0 0.0
    %4235 = vmatprep.subr.mxu0 0.0
    %4236 = vmatpush1.msra.mxu0 0.0
    %4237 = vmatprep.subr.mxu0 0.0
    %4238 = vmatpush1.msra.mxu0 0.0
    %4239 = vmatprep.subr.mxu0 0.0
    %4240 = vmatpush1.msra.mxu0 0.0
    %4241 = vmatprep.subr.mxu0 0.0
    %4242 = vmatpush1.msra.mxu0 0.0
    %4243 = vmatprep.mubr.f32.mxu0 0.0
    %4244 = vmatmul.mubr.f32.gmra.mrb[0].mxu0 %v4156
    %v4245 = vpop.f32.mrb[0].mxu0
    %v4246 = vadd.f32 0.0, %v4245
    %v4247 = vpop.f32.mrb[0].mxu0
    %4248 = vmatprep.mubr.f32.mxu0 0.0
    %4249 = vmatmul.mubr.f32.gmra.mrb[0].mxu0 %v4159
    %v4250 = vpop.f32.mrb[0].mxu0
    %v4251 = vadd.f32 0.0, %v4250
    %v4252 = vpop.f32.mrb[0].mxu0
    %4253 = vmatprep.mubr.f32.mxu0 0.0
    %4254 = vmatmul.mubr.f32.gmra.mrb[0].mxu0 %v4162
    %v4255 = vpop.f32.mrb[0].mxu0
    %v4256 = vadd.f32 0.0, %v4255
    %v4257 = vpop.f32.mrb[0].mxu0
    %4258 = vmatprep.mubr.f32.mxu0 0.0
    %4259 = vmatmul.mubr.f32.gmra.mrb[0].mxu0 %v4165
    %v4260 = vpop.f32.mrb[0].mxu0
    %v4261 = vadd.f32 0.0, %v4260
    %v4262 = vpop.f32.mrb[0].mxu0
    %4263 = vmatprep.mubr.f32.mxu0 0.0
    %4264 = vmatmul.mubr.f32.gmra.mrb[0].mxu0 %v4168
    %v4265 = vpop.f32.mrb[0].mxu0
    %v4266 = vadd.f32 0.0, %v4265
    %v4267 = vpop.f32.mrb[0].mxu0
    %4268 = vmatprep.mubr.f32.mxu0 0.0
    %4269 = vmatmul.mubr.f32.gmra.mrb[0].mxu0 %v4171
    %v4270 = vpop.f32.mrb[0].mxu0
    %v4271 = vadd.f32 0.0, %v4270
    %v4272 = vpop.f32.mrb[0].mxu0
    %4273 = vmatprep.mubr.f32.mxu0 0.0
    %4274 = vmatmul.mubr.f32.gmra.mrb[0].mxu0 %v4174
    %v4275 = vpop.f32.mrb[0].mxu0
    %v4276 = vadd.f32 0.0, %v4275
    %v4277 = vpop.f32.mrb[0].mxu0
    %4278 = vmatprep.mubr.f32.mxu0 0.0
    %4279 = vmatmul.mubr.f32.gmra.mrb[0].mxu0 %v4177
    %v4280 = vpop.f32.mrb[0].mxu0
    %v4281 = vadd.f32 0.0, %v4280
    %v4282 = vpop.f32.mrb[0].mxu0
    %4283 = vdwg.mxu0
    %4284 = vrot.lane.b32.xlu0 %v586, 32
    %v4285 = vpop.permute.xlu0 %4284
    %4286 = vrot.lane.b32.xlu0 %v591, 32
    %v4287 = vpop.permute.xlu0 %4286
    %4288 = vrot.lane.b32.xlu0 %v596, 32
    %v4289 = vpop.permute.xlu0 %4288
    %4290 = vrot.lane.b32.xlu0 %v601, 32
    %v4291 = vpop.permute.xlu0 %4290
    %4292 = vrot.lane.b32.xlu0 %v606, 32
    %v4293 = vpop.permute.xlu0 %4292
    %4294 = vrot.lane.b32.xlu0 %v611, 32
    %v4295 = vpop.permute.xlu0 %4294
    %4296 = vrot.lane.b32.xlu0 %v616, 32
    %v4297 = vpop.permute.xlu0 %4296
    %4298 = vrot.lane.b32.xlu0 %v621, 32
    %v4299 = vpop.permute.xlu0 %4298
    %v4309 = vsel %vm931, %v4116, 0
    %v4312 = vsel %vm931, %v4118, 0
    %v4315 = vsel %vm931, %v4120, 0
    %v4318 = vsel %vm931, %v4122, 0
    %v4321 = vsel %vm931, %v4124, 0
    %v4324 = vsel %vm931, %v4126, 0
    %v4327 = vsel %vm931, %v4128, 0
    %v4330 = vsel %vm931, %v4130, 0
    %4332 = vmatprep.subr.mxu0 0.0
    %4333 = vmatpush1.msra.mxu0 %v4285
    %4334 = vmatprep.subr.mxu0 0.0
    %4335 = vmatpush1.msra.mxu0 %v4287
    %4336 = vmatprep.subr.mxu0 0.0
    %4337 = vmatpush1.msra.mxu0 %v4289
    %4338 = vmatprep.subr.mxu0 0.0
    %4339 = vmatpush1.msra.mxu0 %v4291
    %4340 = vmatprep.subr.mxu0 0.0
    %4341 = vmatpush1.msra.mxu0 %v4293
    %4342 = vmatprep.subr.mxu0 0.0
    %4343 = vmatpush1.msra.mxu0 %v4295
    %4344 = vmatprep.subr.mxu0 0.0
    %4345 = vmatpush1.msra.mxu0 %v4297
    %4346 = vmatprep.subr.mxu0 0.0
    %4347 = vmatpush1.msra.mxu0 %v4299
    %4348 = vmatprep.subr.mxu0 0.0
    %4349 = vmatpush1.msra.mxu0 0.0
    %4350 = vmatprep.subr.mxu0 0.0
    %4351 = vmatpush1.msra.mxu0 0.0
    %4352 = vmatprep.subr.mxu0 0.0
    %4353 = vmatpush1.msra.mxu0 0.0
    %4354 = vmatprep.subr.mxu0 0.0
    %4355 = vmatpush1.msra.mxu0 0.0
    %4356 = vmatprep.subr.mxu0 0.0
    %4357 = vmatpush1.msra.mxu0 0.0
    %4358 = vmatprep.subr.mxu0 0.0
    %4359 = vmatpush1.msra.mxu0 0.0
    %4360 = vmatprep.subr.mxu0 0.0
    %4361 = vmatpush1.msra.mxu0 0.0
    %4362 = vmatprep.subr.mxu0 0.0
    %4363 = vmatpush1.msra.mxu0 0.0
    %4364 = vmatprep.subr.mxu0 0.0
    %4365 = vmatpush1.msra.mxu0 0.0
    %4366 = vmatprep.subr.mxu0 0.0
    %4367 = vmatpush1.msra.mxu0 0.0
    %4368 = vmatprep.subr.mxu0 0.0
    %4369 = vmatpush1.msra.mxu0 0.0
    %4370 = vmatprep.subr.mxu0 0.0
    %4371 = vmatpush1.msra.mxu0 0.0
    %4372 = vmatprep.subr.mxu0 0.0
    %4373 = vmatpush1.msra.mxu0 0.0
    %4374 = vmatprep.subr.mxu0 0.0
    %4375 = vmatpush1.msra.mxu0 0.0
    %4376 = vmatprep.subr.mxu0 0.0
    %4377 = vmatpush1.msra.mxu0 0.0
    %4378 = vmatprep.subr.mxu0 0.0
    %4379 = vmatpush1.msra.mxu0 0.0
    %4380 = vmatprep.subr.mxu0 0.0
    %4381 = vmatpush1.msra.mxu0 0.0
    %4382 = vmatprep.subr.mxu0 0.0
    %4383 = vmatpush1.msra.mxu0 0.0
    %4384 = vmatprep.subr.mxu0 0.0
    %4385 = vmatpush1.msra.mxu0 0.0
    %4386 = vmatprep.subr.mxu0 0.0
    %4387 = vmatpush1.msra.mxu0 0.0
    %4388 = vmatprep.subr.mxu0 0.0
    %4389 = vmatpush1.msra.mxu0 0.0
    %4390 = vmatprep.subr.mxu0 0.0
    %4391 = vmatpush1.msra.mxu0 0.0
    %4392 = vmatprep.subr.mxu0 0.0
    %4393 = vmatpush1.msra.mxu0 0.0
    %4394 = vmatprep.subr.mxu0 0.0
    %4395 = vmatpush1.msra.mxu0 0.0
    %4396 = vmatprep.mubr.f32.mxu0 0.0
    %4397 = vmatmul.mubr.f32.gmra.mrb[0].mxu0 %v4309
    %v4398 = vpop.f32.mrb[0].mxu0
    %v4399 = vadd.f32 0.0, %v4398
    %v4400 = vpop.f32.mrb[0].mxu0
    %4401 = vmatprep.mubr.f32.mxu0 0.0
    %4402 = vmatmul.mubr.f32.gmra.mrb[0].mxu0 %v4312
    %v4403 = vpop.f32.mrb[0].mxu0
    %v4404 = vadd.f32 0.0, %v4403
    %v4405 = vpop.f32.mrb[0].mxu0
    %4406 = vmatprep.mubr.f32.mxu0 0.0
    %4407 = vmatmul.mubr.f32.gmra.mrb[0].mxu0 %v4315
    %v4408 = vpop.f32.mrb[0].mxu0
    %v4409 = vadd.f32 0.0, %v4408
    %v4410 = vpop.f32.mrb[0].mxu0
    %4411 = vmatprep.mubr.f32.mxu0 0.0
    %4412 = vmatmul.mubr.f32.gmra.mrb[0].mxu0 %v4318
    %v4413 = vpop.f32.mrb[0].mxu0
    %v4414 = vadd.f32 0.0, %v4413
    %v4415 = vpop.f32.mrb[0].mxu0
    %4416 = vmatprep.mubr.f32.mxu0 0.0
    %4417 = vmatmul.mubr.f32.gmra.mrb[0].mxu0 %v4321
    %v4418 = vpop.f32.mrb[0].mxu0
    %v4419 = vadd.f32 0.0, %v4418
    %v4420 = vpop.f32.mrb[0].mxu0
    %4421 = vmatprep.mubr.f32.mxu0 0.0
    %4422 = vmatmul.mubr.f32.gmra.mrb[0].mxu0 %v4324
    %v4423 = vpop.f32.mrb[0].mxu0
    %v4424 = vadd.f32 0.0, %v4423
    %v4425 = vpop.f32.mrb[0].mxu0
    %4426 = vmatprep.mubr.f32.mxu0 0.0
    %4427 = vmatmul.mubr.f32.gmra.mrb[0].mxu0 %v4327
    %v4428 = vpop.f32.mrb[0].mxu0
    %v4429 = vadd.f32 0.0, %v4428
    %v4430 = vpop.f32.mrb[0].mxu0
    %4431 = vmatprep.mubr.f32.mxu0 0.0
    %4432 = vmatmul.mubr.f32.gmra.mrb[0].mxu0 %v4330
    %v4433 = vpop.f32.mrb[0].mxu0
    %v4434 = vadd.f32 0.0, %v4433
    %v4435 = vpop.f32.mrb[0].mxu0
    %4436 = vdwg.mxu0
    %v4438 = vsel %vm624, %v4246, 0
    %v4441 = vsel %vm624, %v4251, 0
    %v4444 = vsel %vm624, %v4256, 0
    %v4447 = vsel %vm624, %v4261, 0
    %v4450 = vsel %vm624, %v4266, 0
    %v4453 = vsel %vm624, %v4271, 0
    %v4456 = vsel %vm624, %v4276, 0
    %v4459 = vsel %vm624, %v4281, 0
    %v4462 = vsel %vm624, %v4399, 0
    %v4465 = vsel %vm624, %v4404, 0
    %v4468 = vsel %vm624, %v4409, 0
    %v4471 = vsel %vm624, %v4414, 0
    %v4474 = vsel %vm624, %v4419, 0
    %v4477 = vsel %vm624, %v4424, 0
    %v4480 = vsel %vm624, %v4429, 0
    %v4483 = vsel %vm624, %v4434, 0
    %4485 = vmatprep.subr.mxu0 0.0
    %4486 = vmatpush1.msra.mxu0 %v168
    %4487 = vmatprep.subr.mxu0 0.0
    %4488 = vmatpush1.msra.mxu0 %v169
    %4489 = vmatprep.subr.mxu0 0.0
    %4490 = vmatpush1.msra.mxu0 %v170
    %4491 = vmatprep.subr.mxu0 0.0
    %4492 = vmatpush1.msra.mxu0 %v171
    %4493 = vmatprep.subr.mxu0 0.0
    %4494 = vmatpush1.msra.mxu0 0.0
    %4495 = vmatprep.subr.mxu0 0.0
    %4496 = vmatpush1.msra.mxu0 0.0
    %4497 = vmatprep.subr.mxu0 0.0
    %4498 = vmatpush1.msra.mxu0 0.0
    %4499 = vmatprep.subr.mxu0 0.0
    %4500 = vmatpush1.msra.mxu0 0.0
    %4501 = vmatprep.subr.mxu0 0.0
    %4502 = vmatpush1.msra.mxu0 0.0
    %4503 = vmatprep.subr.mxu0 0.0
    %4504 = vmatpush1.msra.mxu0 0.0
    %4505 = vmatprep.subr.mxu0 0.0
    %4506 = vmatpush1.msra.mxu0 0.0
    %4507 = vmatprep.subr.mxu0 0.0
    %4508 = vmatpush1.msra.mxu0 0.0
    %4509 = vmatprep.subr.mxu0 0.0
    %4510 = vmatpush1.msra.mxu0 0.0
    %4511 = vmatprep.subr.mxu0 0.0
    %4512 = vmatpush1.msra.mxu0 0.0
    %4513 = vmatprep.subr.mxu0 0.0
    %4514 = vmatpush1.msra.mxu0 0.0
    %4515 = vmatprep.subr.mxu0 0.0
    %4516 = vmatpush1.msra.mxu0 0.0
    %4517 = vmatprep.subr.mxu0 0.0
    %4518 = vmatpush1.msra.mxu0 0.0
    %4519 = vmatprep.subr.mxu0 0.0
    %4520 = vmatpush1.msra.mxu0 0.0
    %4521 = vmatprep.subr.mxu0 0.0
    %4522 = vmatpush1.msra.mxu0 0.0
    %4523 = vmatprep.subr.mxu0 0.0
    %4524 = vmatpush1.msra.mxu0 0.0
    %4525 = vmatprep.subr.mxu0 0.0
    %4526 = vmatpush1.msra.mxu0 0.0
    %4527 = vmatprep.subr.mxu0 0.0
    %4528 = vmatpush1.msra.mxu0 0.0
    %4529 = vmatprep.subr.mxu0 0.0
    %4530 = vmatpush1.msra.mxu0 0.0
    %4531 = vmatprep.subr.mxu0 0.0
    %4532 = vmatpush1.msra.mxu0 0.0
    %4533 = vmatprep.subr.mxu0 0.0
    %4534 = vmatpush1.msra.mxu0 0.0
    %4535 = vmatprep.subr.mxu0 0.0
    %4536 = vmatpush1.msra.mxu0 0.0
    %4537 = vmatprep.subr.mxu0 0.0
    %4538 = vmatpush1.msra.mxu0 0.0
    %4539 = vmatprep.subr.mxu0 0.0
    %4540 = vmatpush1.msra.mxu0 0.0
    %4541 = vmatprep.subr.mxu0 0.0
    %4542 = vmatpush1.msra.mxu0 0.0
    %4543 = vmatprep.subr.mxu0 0.0
    %4544 = vmatpush1.msra.mxu0 0.0
    %4545 = vmatprep.subr.mxu0 0.0
    %4546 = vmatpush1.msra.mxu0 0.0
    %4547 = vmatprep.subr.mxu0 0.0
    %4548 = vmatpush1.msra.mxu0 0.0
    %4549 = vmatprep.mubr.f32.mxu0 0.0
    %4550 = vmatmul.mubr.f32.gmra.mrb[0].mxu0 %v4438
    %v4551 = vpop.f32.mrb[0].mxu0
    %v4552 = vadd.f32 0.0, %v4551
    %v4553 = vpop.f32.mrb[0].mxu0
    %4554 = vmatprep.mubr.f32.mxu0 0.0
    %4555 = vmatmul.mubr.f32.gmra.mrb[0].mxu0 %v4441
    %v4556 = vpop.f32.mrb[0].mxu0
    %v4557 = vadd.f32 0.0, %v4556
    %v4558 = vpop.f32.mrb[0].mxu0
    %4559 = vmatprep.mubr.f32.mxu0 0.0
    %4560 = vmatmul.mubr.f32.gmra.mrb[0].mxu0 %v4444
    %v4561 = vpop.f32.mrb[0].mxu0
    %v4562 = vadd.f32 0.0, %v4561
    %v4563 = vpop.f32.mrb[0].mxu0
    %4564 = vmatprep.mubr.f32.mxu0 0.0
    %4565 = vmatmul.mubr.f32.gmra.mrb[0].mxu0 %v4447
    %v4566 = vpop.f32.mrb[0].mxu0
    %v4567 = vadd.f32 0.0, %v4566
    %v4568 = vpop.f32.mrb[0].mxu0
    %4569 = vmatprep.mubr.f32.mxu0 0.0
    %4570 = vmatmul.mubr.f32.gmra.mrb[0].mxu0 %v4450
    %v4571 = vpop.f32.mrb[0].mxu0
    %v4572 = vadd.f32 0.0, %v4571
    %v4573 = vpop.f32.mrb[0].mxu0
    %4574 = vmatprep.mubr.f32.mxu0 0.0
    %4575 = vmatmul.mubr.f32.gmra.mrb[0].mxu0 %v4453
    %v4576 = vpop.f32.mrb[0].mxu0
    %v4577 = vadd.f32 0.0, %v4576
    %v4578 = vpop.f32.mrb[0].mxu0
    %4579 = vmatprep.mubr.f32.mxu0 0.0
    %4580 = vmatmul.mubr.f32.gmra.mrb[0].mxu0 %v4456
    %v4581 = vpop.f32.mrb[0].mxu0
    %v4582 = vadd.f32 0.0, %v4581
    %v4583 = vpop.f32.mrb[0].mxu0
    %4584 = vmatprep.mubr.f32.mxu0 0.0
    %4585 = vmatmul.mubr.f32.gmra.mrb[0].mxu0 %v4459
    %v4586 = vpop.f32.mrb[0].mxu0
    %v4587 = vadd.f32 0.0, %v4586
    %v4588 = vpop.f32.mrb[0].mxu0
    %4589 = vmatprep.mubr.f32.mxu0 0.0
    %4590 = vmatmul.mubr.f32.gmra.mrb[0].mxu0 %v4462
    %v4591 = vpop.f32.mrb[0].mxu0
    %v4592 = vadd.f32 0.0, %v4591
    %v4593 = vpop.f32.mrb[0].mxu0
    %4594 = vmatprep.mubr.f32.mxu0 0.0
    %4595 = vmatmul.mubr.f32.gmra.mrb[0].mxu0 %v4465
    %v4596 = vpop.f32.mrb[0].mxu0
    %v4597 = vadd.f32 0.0, %v4596
    %v4598 = vpop.f32.mrb[0].mxu0
    %4599 = vmatprep.mubr.f32.mxu0 0.0
    %4600 = vmatmul.mubr.f32.gmra.mrb[0].mxu0 %v4468
    %v4601 = vpop.f32.mrb[0].mxu0
    %v4602 = vadd.f32 0.0, %v4601
    %v4603 = vpop.f32.mrb[0].mxu0
    %4604 = vmatprep.mubr.f32.mxu0 0.0
    %4605 = vmatmul.mubr.f32.gmra.mrb[0].mxu0 %v4471
    %v4606 = vpop.f32.mrb[0].mxu0
    %v4607 = vadd.f32 0.0, %v4606
    %v4608 = vpop.f32.mrb[0].mxu0
    %4609 = vmatprep.mubr.f32.mxu0 0.0
    %4610 = vmatmul.mubr.f32.gmra.mrb[0].mxu0 %v4474
    %v4611 = vpop.f32.mrb[0].mxu0
    %v4612 = vadd.f32 0.0, %v4611
    %v4613 = vpop.f32.mrb[0].mxu0
    %4614 = vmatprep.mubr.f32.mxu0 0.0
    %4615 = vmatmul.mubr.f32.gmra.mrb[0].mxu0 %v4477
    %v4616 = vpop.f32.mrb[0].mxu0
    %v4617 = vadd.f32 0.0, %v4616
    %v4618 = vpop.f32.mrb[0].mxu0
    %4619 = vmatprep.mubr.f32.mxu0 0.0
    %4620 = vmatmul.mubr.f32.gmra.mrb[0].mxu0 %v4480
    %v4621 = vpop.f32.mrb[0].mxu0
    %v4622 = vadd.f32 0.0, %v4621
    %v4623 = vpop.f32.mrb[0].mxu0
    %4624 = vmatprep.mubr.f32.mxu0 0.0
    %4625 = vmatmul.mubr.f32.gmra.mrb[0].mxu0 %v4483
    %v4626 = vpop.f32.mrb[0].mxu0
    %v4627 = vadd.f32 0.0, %v4626
    %v4628 = vpop.f32.mrb[0].mxu0
    %4629 = vdwg.mxu0
    %v4630 = vadd.f32 %v3601, %v4552
    %v4631 = vadd.f32 %v3602, %v4557
    %v4632 = vadd.f32 %v3603, %v4562
    %v4633 = vadd.f32 %v3604, %v4567
    %v4634 = vadd.f32 %v3605, %v4572
    %v4635 = vadd.f32 %v3606, %v4577
    %v4636 = vadd.f32 %v3607, %v4582
    %v4637 = vadd.f32 %v3608, %v4587
    %v4638 = vadd.f32 %v3609, %v4592
    %v4639 = vadd.f32 %v3610, %v4597
    %v4640 = vadd.f32 %v3611, %v4602
    %v4641 = vadd.f32 %v3612, %v4607
    %v4642 = vadd.f32 %v3613, %v4612
    %v4643 = vadd.f32 %v3614, %v4617
    %v4644 = vadd.f32 %v3615, %v4622
    %v4645 = vadd.f32 %v3616, %v4627
    %v4647 = vlaneseq
    %v4648 = vshrl.u32 %v4647, 7
    %v4649 = vsub.s32 0, %v4648
    %v4650 = vrot.slane %v172, %v4649
    %v4652 = vadd.f32 %v4630, %v4650
    %v4653 = vadd.f32 %v4631, %v4650
    %v4654 = vadd.f32 %v4632, %v4650
    %v4655 = vadd.f32 %v4633, %v4650
    %v4656 = vadd.f32 %v4634, %v4650
    %v4657 = vadd.f32 %v4635, %v4650
    %v4658 = vadd.f32 %v4636, %v4650
    %v4659 = vadd.f32 %v4637, %v4650
    %v4660 = vadd.f32 %v4638, %v4650
    %v4661 = vadd.f32 %v4639, %v4650
    %v4662 = vadd.f32 %v4640, %v4650
    %v4663 = vadd.f32 %v4641, %v4650
    %v4664 = vadd.f32 %v4642, %v4650
    %v4665 = vadd.f32 %v4643, %v4650
    %v4666 = vadd.f32 %v4644, %v4650
    %v4667 = vadd.f32 %v4645, %v4650
    %4668 = vst [vmem:[#allocation11] sm:$0xff] %v4652
    %4669 = vst [vmem:[#allocation11 + $0x8] sm:$0xff] %v4653
    %4670 = vst [vmem:[#allocation11 + $0x10] sm:$0xff] %v4654
    %4671 = vst [vmem:[#allocation11 + $0x18] sm:$0xff] %v4655
    %4672 = vst [vmem:[#allocation11 + $0x20] sm:$0xff] %v4656
    %4673 = vst [vmem:[#allocation11 + $0x28] sm:$0xff] %v4657
    %4674 = vst [vmem:[#allocation11 + $0x30] sm:$0xff] %v4658
    %4675 = vst [vmem:[#allocation11 + $0x38] sm:$0xff] %v4659
    %4676 = vst [vmem:[#allocation11 + $0x40] sm:$0xff] %v4660
    %4677 = vst [vmem:[#allocation11 + $0x48] sm:$0xff] %v4661
    %4678 = vst [vmem:[#allocation11 + $0x50] sm:$0xff] %v4662
    %4679 = vst [vmem:[#allocation11 + $0x58] sm:$0xff] %v4663
    %4680 = vst [vmem:[#allocation11 + $0x60] sm:$0xff] %v4664
    %4681 = vst [vmem:[#allocation11 + $0x68] sm:$0xff] %v4665
    %4682 = vst [vmem:[#allocation11 + $0x70] sm:$0xff] %v4666
    %4683 = vst [vmem:[#allocation11 + $0x78] sm:$0xff] %v4667
    // Predicated region
    $region46: #{tpu_custom_call.1} parent=1 // pred_check
      _
    $region47: #{tpu_custom_call.1} parent=1 // pred_check_branch
      %4685 = sbr.rel (0) target = $region49
    $region48: #{tpu_custom_call.1} parent=1 // pred_region
      %s4687 = ssub.s32 2048, 2048
      %4688 = vsyncadd [#allocation4], %s4687
      %s4689 = sshll.u32 [#allocation11], 4
      %s4690 = int_to_ptr.vmem [resolvable:$true] %s4689
      %4695 = dma.vmem_to_hbm [thread:$0]  %s4690, 2048, %s6, [#allocation4], 128, 128, 8
    $region49: #{tpu_custom_call.1} parent=1 // pred_fallthru
      _
    // Predicated region
    $region50: #{tpu_custom_call.1} parent=1 // pred_check
      _
    $region51: #{tpu_custom_call.1} parent=1 // pred_check_branch
      %4697 = sbr.rel (0) target = $region53
    $region52: #{tpu_custom_call.1} parent=1 // pred_region
      %4698 = dma.done [#allocation4], 2048
    $region53: #{tpu_custom_call.1} parent=1 // pred_fallthru
      _
    %4699 = vsyncpa [#allocation3], 1
    %4700 = vsyncpa [#allocation6], 1
    %4701 = vsyncpa [#allocation9], 1
    %4702 = vsyncpa [#allocation4], 1

</llo_original>
